<compile_context>
chip_gen: v7x
topology: tpu7x:2x2x1
jax: 0.10.0
libtpu: 0.0.40
codegen_flags: <defaults>
</compile_context>

<pallas_src>
import jax
import jax.numpy as jnp
from jax.experimental import pallas as pl
from jax.experimental.pallas import tpu as pltpu

# ----------------------------- config ---------------------------------------
IN_CH = 1
IMG = 16
PATCH = 4
SEQ = (IMG // PATCH) * (IMG // PATCH)      # 16 tokens
EMBED = 32
HEADS = 2
HEAD_DIM = EMBED // HEADS
DEPTH = 2
FFN_DIM = 64
NUM_CLASSES = 10
LN_EPS = 1e-5
CPP = IN_CH * PATCH * PATCH                # patch vector length


# --------------------------- fused Pallas kernel -----------------------------
def _fused_forward_kernel(
    patches_ref, embed_w_ref, embed_b_ref, pos_ref,
    qkv_w_ref, qkv_b_ref, proj_w_ref, proj_b_ref,
    ln1_g_ref, ln1_b_ref,
    ffn_w1_ref, ffn_b1_ref, ffn_w2_ref, ffn_b2_ref,
    ln2_g_ref, ln2_b_ref,
    head_w_ref, head_b_ref,
    logits_ref, attn_ref,
):
    """Whole forward pass for ONE image (grid axis 0 = batch)."""
    scale = 1.0 / float(HEAD_DIM) ** 0.5
    inv_heads = 1.0 / float(HEADS)

    def layer_norm(x, g, b):
        mu = jnp.mean(x, axis=-1, keepdims=True)
        xc = x - mu
        var = jnp.mean(xc * xc, axis=-1, keepdims=True)
        return xc * jax.lax.rsqrt(var + LN_EPS) * g + b

    # ---- patch embedding (Conv2d(C, D, P, stride=P) as matmul) + pos --------
    x = patches_ref[0]                                         # (S, C*P*P)
    h = (jnp.dot(x, embed_w_ref[...], preferred_element_type=jnp.float32)
         + embed_b_ref[...] + pos_ref[...])                    # (S, D)

    # ---- encoder layers (post-LN, nn.TransformerEncoderLayer defaults) ------
    for li in range(DEPTH):                                    # unrolled, static
        qkv = (jnp.dot(h, qkv_w_ref[li], preferred_element_type=jnp.float32)
               + qkv_b_ref[li])                                # (S, 3D)
        proj_w = proj_w_ref[li]                                # (D, D)

        attn_out = jnp.zeros((SEQ, EMBED), jnp.float32)
        attn_sum = jnp.zeros((SEQ, SEQ), jnp.float32)
        for hi in range(HEADS):                                # unrolled, static
            qh = qkv[:, hi * HEAD_DIM:(hi + 1) * HEAD_DIM]
            kh = qkv[:, EMBED + hi * HEAD_DIM:EMBED + (hi + 1) * HEAD_DIM]
            vh = qkv[:, 2 * EMBED + hi * HEAD_DIM:2 * EMBED + (hi + 1) * HEAD_DIM]
            # scale folded into q; contract last dims -> no materialized k.T
            s = jax.lax.dot_general(
                qh * scale, kh, (((1,), (1,)), ((), ())),
                preferred_element_type=jnp.float32)            # (S, S)
            m = jnp.max(s, axis=-1, keepdims=True)
            e = jnp.exp(s - m)
            inv = 1.0 / jnp.sum(e, axis=-1, keepdims=True)     # exact, (S, 1)
            p = e * inv                                        # softmax probs
            attn_sum = attn_sum + p                            # head accumulate
            ctx_h = jnp.dot(p, vh, preferred_element_type=jnp.float32)  # (S, Dh)
            # ctx @ proj_w == sum_h ctx_h @ proj_w[h*Dh:(h+1)*Dh, :]
            attn_out = attn_out + jnp.dot(
                ctx_h, proj_w[hi * HEAD_DIM:(hi + 1) * HEAD_DIM, :],
                preferred_element_type=jnp.float32)

        # head-averaged attention map (single (S,S) scale per layer)
        attn_ref[0, li] = attn_sum * inv_heads                 # (S, S)

        attn_out = attn_out + proj_b_ref[li]
        h = layer_norm(h + attn_out, ln1_g_ref[li], ln1_b_ref[li])

        f = (jnp.dot(h, ffn_w1_ref[li], preferred_element_type=jnp.float32)
             + ffn_b1_ref[li])
        f = jnp.maximum(f, 0.0)                                # ReLU
        f = (jnp.dot(f, ffn_w2_ref[li], preferred_element_type=jnp.float32)
             + ffn_b2_ref[li])
        h = layer_norm(h + f, ln2_g_ref[li], ln2_b_ref[li])

    # ---- mean-pool over tokens + classifier head (folded in) ----------------
    pooled = jnp.mean(h, axis=0, keepdims=True)                # (1, D)
    logits_ref[0] = (jnp.dot(pooled, head_w_ref[...],
                             preferred_element_type=jnp.float32)
                     + head_b_ref[...])                        # (1, classes)


# ------------------------- parameter initialisation -------------------------
def init_params(seed=42):
    key = jax.random.PRNGKey(seed)

    def nrm(k, shape, scale=0.02):
        return scale * jax.random.normal(k, shape, dtype=jnp.float32)

    keys = jax.random.split(key, 8)
    return {
        "embed_w": nrm(keys[0], (CPP, EMBED)),
        "embed_b": jnp.zeros((1, EMBED), jnp.float32),
        "pos": nrm(keys[1], (SEQ, EMBED)),
        "head_w": nrm(keys[2], (EMBED, NUM_CLASSES)),
        "head_b": jnp.zeros((1, NUM_CLASSES), jnp.float32),
        # per-layer weights stacked along a DEPTH axis (one HBM array each)
        "qkv_w": nrm(keys[3], (DEPTH, EMBED, 3 * EMBED)),
        "qkv_b": jnp.zeros((DEPTH, 1, 3 * EMBED), jnp.float32),
        "proj_w": nrm(keys[4], (DEPTH, EMBED, EMBED)),
        "proj_b": jnp.zeros((DEPTH, 1, EMBED), jnp.float32),
        "ln1_g": jnp.ones((DEPTH, 1, EMBED), jnp.float32),
        "ln1_b": jnp.zeros((DEPTH, 1, EMBED), jnp.float32),
        "ffn_w1": nrm(keys[5], (DEPTH, EMBED, FFN_DIM)),
        "ffn_b1": jnp.zeros((DEPTH, 1, FFN_DIM), jnp.float32),
        "ffn_w2": nrm(keys[6], (DEPTH, FFN_DIM, EMBED)),
        "ffn_b2": jnp.zeros((DEPTH, 1, EMBED), jnp.float32),
        "ln2_g": jnp.ones((DEPTH, 1, EMBED), jnp.float32),
        "ln2_b": jnp.zeros((DEPTH, 1, EMBED), jnp.float32),
    }


# --------------------------- base model forward ------------------------------
def base_model_forward(params, x):
    """x: (B, C, H, W) NCHW float32.  Returns (logits, [attn_map per layer])."""
    b, c, hgt, wid = x.shape
    p = PATCH
    # Patchify == Conv2d(C, EMBED, kernel=P, stride=P) realised as matmul.
    patches = (
        x.reshape(b, c, hgt // p, p, wid // p, p)
        .transpose(0, 2, 4, 1, 3, 5)
        .reshape(b, SEQ, c * p * p)
    )
    cpp = c * p * p

    def full2(shape):
        return pl.BlockSpec(shape, lambda bi: (0, 0))

    def full3(shape):
        return pl.BlockSpec(shape, lambda bi: (0, 0, 0))

    in_specs = [
        pl.BlockSpec((1, SEQ, cpp), lambda bi: (bi, 0, 0)),        # patches
        full2((cpp, EMBED)), full2((1, EMBED)), full2((SEQ, EMBED)),
        full3((DEPTH, EMBED, 3 * EMBED)), full3((DEPTH, 1, 3 * EMBED)),
        full3((DEPTH, EMBED, EMBED)), full3((DEPTH, 1, EMBED)),
        full3((DEPTH, 1, EMBED)), full3((DEPTH, 1, EMBED)),
        full3((DEPTH, EMBED, FFN_DIM)), full3((DEPTH, 1, FFN_DIM)),
        full3((DEPTH, FFN_DIM, EMBED)), full3((DEPTH, 1, EMBED)),
        full3((DEPTH, 1, EMBED)), full3((DEPTH, 1, EMBED)),
        full2((EMBED, NUM_CLASSES)), full2((1, NUM_CLASSES)),
    ]
    out_specs = (
        pl.BlockSpec((1, 1, NUM_CLASSES), lambda bi: (bi, 0, 0)),
        pl.BlockSpec((1, DEPTH, SEQ, SEQ), lambda bi: (bi, 0, 0, 0)),
    )
    out_shape = (
        jax.ShapeDtypeStruct((b, 1, NUM_CLASSES), jnp.float32),
        jax.ShapeDtypeStruct((b, DEPTH, SEQ, SEQ), jnp.float32),
    )

    args = (
        patches,
        params["embed_w"], params["embed_b"], params["pos"],
        params["qkv_w"], params["qkv_b"], params["proj_w"], params["proj_b"],
        params["ln1_g"], params["ln1_b"],
        params["ffn_w1"], params["ffn_b1"], params["ffn_w2"], params["ffn_b2"],
        params["ln2_g"], params["ln2_b"],
        params["head_w"], params["head_b"],
    )

    # advisory cost estimate for the single fused custom call
    per_layer_flops = (
        2 * SEQ * EMBED * 3 * EMBED                 # QKV projection
        + HEADS * 2 * (2 * SEQ * SEQ * HEAD_DIM)    # q@k^T and p@v per head
        + HEADS * 2 * SEQ * HEAD_DIM * EMBED        # output projection (split)
        + 2 * (2 * SEQ * EMBED * FFN_DIM)           # FFN matmuls
    )
    flops = int(b * (2 * SEQ * cpp * EMBED + DEPTH * per_layer_flops
                     + 2 * EMBED * NUM_CLASSES))
    transcendentals = int(b * DEPTH * HEADS * SEQ * SEQ)   # softmax exps
    bytes_accessed = int(
        4 * (sum(int(a.size) for a in args)
             + b * NUM_CLASSES + b * DEPTH * SEQ * SEQ))

    logits3, attn = pl.pallas_call(
        _fused_forward_kernel,
        grid=(b,),
        out_shape=out_shape,
        in_specs=in_specs,
        out_specs=out_specs,
        compiler_params=pltpu.CompilerParams(
            dimension_semantics=("parallel",)),     # v7x: one image per TC
        cost_estimate=pl.CostEstimate(
            flops=flops, transcendentals=transcendentals,
            bytes_accessed=bytes_accessed),
    )(*args)

    logits = logits3.reshape(b, NUM_CLASSES)
    attn_maps = [attn[:, li] for li in range(DEPTH)]            # each (B, S, S)
    return logits, attn_maps


_jit_forward = jax.jit(base_model_forward)


# --------------------------- pure-JAX reference ------------------------------
def _reference_forward(params, x):
    b, c, hgt, wid = x.shape
    p = PATCH
    patches = (x.reshape(b, c, hgt // p, p, wid // p, p)
               .transpose(0, 2, 4, 1, 3, 5).reshape(b, SEQ, c * p * p))
    h = patches @ params["embed_w"] + params["embed_b"] + params["pos"]

    def ln(x, g, b_):
        mu = x.mean(-1, keepdims=True)
        var = ((x - mu) ** 2).mean(-1, keepdims=True)
        return (x - mu) / jnp.sqrt(var + LN_EPS) * g + b_

    maps = []
    scale = 1.0 / float(HEAD_DIM) ** 0.5
    for li in range(DEPTH):
        qkv = h @ params["qkv_w"][li] + params["qkv_b"][li]     # (B, S, 3D)
        qkv = qkv.reshape(b, SEQ, 3, HEADS, HEAD_DIM).transpose(2, 0, 3, 1, 4)
        q, k, v = qkv[0], qkv[1], qkv[2]                        # (B, H, S, Dh)
        s = jnp.einsum("bhqd,bhkd->bhqk", q, k) * scale
        pmat = jax.nn.softmax(s, axis=-1)
        maps.append(pmat.mean(axis=1))                          # (B, S, S)
        ctx = jnp.einsum("bhqk,bhkd->bhqd", pmat, v)
        ctx = ctx.transpose(0, 2, 1, 3).reshape(b, SEQ, EMBED)
        h = ln(h + ctx @ params["proj_w"][li] + params["proj_b"][li],
               params["ln1_g"][li], params["ln1_b"][li])
        f = jnp.maximum(h @ params["ffn_w1"][li] + params["ffn_b1"][li], 0.0)
        f = f @ params["ffn_w2"][li] + params["ffn_b2"][li]
        h = ln(h + f, params["ln2_g"][li], params["ln2_b"][li])
    pooled = h.mean(axis=1)
    logits = pooled @ params["head_w"] + params["head_b"]
    return logits.reshape(b, NUM_CLASSES), maps


# ----------------------------- analyzer wrapper ------------------------------
class AttentionAnalyzer:
    """JAX equivalent of the PyTorch AttentionAnalyzer wrapper: runs the base
    model and collects per-layer (head-averaged) attention maps."""
    # TODO(synk): PyTorch forward hooks / .detach() have no Pallas analogue;
    # attention maps are returned as explicit kernel outputs instead.

    def __init__(self, params):
        self.params = params
        self.attention_maps = []
        self.layer_outputs = []

    def forward(self, x):
        self.attention_maps.clear()
        self.layer_outputs.clear()
        output, maps = _jit_forward(self.params, x)
        self.attention_maps = list(maps)
        return output

    __call__ = forward

    def get_attention_maps(self):
        return self.attention_maps


# --------------------------------- main --------------------------------------
if __name__ == "__main__":
    params = init_params(seed=42)
    analyzer = AttentionAnalyzer(params)

    key = jax.random.PRNGKey(0)
    x = jax.random.normal(key, (2, IN_CH, IMG, IMG), dtype=jnp.float32)  # NCHW

    logits = analyzer(x)
    jax.block_until_ready(logits)
    maps = analyzer.get_attention_maps()
    for m in maps:
        jax.block_until_ready(m)

    assert logits.shape == (2, NUM_CLASSES)
    assert len(maps) == DEPTH and maps[0].shape == (2, SEQ, SEQ)
    # rows of each attention map sum to 1 (exact softmax normalisation kept)
    assert bool(jnp.allclose(maps[0].sum(-1), 1.0, atol=1e-5))

    # sanity check against a pure-JAX reference (loose tol: MXU f32 matmul path)
    ref_logits, ref_maps = jax.jit(_reference_forward)(params, x)
    assert bool(jnp.allclose(logits, ref_logits, atol=5e-3, rtol=5e-2))
    assert bool(jnp.allclose(maps[0], ref_maps[0], atol=5e-3, rtol=5e-2))
    assert bool(jnp.allclose(maps[1], ref_maps[1], atol=5e-3, rtol=5e-2))

    print("KERNEL_OK")
</pallas_src>

<mosaic_0001>
module attributes {stable_mosaic.version = 11 : i64} {
  func.func @_fused_forward_kernel(%arg0: i32, %arg1: memref<1x16x16xf32, #tpu.memory_space<vmem>>, %arg2: memref<16x32xf32, #tpu.memory_space<vmem>>, %arg3: memref<1x32xf32, #tpu.memory_space<vmem>>, %arg4: memref<16x32xf32, #tpu.memory_space<vmem>>, %arg5: memref<2x32x96xf32, #tpu.memory_space<vmem>>, %arg6: memref<2x1x96xf32, #tpu.memory_space<vmem>>, %arg7: memref<2x32x32xf32, #tpu.memory_space<vmem>>, %arg8: memref<2x1x32xf32, #tpu.memory_space<vmem>>, %arg9: memref<2x1x32xf32, #tpu.memory_space<vmem>>, %arg10: memref<2x1x32xf32, #tpu.memory_space<vmem>>, %arg11: memref<2x32x64xf32, #tpu.memory_space<vmem>>, %arg12: memref<2x1x64xf32, #tpu.memory_space<vmem>>, %arg13: memref<2x64x32xf32, #tpu.memory_space<vmem>>, %arg14: memref<2x1x32xf32, #tpu.memory_space<vmem>>, %arg15: memref<2x1x32xf32, #tpu.memory_space<vmem>>, %arg16: memref<2x1x32xf32, #tpu.memory_space<vmem>>, %arg17: memref<32x10xf32, #tpu.memory_space<vmem>>, %arg18: memref<1x10xf32, #tpu.memory_space<vmem>>, %arg19: memref<1x1x10xf32, #tpu.memory_space<vmem>>, %arg20: memref<1x2x16x16xf32, #tpu.memory_space<vmem>>) attributes {dimension_semantics = [#tpu.dimension_semantics<parallel>], iteration_bounds = array<i64: 2>, scalar_prefetch = 0 : i64, scratch_operands = 0 : i64, tpu.core_type = #tpu.core_type<tc>, window_params = [{transform_indices = @transform_0, window_bounds = array<i64: 1, 16, 16>}, {pipeline_mode = #tpu.pipeline_mode<synchronous>, transform_indices = @transform_1, window_bounds = array<i64: 16, 32>}, {pipeline_mode = #tpu.pipeline_mode<synchronous>, transform_indices = @transform_2, window_bounds = array<i64: 1, 32>}, {pipeline_mode = #tpu.pipeline_mode<synchronous>, transform_indices = @transform_3, window_bounds = array<i64: 16, 32>}, {pipeline_mode = #tpu.pipeline_mode<synchronous>, transform_indices = @transform_4, window_bounds = array<i64: 2, 32, 96>}, {pipeline_mode = #tpu.pipeline_mode<synchronous>, transform_indices = @transform_5, window_bounds = array<i64: 2, 1, 96>}, {pipeline_mode = #tpu.pipeline_mode<synchronous>, transform_indices = @transform_6, window_bounds = array<i64: 2, 32, 32>}, {pipeline_mode = #tpu.pipeline_mode<synchronous>, transform_indices = @transform_7, window_bounds = array<i64: 2, 1, 32>}, {pipeline_mode = #tpu.pipeline_mode<synchronous>, transform_indices = @transform_8, window_bounds = array<i64: 2, 1, 32>}, {pipeline_mode = #tpu.pipeline_mode<synchronous>, transform_indices = @transform_9, window_bounds = array<i64: 2, 1, 32>}, {pipeline_mode = #tpu.pipeline_mode<synchronous>, transform_indices = @transform_10, window_bounds = array<i64: 2, 32, 64>}, {pipeline_mode = #tpu.pipeline_mode<synchronous>, transform_indices = @transform_11, window_bounds = array<i64: 2, 1, 64>}, {pipeline_mode = #tpu.pipeline_mode<synchronous>, transform_indices = @transform_12, window_bounds = array<i64: 2, 64, 32>}, {pipeline_mode = #tpu.pipeline_mode<synchronous>, transform_indices = @transform_13, window_bounds = array<i64: 2, 1, 32>}, {pipeline_mode = #tpu.pipeline_mode<synchronous>, transform_indices = @transform_14, window_bounds = array<i64: 2, 1, 32>}, {pipeline_mode = #tpu.pipeline_mode<synchronous>, transform_indices = @transform_15, window_bounds = array<i64: 2, 1, 32>}, {pipeline_mode = #tpu.pipeline_mode<synchronous>, transform_indices = @transform_16, window_bounds = array<i64: 32, 10>}, {pipeline_mode = #tpu.pipeline_mode<synchronous>, transform_indices = @transform_17, window_bounds = array<i64: 1, 10>}, {transform_indices = @transform_18, window_bounds = array<i64: 1, 1, 10>}, {transform_indices = @transform_19, window_bounds = array<i64: 1, 2, 16, 16>}]} {
    %c0 = arith.constant 0 : index
    %c0_0 = arith.constant 0 : index
    %c0_1 = arith.constant 0 : index
    %0 = vector.load %arg1[%c0, %c0_0, %c0_1] : memref<1x16x16xf32, #tpu.memory_space<vmem>>, vector<1x16x16xf32>
    %1 = vector.shape_cast %0 : vector<1x16x16xf32> to vector<16x16xf32>
    %c0_2 = arith.constant 0 : index
    %c0_3 = arith.constant 0 : index
    %2 = vector.load %arg2[%c0_2, %c0_3] : memref<16x32xf32, #tpu.memory_space<vmem>>, vector<16x32xf32>
    %cst = arith.constant dense<0.000000e+00> : vector<16x32xf32>
    %3 = tpu.matmul %1, %2, %cst {dimension_numbers = #tpu.dot_dimension_numbers<[1], [0], [0], [1], [0, 0, 1, 1], [], []>} : vector<16x16xf32>, vector<16x32xf32>, vector<16x32xf32> -> vector<16x32xf32>
    %c0_4 = arith.constant 0 : index
    %c0_5 = arith.constant 0 : index
    %4 = vector.load %arg3[%c0_4, %c0_5] : memref<1x32xf32, #tpu.memory_space<vmem>>, vector<1x32xf32>
    %5 = vector.broadcast %4 : vector<1x32xf32> to vector<16x32xf32>
    %6 = arith.addf %3, %5 : vector<16x32xf32>
    %c0_6 = arith.constant 0 : index
    %c0_7 = arith.constant 0 : index
    %7 = vector.load %arg4[%c0_6, %c0_7] : memref<16x32xf32, #tpu.memory_space<vmem>>, vector<16x32xf32>
    %8 = arith.addf %6, %7 : vector<16x32xf32>
    %c0_8 = arith.constant 0 : index
    %c0_9 = arith.constant 0 : index
    %c0_10 = arith.constant 0 : index
    %9 = vector.load %arg5[%c0_8, %c0_9, %c0_10] : memref<2x32x96xf32, #tpu.memory_space<vmem>>, vector<1x32x96xf32>
    %10 = vector.shape_cast %9 : vector<1x32x96xf32> to vector<32x96xf32>
    %cst_11 = arith.constant dense<0.000000e+00> : vector<16x96xf32>
    %11 = tpu.matmul %8, %10, %cst_11 {dimension_numbers = #tpu.dot_dimension_numbers<[1], [0], [0], [1], [0, 0, 1, 1], [], []>} : vector<16x32xf32>, vector<32x96xf32>, vector<16x96xf32> -> vector<16x96xf32>
    %c0_12 = arith.constant 0 : index
    %c0_13 = arith.constant 0 : index
    %c0_14 = arith.constant 0 : index
    %12 = vector.load %arg6[%c0_12, %c0_13, %c0_14] : memref<2x1x96xf32, #tpu.memory_space<vmem>>, vector<1x1x96xf32>
    %13 = vector.shape_cast %12 : vector<1x1x96xf32> to vector<1x96xf32>
    %14 = vector.broadcast %13 : vector<1x96xf32> to vector<16x96xf32>
    %15 = arith.addf %11, %14 : vector<16x96xf32>
    %c0_15 = arith.constant 0 : index
    %c0_16 = arith.constant 0 : index
    %c0_17 = arith.constant 0 : index
    %16 = vector.load %arg7[%c0_15, %c0_16, %c0_17] : memref<2x32x32xf32, #tpu.memory_space<vmem>>, vector<1x32x32xf32>
    %17 = vector.shape_cast %16 : vector<1x32x32xf32> to vector<32x32xf32>
    %cst_18 = arith.constant 0.000000e+00 : f32
    %18 = vector.broadcast %cst_18 : f32 to vector<16x32xf32>
    %cst_19 = arith.constant 0.000000e+00 : f32
    %19 = vector.broadcast %cst_19 : f32 to vector<16x16xf32>
    %20 = vector.extract_strided_slice %15 {offsets = [0, 0], sizes = [16, 16], strides = [1, 1]} : vector<16x96xf32> to vector<16x16xf32>
    %21 = vector.extract_strided_slice %15 {offsets = [0, 32], sizes = [16, 16], strides = [1, 1]} : vector<16x96xf32> to vector<16x16xf32>
    %22 = vector.extract_strided_slice %15 {offsets = [0, 64], sizes = [16, 16], strides = [1, 1]} : vector<16x96xf32> to vector<16x16xf32>
    %cst_20 = arith.constant 2.500000e-01 : f32
    %23 = vector.broadcast %cst_20 : f32 to vector<16x16xf32>
    %24 = arith.mulf %20, %23 : vector<16x16xf32>
    %cst_21 = arith.constant dense<0.000000e+00> : vector<16x16xf32>
    %25 = tpu.matmul %24, %21, %cst_21 {dimension_numbers = #tpu.dot_dimension_numbers<[1], [1], [0], [0], [0, 0, 1, 0], [], []>} : vector<16x16xf32>, vector<16x16xf32>, vector<16x16xf32> -> vector<16x16xf32>
    %cst_22 = arith.constant dense<0xFF800000> : vector<16xf32>
    %26 = vector.multi_reduction <maximumf>, %25, %cst_22 [1] : vector<16x16xf32> to vector<16xf32>
    %27 = vector.shape_cast %26 : vector<16xf32> to vector<16x1xf32>
    %28 = vector.broadcast %27 : vector<16x1xf32> to vector<16x16xf32>
    %29 = arith.subf %25, %28 : vector<16x16xf32>
    %30 = math.exp %29 : vector<16x16xf32>
    %cst_23 = arith.constant dense<0.000000e+00> : vector<16xf32>
    %31 = vector.multi_reduction <add>, %30, %cst_23 [1] : vector<16x16xf32> to vector<16xf32>
    %32 = vector.shape_cast %31 : vector<16xf32> to vector<16x1xf32>
    %cst_24 = arith.constant 1.000000e+00 : f32
    %33 = vector.broadcast %cst_24 : f32 to vector<16x1xf32>
    %34 = arith.divf %33, %32 : vector<16x1xf32>
    %35 = vector.broadcast %34 : vector<16x1xf32> to vector<16x16xf32>
    %36 = arith.mulf %30, %35 : vector<16x16xf32>
    %37 = arith.addf %19, %36 : vector<16x16xf32>
    %cst_25 = arith.constant dense<0.000000e+00> : vector<16x16xf32>
    %38 = tpu.matmul %36, %22, %cst_25 {dimension_numbers = #tpu.dot_dimension_numbers<[1], [0], [0], [1], [0, 0, 1, 1], [], []>} : vector<16x16xf32>, vector<16x16xf32>, vector<16x16xf32> -> vector<16x16xf32>
    %39 = vector.extract_strided_slice %17 {offsets = [0, 0], sizes = [16, 32], strides = [1, 1]} : vector<32x32xf32> to vector<16x32xf32>
    %cst_26 = arith.constant dense<0.000000e+00> : vector<16x32xf32>
    %40 = tpu.matmul %38, %39, %cst_26 {dimension_numbers = #tpu.dot_dimension_numbers<[1], [0], [0], [1], [0, 0, 1, 1], [], []>} : vector<16x16xf32>, vector<16x32xf32>, vector<16x32xf32> -> vector<16x32xf32>
    %41 = arith.addf %18, %40 : vector<16x32xf32>
    %42 = vector.extract_strided_slice %15 {offsets = [0, 16], sizes = [16, 16], strides = [1, 1]} : vector<16x96xf32> to vector<16x16xf32>
    %43 = vector.extract_strided_slice %15 {offsets = [0, 48], sizes = [16, 16], strides = [1, 1]} : vector<16x96xf32> to vector<16x16xf32>
    %44 = vector.extract_strided_slice %15 {offsets = [0, 80], sizes = [16, 16], strides = [1, 1]} : vector<16x96xf32> to vector<16x16xf32>
    %cst_27 = arith.constant 2.500000e-01 : f32
    %45 = vector.broadcast %cst_27 : f32 to vector<16x16xf32>
    %46 = arith.mulf %42, %45 : vector<16x16xf32>
    %cst_28 = arith.constant dense<0.000000e+00> : vector<16x16xf32>
    %47 = tpu.matmul %46, %43, %cst_28 {dimension_numbers = #tpu.dot_dimension_numbers<[1], [1], [0], [0], [0, 0, 1, 0], [], []>} : vector<16x16xf32>, vector<16x16xf32>, vector<16x16xf32> -> vector<16x16xf32>
    %cst_29 = arith.constant dense<0xFF800000> : vector<16xf32>
    %48 = vector.multi_reduction <maximumf>, %47, %cst_29 [1] : vector<16x16xf32> to vector<16xf32>
    %49 = vector.shape_cast %48 : vector<16xf32> to vector<16x1xf32>
    %50 = vector.broadcast %49 : vector<16x1xf32> to vector<16x16xf32>
    %51 = arith.subf %47, %50 : vector<16x16xf32>
    %52 = math.exp %51 : vector<16x16xf32>
    %cst_30 = arith.constant dense<0.000000e+00> : vector<16xf32>
    %53 = vector.multi_reduction <add>, %52, %cst_30 [1] : vector<16x16xf32> to vector<16xf32>
    %54 = vector.shape_cast %53 : vector<16xf32> to vector<16x1xf32>
    %cst_31 = arith.constant 1.000000e+00 : f32
    %55 = vector.broadcast %cst_31 : f32 to vector<16x1xf32>
    %56 = arith.divf %55, %54 : vector<16x1xf32>
    %57 = vector.broadcast %56 : vector<16x1xf32> to vector<16x16xf32>
    %58 = arith.mulf %52, %57 : vector<16x16xf32>
    %59 = arith.addf %37, %58 : vector<16x16xf32>
    %cst_32 = arith.constant dense<0.000000e+00> : vector<16x16xf32>
    %60 = tpu.matmul %58, %44, %cst_32 {dimension_numbers = #tpu.dot_dimension_numbers<[1], [0], [0], [1], [0, 0, 1, 1], [], []>} : vector<16x16xf32>, vector<16x16xf32>, vector<16x16xf32> -> vector<16x16xf32>
    %61 = vector.extract_strided_slice %17 {offsets = [16, 0], sizes = [16, 32], strides = [1, 1]} : vector<32x32xf32> to vector<16x32xf32>
    %cst_33 = arith.constant dense<0.000000e+00> : vector<16x32xf32>
    %62 = tpu.matmul %60, %61, %cst_33 {dimension_numbers = #tpu.dot_dimension_numbers<[1], [0], [0], [1], [0, 0, 1, 1], [], []>} : vector<16x16xf32>, vector<16x32xf32>, vector<16x32xf32> -> vector<16x32xf32>
    %63 = arith.addf %41, %62 : vector<16x32xf32>
    %cst_34 = arith.constant 5.000000e-01 : f32
    %64 = vector.broadcast %cst_34 : f32 to vector<16x16xf32>
    %65 = arith.mulf %59, %64 : vector<16x16xf32>
    %c0_35 = arith.constant 0 : index
    %c0_36 = arith.constant 0 : index
    %c0_37 = arith.constant 0 : index
    %c0_38 = arith.constant 0 : index
    %66 = vector.load %arg20[%c0_35, %c0_36, %c0_37, %c0_38] : memref<1x2x16x16xf32, #tpu.memory_space<vmem>>, vector<1x1x16x16xf32>
    %67 = vector.shape_cast %66 : vector<1x1x16x16xf32> to vector<16x16xf32>
    %68 = vector.shape_cast %65 : vector<16x16xf32> to vector<1x1x16x16xf32>
    tpu.vector_store %arg20[%c0_35, %c0_36, %c0_37, %c0_38], %68 {strides = array<i32>} : memref<1x2x16x16xf32, #tpu.memory_space<vmem>>, vector<1x1x16x16xf32>,
    %c0_39 = arith.constant 0 : index
    %c0_40 = arith.constant 0 : index
    %c0_41 = arith.constant 0 : index
    %69 = vector.load %arg8[%c0_39, %c0_40, %c0_41] : memref<2x1x32xf32, #tpu.memory_space<vmem>>, vector<1x1x32xf32>
    %70 = vector.shape_cast %69 : vector<1x1x32xf32> to vector<1x32xf32>
    %71 = vector.broadcast %70 : vector<1x32xf32> to vector<16x32xf32>
    %72 = arith.addf %63, %71 : vector<16x32xf32>
    %73 = arith.addf %8, %72 : vector<16x32xf32>
    %c0_42 = arith.constant 0 : index
    %c0_43 = arith.constant 0 : index
    %c0_44 = arith.constant 0 : index
    %74 = vector.load %arg9[%c0_42, %c0_43, %c0_44] : memref<2x1x32xf32, #tpu.memory_space<vmem>>, vector<1x1x32xf32>
    %75 = vector.shape_cast %74 : vector<1x1x32xf32> to vector<1x32xf32>
    %c0_45 = arith.constant 0 : index
    %c0_46 = arith.constant 0 : index
    %c0_47 = arith.constant 0 : index
    %76 = vector.load %arg10[%c0_45, %c0_46, %c0_47] : memref<2x1x32xf32, #tpu.memory_space<vmem>>, vector<1x1x32xf32>
    %77 = vector.shape_cast %76 : vector<1x1x32xf32> to vector<1x32xf32>
    %cst_48 = arith.constant dense<0.000000e+00> : vector<16xf32>
    %78 = vector.multi_reduction <add>, %73, %cst_48 [1] : vector<16x32xf32> to vector<16xf32>
    %79 = vector.shape_cast %78 : vector<16xf32> to vector<16x1xf32>
    %cst_49 = arith.constant 3.200000e+01 : f32
    %80 = vector.broadcast %cst_49 : f32 to vector<16x1xf32>
    %81 = arith.divf %79, %80 : vector<16x1xf32>
    %82 = vector.broadcast %81 : vector<16x1xf32> to vector<16x32xf32>
    %83 = arith.subf %73, %82 : vector<16x32xf32>
    %84 = arith.mulf %83, %83 : vector<16x32xf32>
    %cst_50 = arith.constant dense<0.000000e+00> : vector<16xf32>
    %85 = vector.multi_reduction <add>, %84, %cst_50 [1] : vector<16x32xf32> to vector<16xf32>
    %86 = vector.shape_cast %85 : vector<16xf32> to vector<16x1xf32>
    %cst_51 = arith.constant 3.200000e+01 : f32
    %87 = vector.broadcast %cst_51 : f32 to vector<16x1xf32>
    %88 = arith.divf %86, %87 : vector<16x1xf32>
    %cst_52 = arith.constant 9.99999974E-6 : f32
    %89 = vector.broadcast %cst_52 : f32 to vector<16x1xf32>
    %90 = arith.addf %88, %89 : vector<16x1xf32>
    %91 = math.rsqrt %90 : vector<16x1xf32>
    %92 = vector.broadcast %91 : vector<16x1xf32> to vector<16x32xf32>
    %93 = arith.mulf %83, %92 : vector<16x32xf32>
    %94 = vector.broadcast %75 : vector<1x32xf32> to vector<16x32xf32>
    %95 = arith.mulf %93, %94 : vector<16x32xf32>
    %96 = vector.broadcast %77 : vector<1x32xf32> to vector<16x32xf32>
    %97 = arith.addf %95, %96 : vector<16x32xf32>
    %c0_53 = arith.constant 0 : index
    %c0_54 = arith.constant 0 : index
    %c0_55 = arith.constant 0 : index
    %98 = vector.load %arg11[%c0_53, %c0_54, %c0_55] : memref<2x32x64xf32, #tpu.memory_space<vmem>>, vector<1x32x64xf32>
    %99 = vector.shape_cast %98 : vector<1x32x64xf32> to vector<32x64xf32>
    %cst_56 = arith.constant dense<0.000000e+00> : vector<16x64xf32>
    %100 = tpu.matmul %97, %99, %cst_56 {dimension_numbers = #tpu.dot_dimension_numbers<[1], [0], [0], [1], [0, 0, 1, 1], [], []>} : vector<16x32xf32>, vector<32x64xf32>, vector<16x64xf32> -> vector<16x64xf32>
    %c0_57 = arith.constant 0 : index
    %c0_58 = arith.constant 0 : index
    %c0_59 = arith.constant 0 : index
    %101 = vector.load %arg12[%c0_57, %c0_58, %c0_59] : memref<2x1x64xf32, #tpu.memory_space<vmem>>, vector<1x1x64xf32>
    %102 = vector.shape_cast %101 : vector<1x1x64xf32> to vector<1x64xf32>
    %103 = vector.broadcast %102 : vector<1x64xf32> to vector<16x64xf32>
    %104 = arith.addf %100, %103 : vector<16x64xf32>
    %cst_60 = arith.constant 0.000000e+00 : f32
    %105 = vector.broadcast %cst_60 : f32 to vector<16x64xf32>
    %106 = arith.maximumf %104, %105 : vector<16x64xf32>
    %c0_61 = arith.constant 0 : index
    %c0_62 = arith.constant 0 : index
    %c0_63 = arith.constant 0 : index
    %107 = vector.load %arg13[%c0_61, %c0_62, %c0_63] : memref<2x64x32xf32, #tpu.memory_space<vmem>>, vector<1x64x32xf32>
    %108 = vector.shape_cast %107 : vector<1x64x32xf32> to vector<64x32xf32>
    %cst_64 = arith.constant dense<0.000000e+00> : vector<16x32xf32>
    %109 = tpu.matmul %106, %108, %cst_64 {dimension_numbers = #tpu.dot_dimension_numbers<[1], [0], [0], [1], [0, 0, 1, 1], [], []>} : vector<16x64xf32>, vector<64x32xf32>, vector<16x32xf32> -> vector<16x32xf32>
    %c0_65 = arith.constant 0 : index
    %c0_66 = arith.constant 0 : index
    %c0_67 = arith.constant 0 : index
    %110 = vector.load %arg14[%c0_65, %c0_66, %c0_67] : memref<2x1x32xf32, #tpu.memory_space<vmem>>, vector<1x1x32xf32>
    %111 = vector.shape_cast %110 : vector<1x1x32xf32> to vector<1x32xf32>
    %112 = vector.broadcast %111 : vector<1x32xf32> to vector<16x32xf32>
    %113 = arith.addf %109, %112 : vector<16x32xf32>
    %114 = arith.addf %97, %113 : vector<16x32xf32>
    %c0_68 = arith.constant 0 : index
    %c0_69 = arith.constant 0 : index
    %c0_70 = arith.constant 0 : index
    %115 = vector.load %arg15[%c0_68, %c0_69, %c0_70] : memref<2x1x32xf32, #tpu.memory_space<vmem>>, vector<1x1x32xf32>
    %116 = vector.shape_cast %115 : vector<1x1x32xf32> to vector<1x32xf32>
    %c0_71 = arith.constant 0 : index
    %c0_72 = arith.constant 0 : index
    %c0_73 = arith.constant 0 : index
    %117 = vector.load %arg16[%c0_71, %c0_72, %c0_73] : memref<2x1x32xf32, #tpu.memory_space<vmem>>, vector<1x1x32xf32>
    %118 = vector.shape_cast %117 : vector<1x1x32xf32> to vector<1x32xf32>
    %cst_74 = arith.constant dense<0.000000e+00> : vector<16xf32>
    %119 = vector.multi_reduction <add>, %114, %cst_74 [1] : vector<16x32xf32> to vector<16xf32>
    %120 = vector.shape_cast %119 : vector<16xf32> to vector<16x1xf32>
    %cst_75 = arith.constant 3.200000e+01 : f32
    %121 = vector.broadcast %cst_75 : f32 to vector<16x1xf32>
    %122 = arith.divf %120, %121 : vector<16x1xf32>
    %123 = vector.broadcast %122 : vector<16x1xf32> to vector<16x32xf32>
    %124 = arith.subf %114, %123 : vector<16x32xf32>
    %125 = arith.mulf %124, %124 : vector<16x32xf32>
    %cst_76 = arith.constant dense<0.000000e+00> : vector<16xf32>
    %126 = vector.multi_reduction <add>, %125, %cst_76 [1] : vector<16x32xf32> to vector<16xf32>
    %127 = vector.shape_cast %126 : vector<16xf32> to vector<16x1xf32>
    %cst_77 = arith.constant 3.200000e+01 : f32
    %128 = vector.broadcast %cst_77 : f32 to vector<16x1xf32>
    %129 = arith.divf %127, %128 : vector<16x1xf32>
    %cst_78 = arith.constant 9.99999974E-6 : f32
    %130 = vector.broadcast %cst_78 : f32 to vector<16x1xf32>
    %131 = arith.addf %129, %130 : vector<16x1xf32>
    %132 = math.rsqrt %131 : vector<16x1xf32>
    %133 = vector.broadcast %132 : vector<16x1xf32> to vector<16x32xf32>
    %134 = arith.mulf %124, %133 : vector<16x32xf32>
    %135 = vector.broadcast %116 : vector<1x32xf32> to vector<16x32xf32>
    %136 = arith.mulf %134, %135 : vector<16x32xf32>
    %137 = vector.broadcast %118 : vector<1x32xf32> to vector<16x32xf32>
    %138 = arith.addf %136, %137 : vector<16x32xf32>
    %c1 = arith.constant 1 : index
    %c0_79 = arith.constant 0 : index
    %c0_80 = arith.constant 0 : index
    %139 = vector.load %arg5[%c1, %c0_79, %c0_80] : memref<2x32x96xf32, #tpu.memory_space<vmem>>, vector<1x32x96xf32>
    %140 = vector.shape_cast %139 : vector<1x32x96xf32> to vector<32x96xf32>
    %cst_81 = arith.constant dense<0.000000e+00> : vector<16x96xf32>
    %141 = tpu.matmul %138, %140, %cst_81 {dimension_numbers = #tpu.dot_dimension_numbers<[1], [0], [0], [1], [0, 0, 1, 1], [], []>} : vector<16x32xf32>, vector<32x96xf32>, vector<16x96xf32> -> vector<16x96xf32>
    %c1_82 = arith.constant 1 : index
    %c0_83 = arith.constant 0 : index
    %c0_84 = arith.constant 0 : index
    %142 = vector.load %arg6[%c1_82, %c0_83, %c0_84] : memref<2x1x96xf32, #tpu.memory_space<vmem>>, vector<1x1x96xf32>
    %143 = vector.shape_cast %142 : vector<1x1x96xf32> to vector<1x96xf32>
    %144 = vector.broadcast %143 : vector<1x96xf32> to vector<16x96xf32>
    %145 = arith.addf %141, %144 : vector<16x96xf32>
    %c1_85 = arith.constant 1 : index
    %c0_86 = arith.constant 0 : index
    %c0_87 = arith.constant 0 : index
    %146 = vector.load %arg7[%c1_85, %c0_86, %c0_87] : memref<2x32x32xf32, #tpu.memory_space<vmem>>, vector<1x32x32xf32>
    %147 = vector.shape_cast %146 : vector<1x32x32xf32> to vector<32x32xf32>
    %cst_88 = arith.constant 0.000000e+00 : f32
    %148 = vector.broadcast %cst_88 : f32 to vector<16x32xf32>
    %cst_89 = arith.constant 0.000000e+00 : f32
    %149 = vector.broadcast %cst_89 : f32 to vector<16x16xf32>
    %150 = vector.extract_strided_slice %145 {offsets = [0, 0], sizes = [16, 16], strides = [1, 1]} : vector<16x96xf32> to vector<16x16xf32>
    %151 = vector.extract_strided_slice %145 {offsets = [0, 32], sizes = [16, 16], strides = [1, 1]} : vector<16x96xf32> to vector<16x16xf32>
    %152 = vector.extract_strided_slice %145 {offsets = [0, 64], sizes = [16, 16], strides = [1, 1]} : vector<16x96xf32> to vector<16x16xf32>
    %cst_90 = arith.constant 2.500000e-01 : f32
    %153 = vector.broadcast %cst_90 : f32 to vector<16x16xf32>
    %154 = arith.mulf %150, %153 : vector<16x16xf32>
    %cst_91 = arith.constant dense<0.000000e+00> : vector<16x16xf32>
    %155 = tpu.matmul %154, %151, %cst_91 {dimension_numbers = #tpu.dot_dimension_numbers<[1], [1], [0], [0], [0, 0, 1, 0], [], []>} : vector<16x16xf32>, vector<16x16xf32>, vector<16x16xf32> -> vector<16x16xf32>
    %cst_92 = arith.constant dense<0xFF800000> : vector<16xf32>
    %156 = vector.multi_reduction <maximumf>, %155, %cst_92 [1] : vector<16x16xf32> to vector<16xf32>
    %157 = vector.shape_cast %156 : vector<16xf32> to vector<16x1xf32>
    %158 = vector.broadcast %157 : vector<16x1xf32> to vector<16x16xf32>
    %159 = arith.subf %155, %158 : vector<16x16xf32>
    %160 = math.exp %159 : vector<16x16xf32>
    %cst_93 = arith.constant dense<0.000000e+00> : vector<16xf32>
    %161 = vector.multi_reduction <add>, %160, %cst_93 [1] : vector<16x16xf32> to vector<16xf32>
    %162 = vector.shape_cast %161 : vector<16xf32> to vector<16x1xf32>
    %cst_94 = arith.constant 1.000000e+00 : f32
    %163 = vector.broadcast %cst_94 : f32 to vector<16x1xf32>
    %164 = arith.divf %163, %162 : vector<16x1xf32>
    %165 = vector.broadcast %164 : vector<16x1xf32> to vector<16x16xf32>
    %166 = arith.mulf %160, %165 : vector<16x16xf32>
    %167 = arith.addf %149, %166 : vector<16x16xf32>
    %cst_95 = arith.constant dense<0.000000e+00> : vector<16x16xf32>
    %168 = tpu.matmul %166, %152, %cst_95 {dimension_numbers = #tpu.dot_dimension_numbers<[1], [0], [0], [1], [0, 0, 1, 1], [], []>} : vector<16x16xf32>, vector<16x16xf32>, vector<16x16xf32> -> vector<16x16xf32>
    %169 = vector.extract_strided_slice %147 {offsets = [0, 0], sizes = [16, 32], strides = [1, 1]} : vector<32x32xf32> to vector<16x32xf32>
    %cst_96 = arith.constant dense<0.000000e+00> : vector<16x32xf32>
    %170 = tpu.matmul %168, %169, %cst_96 {dimension_numbers = #tpu.dot_dimension_numbers<[1], [0], [0], [1], [0, 0, 1, 1], [], []>} : vector<16x16xf32>, vector<16x32xf32>, vector<16x32xf32> -> vector<16x32xf32>
    %171 = arith.addf %148, %170 : vector<16x32xf32>
    %172 = vector.extract_strided_slice %145 {offsets = [0, 16], sizes = [16, 16], strides = [1, 1]} : vector<16x96xf32> to vector<16x16xf32>
    %173 = vector.extract_strided_slice %145 {offsets = [0, 48], sizes = [16, 16], strides = [1, 1]} : vector<16x96xf32> to vector<16x16xf32>
    %174 = vector.extract_strided_slice %145 {offsets = [0, 80], sizes = [16, 16], strides = [1, 1]} : vector<16x96xf32> to vector<16x16xf32>
    %cst_97 = arith.constant 2.500000e-01 : f32
    %175 = vector.broadcast %cst_97 : f32 to vector<16x16xf32>
    %176 = arith.mulf %172, %175 : vector<16x16xf32>
    %cst_98 = arith.constant dense<0.000000e+00> : vector<16x16xf32>
    %177 = tpu.matmul %176, %173, %cst_98 {dimension_numbers = #tpu.dot_dimension_numbers<[1], [1], [0], [0], [0, 0, 1, 0], [], []>} : vector<16x16xf32>, vector<16x16xf32>, vector<16x16xf32> -> vector<16x16xf32>
    %cst_99 = arith.constant dense<0xFF800000> : vector<16xf32>
    %178 = vector.multi_reduction <maximumf>, %177, %cst_99 [1] : vector<16x16xf32> to vector<16xf32>
    %179 = vector.shape_cast %178 : vector<16xf32> to vector<16x1xf32>
    %180 = vector.broadcast %179 : vector<16x1xf32> to vector<16x16xf32>
    %181 = arith.subf %177, %180 : vector<16x16xf32>
    %182 = math.exp %181 : vector<16x16xf32>
    %cst_100 = arith.constant dense<0.000000e+00> : vector<16xf32>
    %183 = vector.multi_reduction <add>, %182, %cst_100 [1] : vector<16x16xf32> to vector<16xf32>
    %184 = vector.shape_cast %183 : vector<16xf32> to vector<16x1xf32>
    %cst_101 = arith.constant 1.000000e+00 : f32
    %185 = vector.broadcast %cst_101 : f32 to vector<16x1xf32>
    %186 = arith.divf %185, %184 : vector<16x1xf32>
    %187 = vector.broadcast %186 : vector<16x1xf32> to vector<16x16xf32>
    %188 = arith.mulf %182, %187 : vector<16x16xf32>
    %189 = arith.addf %167, %188 : vector<16x16xf32>
    %cst_102 = arith.constant dense<0.000000e+00> : vector<16x16xf32>
    %190 = tpu.matmul %188, %174, %cst_102 {dimension_numbers = #tpu.dot_dimension_numbers<[1], [0], [0], [1], [0, 0, 1, 1], [], []>} : vector<16x16xf32>, vector<16x16xf32>, vector<16x16xf32> -> vector<16x16xf32>
    %191 = vector.extract_strided_slice %147 {offsets = [16, 0], sizes = [16, 32], strides = [1, 1]} : vector<32x32xf32> to vector<16x32xf32>
    %cst_103 = arith.constant dense<0.000000e+00> : vector<16x32xf32>
    %192 = tpu.matmul %190, %191, %cst_103 {dimension_numbers = #tpu.dot_dimension_numbers<[1], [0], [0], [1], [0, 0, 1, 1], [], []>} : vector<16x16xf32>, vector<16x32xf32>, vector<16x32xf32> -> vector<16x32xf32>
    %193 = arith.addf %171, %192 : vector<16x32xf32>
    %cst_104 = arith.constant 5.000000e-01 : f32
    %194 = vector.broadcast %cst_104 : f32 to vector<16x16xf32>
    %195 = arith.mulf %189, %194 : vector<16x16xf32>
    %c0_105 = arith.constant 0 : index
    %c1_106 = arith.constant 1 : index
    %c0_107 = arith.constant 0 : index
    %c0_108 = arith.constant 0 : index
    %196 = vector.load %arg20[%c0_105, %c1_106, %c0_107, %c0_108] : memref<1x2x16x16xf32, #tpu.memory_space<vmem>>, vector<1x1x16x16xf32>
    %197 = vector.shape_cast %196 : vector<1x1x16x16xf32> to vector<16x16xf32>
    %198 = vector.shape_cast %195 : vector<16x16xf32> to vector<1x1x16x16xf32>
    tpu.vector_store %arg20[%c0_105, %c1_106, %c0_107, %c0_108], %198 {strides = array<i32>} : memref<1x2x16x16xf32, #tpu.memory_space<vmem>>, vector<1x1x16x16xf32>,
    %c1_109 = arith.constant 1 : index
    %c0_110 = arith.constant 0 : index
    %c0_111 = arith.constant 0 : index
    %199 = vector.load %arg8[%c1_109, %c0_110, %c0_111] : memref<2x1x32xf32, #tpu.memory_space<vmem>>, vector<1x1x32xf32>
    %200 = vector.shape_cast %199 : vector<1x1x32xf32> to vector<1x32xf32>
    %201 = vector.broadcast %200 : vector<1x32xf32> to vector<16x32xf32>
    %202 = arith.addf %193, %201 : vector<16x32xf32>
    %203 = arith.addf %138, %202 : vector<16x32xf32>
    %c1_112 = arith.constant 1 : index
    %c0_113 = arith.constant 0 : index
    %c0_114 = arith.constant 0 : index
    %204 = vector.load %arg9[%c1_112, %c0_113, %c0_114] : memref<2x1x32xf32, #tpu.memory_space<vmem>>, vector<1x1x32xf32>
    %205 = vector.shape_cast %204 : vector<1x1x32xf32> to vector<1x32xf32>
    %c1_115 = arith.constant 1 : index
    %c0_116 = arith.constant 0 : index
    %c0_117 = arith.constant 0 : index
    %206 = vector.load %arg10[%c1_115, %c0_116, %c0_117] : memref<2x1x32xf32, #tpu.memory_space<vmem>>, vector<1x1x32xf32>
    %207 = vector.shape_cast %206 : vector<1x1x32xf32> to vector<1x32xf32>
    %cst_118 = arith.constant dense<0.000000e+00> : vector<16xf32>
    %208 = vector.multi_reduction <add>, %203, %cst_118 [1] : vector<16x32xf32> to vector<16xf32>
    %209 = vector.shape_cast %208 : vector<16xf32> to vector<16x1xf32>
    %cst_119 = arith.constant 3.200000e+01 : f32
    %210 = vector.broadcast %cst_119 : f32 to vector<16x1xf32>
    %211 = arith.divf %209, %210 : vector<16x1xf32>
    %212 = vector.broadcast %211 : vector<16x1xf32> to vector<16x32xf32>
    %213 = arith.subf %203, %212 : vector<16x32xf32>
    %214 = arith.mulf %213, %213 : vector<16x32xf32>
    %cst_120 = arith.constant dense<0.000000e+00> : vector<16xf32>
    %215 = vector.multi_reduction <add>, %214, %cst_120 [1] : vector<16x32xf32> to vector<16xf32>
    %216 = vector.shape_cast %215 : vector<16xf32> to vector<16x1xf32>
    %cst_121 = arith.constant 3.200000e+01 : f32
    %217 = vector.broadcast %cst_121 : f32 to vector<16x1xf32>
    %218 = arith.divf %216, %217 : vector<16x1xf32>
    %cst_122 = arith.constant 9.99999974E-6 : f32
    %219 = vector.broadcast %cst_122 : f32 to vector<16x1xf32>
    %220 = arith.addf %218, %219 : vector<16x1xf32>
    %221 = math.rsqrt %220 : vector<16x1xf32>
    %222 = vector.broadcast %221 : vector<16x1xf32> to vector<16x32xf32>
    %223 = arith.mulf %213, %222 : vector<16x32xf32>
    %224 = vector.broadcast %205 : vector<1x32xf32> to vector<16x32xf32>
    %225 = arith.mulf %223, %224 : vector<16x32xf32>
    %226 = vector.broadcast %207 : vector<1x32xf32> to vector<16x32xf32>
    %227 = arith.addf %225, %226 : vector<16x32xf32>
    %c1_123 = arith.constant 1 : index
    %c0_124 = arith.constant 0 : index
    %c0_125 = arith.constant 0 : index
    %228 = vector.load %arg11[%c1_123, %c0_124, %c0_125] : memref<2x32x64xf32, #tpu.memory_space<vmem>>, vector<1x32x64xf32>
    %229 = vector.shape_cast %228 : vector<1x32x64xf32> to vector<32x64xf32>
    %cst_126 = arith.constant dense<0.000000e+00> : vector<16x64xf32>
    %230 = tpu.matmul %227, %229, %cst_126 {dimension_numbers = #tpu.dot_dimension_numbers<[1], [0], [0], [1], [0, 0, 1, 1], [], []>} : vector<16x32xf32>, vector<32x64xf32>, vector<16x64xf32> -> vector<16x64xf32>
    %c1_127 = arith.constant 1 : index
    %c0_128 = arith.constant 0 : index
    %c0_129 = arith.constant 0 : index
    %231 = vector.load %arg12[%c1_127, %c0_128, %c0_129] : memref<2x1x64xf32, #tpu.memory_space<vmem>>, vector<1x1x64xf32>
    %232 = vector.shape_cast %231 : vector<1x1x64xf32> to vector<1x64xf32>
    %233 = vector.broadcast %232 : vector<1x64xf32> to vector<16x64xf32>
    %234 = arith.addf %230, %233 : vector<16x64xf32>
    %cst_130 = arith.constant 0.000000e+00 : f32
    %235 = vector.broadcast %cst_130 : f32 to vector<16x64xf32>
    %236 = arith.maximumf %234, %235 : vector<16x64xf32>
    %c1_131 = arith.constant 1 : index
    %c0_132 = arith.constant 0 : index
    %c0_133 = arith.constant 0 : index
    %237 = vector.load %arg13[%c1_131, %c0_132, %c0_133] : memref<2x64x32xf32, #tpu.memory_space<vmem>>, vector<1x64x32xf32>
    %238 = vector.shape_cast %237 : vector<1x64x32xf32> to vector<64x32xf32>
    %cst_134 = arith.constant dense<0.000000e+00> : vector<16x32xf32>
    %239 = tpu.matmul %236, %238, %cst_134 {dimension_numbers = #tpu.dot_dimension_numbers<[1], [0], [0], [1], [0, 0, 1, 1], [], []>} : vector<16x64xf32>, vector<64x32xf32>, vector<16x32xf32> -> vector<16x32xf32>
    %c1_135 = arith.constant 1 : index
    %c0_136 = arith.constant 0 : index
    %c0_137 = arith.constant 0 : index
    %240 = vector.load %arg14[%c1_135, %c0_136, %c0_137] : memref<2x1x32xf32, #tpu.memory_space<vmem>>, vector<1x1x32xf32>
    %241 = vector.shape_cast %240 : vector<1x1x32xf32> to vector<1x32xf32>
    %242 = vector.broadcast %241 : vector<1x32xf32> to vector<16x32xf32>
    %243 = arith.addf %239, %242 : vector<16x32xf32>
    %244 = arith.addf %227, %243 : vector<16x32xf32>
    %c1_138 = arith.constant 1 : index
    %c0_139 = arith.constant 0 : index
    %c0_140 = arith.constant 0 : index
    %245 = vector.load %arg15[%c1_138, %c0_139, %c0_140] : memref<2x1x32xf32, #tpu.memory_space<vmem>>, vector<1x1x32xf32>
    %246 = vector.shape_cast %245 : vector<1x1x32xf32> to vector<1x32xf32>
    %c1_141 = arith.constant 1 : index
    %c0_142 = arith.constant 0 : index
    %c0_143 = arith.constant 0 : index
    %247 = vector.load %arg16[%c1_141, %c0_142, %c0_143] : memref<2x1x32xf32, #tpu.memory_space<vmem>>, vector<1x1x32xf32>
    %248 = vector.shape_cast %247 : vector<1x1x32xf32> to vector<1x32xf32>
    %cst_144 = arith.constant dense<0.000000e+00> : vector<16xf32>
    %249 = vector.multi_reduction <add>, %244, %cst_144 [1] : vector<16x32xf32> to vector<16xf32>
    %250 = vector.shape_cast %249 : vector<16xf32> to vector<16x1xf32>
    %cst_145 = arith.constant 3.200000e+01 : f32
    %251 = vector.broadcast %cst_145 : f32 to vector<16x1xf32>
    %252 = arith.divf %250, %251 : vector<16x1xf32>
    %253 = vector.broadcast %252 : vector<16x1xf32> to vector<16x32xf32>
    %254 = arith.subf %244, %253 : vector<16x32xf32>
    %255 = arith.mulf %254, %254 : vector<16x32xf32>
    %cst_146 = arith.constant dense<0.000000e+00> : vector<16xf32>
    %256 = vector.multi_reduction <add>, %255, %cst_146 [1] : vector<16x32xf32> to vector<16xf32>
    %257 = vector.shape_cast %256 : vector<16xf32> to vector<16x1xf32>
    %cst_147 = arith.constant 3.200000e+01 : f32
    %258 = vector.broadcast %cst_147 : f32 to vector<16x1xf32>
    %259 = arith.divf %257, %258 : vector<16x1xf32>
    %cst_148 = arith.constant 9.99999974E-6 : f32
    %260 = vector.broadcast %cst_148 : f32 to vector<16x1xf32>
    %261 = arith.addf %259, %260 : vector<16x1xf32>
    %262 = math.rsqrt %261 : vector<16x1xf32>
    %263 = vector.broadcast %262 : vector<16x1xf32> to vector<16x32xf32>
    %264 = arith.mulf %254, %263 : vector<16x32xf32>
    %265 = vector.broadcast %246 : vector<1x32xf32> to vector<16x32xf32>
    %266 = arith.mulf %264, %265 : vector<16x32xf32>
    %267 = vector.broadcast %248 : vector<1x32xf32> to vector<16x32xf32>
    %268 = arith.addf %266, %267 : vector<16x32xf32>
    %cst_149 = arith.constant dense<0.000000e+00> : vector<32xf32>
    %269 = vector.multi_reduction <add>, %268, %cst_149 [0] : vector<16x32xf32> to vector<32xf32>
    %270 = vector.shape_cast %269 : vector<32xf32> to vector<1x32xf32>
    %cst_150 = arith.constant 1.600000e+01 : f32
    %271 = vector.broadcast %cst_150 : f32 to vector<1x32xf32>
    %272 = arith.divf %270, %271 : vector<1x32xf32>
    %c0_151 = arith.constant 0 : index
    %c0_152 = arith.constant 0 : index
    %273 = vector.load %arg17[%c0_151, %c0_152] : memref<32x10xf32, #tpu.memory_space<vmem>>, vector<32x10xf32>
    %cst_153 = arith.constant dense<0.000000e+00> : vector<1x10xf32>
    %274 = tpu.matmul %272, %273, %cst_153 {dimension_numbers = #tpu.dot_dimension_numbers<[1], [0], [0], [1], [0, 0, 1, 1], [], []>} : vector<1x32xf32>, vector<32x10xf32>, vector<1x10xf32> -> vector<1x10xf32>
    %c0_154 = arith.constant 0 : index
    %c0_155 = arith.constant 0 : index
    %275 = vector.load %arg18[%c0_154, %c0_155] : memref<1x10xf32, #tpu.memory_space<vmem>>, vector<1x10xf32>
    %276 = arith.addf %274, %275 : vector<1x10xf32>
    %c0_156 = arith.constant 0 : index
    %c0_157 = arith.constant 0 : index
    %c0_158 = arith.constant 0 : index
    %277 = vector.load %arg19[%c0_156, %c0_157, %c0_158] : memref<1x1x10xf32, #tpu.memory_space<vmem>>, vector<1x1x10xf32>
    %278 = vector.shape_cast %277 : vector<1x1x10xf32> to vector<1x10xf32>
    %279 = vector.shape_cast %276 : vector<1x10xf32> to vector<1x1x10xf32>
    tpu.vector_store %arg19[%c0_156, %c0_157, %c0_158], %279 {strides = array<i32>} : memref<1x1x10xf32, #tpu.memory_space<vmem>>, vector<1x1x10xf32>,
    return
  }
  func.func @transform_0(%arg0: i32) -> (i32, i32, i32) {
    %c0_i32 = arith.constant 0 : i32
    %c0_i32_0 = arith.constant 0 : i32
    %c0_i32_1 = arith.constant 0 : i32
    return %arg0, %c0_i32, %c0_i32_0 : i32, i32, i32
  }
  func.func @transform_1(%arg0: i32) -> (i32, i32) {
    %c0_i32 = arith.constant 0 : i32
    %c0_i32_0 = arith.constant 0 : i32
    %c0_i32_1 = arith.constant 0 : i32
    return %c0_i32, %c0_i32_0 : i32, i32
  }
  func.func @transform_2(%arg0: i32) -> (i32, i32) {
    %c0_i32 = arith.constant 0 : i32
    %c0_i32_0 = arith.constant 0 : i32
    %c0_i32_1 = arith.constant 0 : i32
    return %c0_i32, %c0_i32_0 : i32, i32
  }
  func.func @transform_3(%arg0: i32) -> (i32, i32) {
    %c0_i32 = arith.constant 0 : i32
    %c0_i32_0 = arith.constant 0 : i32
    %c0_i32_1 = arith.constant 0 : i32
    return %c0_i32, %c0_i32_0 : i32, i32
  }
  func.func @transform_4(%arg0: i32) -> (i32, i32, i32) {
    %c0_i32 = arith.constant 0 : i32
    %c0_i32_0 = arith.constant 0 : i32
    %c0_i32_1 = arith.constant 0 : i32
    %c0_i32_2 = arith.constant 0 : i32
    return %c0_i32, %c0_i32_0, %c0_i32_1 : i32, i32, i32
  }
  func.func @transform_5(%arg0: i32) -> (i32, i32, i32) {
    %c0_i32 = arith.constant 0 : i32
    %c0_i32_0 = arith.constant 0 : i32
    %c0_i32_1 = arith.constant 0 : i32
    %c0_i32_2 = arith.constant 0 : i32
    return %c0_i32, %c0_i32_0, %c0_i32_1 : i32, i32, i32
  }
  func.func @transform_6(%arg0: i32) -> (i32, i32, i32) {
    %c0_i32 = arith.constant 0 : i32
    %c0_i32_0 = arith.constant 0 : i32
    %c0_i32_1 = arith.constant 0 : i32
    %c0_i32_2 = arith.constant 0 : i32
    return %c0_i32, %c0_i32_0, %c0_i32_1 : i32, i32, i32
  }
  func.func @transform_7(%arg0: i32) -> (i32, i32, i32) {
    %c0_i32 = arith.constant 0 : i32
    %c0_i32_0 = arith.constant 0 : i32
    %c0_i32_1 = arith.constant 0 : i32
    %c0_i32_2 = arith.constant 0 : i32
    return %c0_i32, %c0_i32_0, %c0_i32_1 : i32, i32, i32
  }
  func.func @transform_8(%arg0: i32) -> (i32, i32, i32) {
    %c0_i32 = arith.constant 0 : i32
    %c0_i32_0 = arith.constant 0 : i32
    %c0_i32_1 = arith.constant 0 : i32
    %c0_i32_2 = arith.constant 0 : i32
    return %c0_i32, %c0_i32_0, %c0_i32_1 : i32, i32, i32
  }
  func.func @transform_9(%arg0: i32) -> (i32, i32, i32) {
    %c0_i32 = arith.constant 0 : i32
    %c0_i32_0 = arith.constant 0 : i32
    %c0_i32_1 = arith.constant 0 : i32
    %c0_i32_2 = arith.constant 0 : i32
    return %c0_i32, %c0_i32_0, %c0_i32_1 : i32, i32, i32
  }
  func.func @transform_10(%arg0: i32) -> (i32, i32, i32) {
    %c0_i32 = arith.constant 0 : i32
    %c0_i32_0 = arith.constant 0 : i32
    %c0_i32_1 = arith.constant 0 : i32
    %c0_i32_2 = arith.constant 0 : i32
    return %c0_i32, %c0_i32_0, %c0_i32_1 : i32, i32, i32
  }
  func.func @transform_11(%arg0: i32) -> (i32, i32, i32) {
    %c0_i32 = arith.constant 0 : i32
    %c0_i32_0 = arith.constant 0 : i32
    %c0_i32_1 = arith.constant 0 : i32
    %c0_i32_2 = arith.constant 0 : i32
    return %c0_i32, %c0_i32_0, %c0_i32_1 : i32, i32, i32
  }
  func.func @transform_12(%arg0: i32) -> (i32, i32, i32) {
    %c0_i32 = arith.constant 0 : i32
    %c0_i32_0 = arith.constant 0 : i32
    %c0_i32_1 = arith.constant 0 : i32
    %c0_i32_2 = arith.constant 0 : i32
    return %c0_i32, %c0_i32_0, %c0_i32_1 : i32, i32, i32
  }
  func.func @transform_13(%arg0: i32) -> (i32, i32, i32) {
    %c0_i32 = arith.constant 0 : i32
    %c0_i32_0 = arith.constant 0 : i32
    %c0_i32_1 = arith.constant 0 : i32
    %c0_i32_2 = arith.constant 0 : i32
    return %c0_i32, %c0_i32_0, %c0_i32_1 : i32, i32, i32
  }
  func.func @transform_14(%arg0: i32) -> (i32, i32, i32) {
    %c0_i32 = arith.constant 0 : i32
    %c0_i32_0 = arith.constant 0 : i32
    %c0_i32_1 = arith.constant 0 : i32
    %c0_i32_2 = arith.constant 0 : i32
    return %c0_i32, %c0_i32_0, %c0_i32_1 : i32, i32, i32
  }
  func.func @transform_15(%arg0: i32) -> (i32, i32, i32) {
    %c0_i32 = arith.constant 0 : i32
    %c0_i32_0 = arith.constant 0 : i32
    %c0_i32_1 = arith.constant 0 : i32
    %c0_i32_2 = arith.constant 0 : i32
    return %c0_i32, %c0_i32_0, %c0_i32_1 : i32, i32, i32
  }
  func.func @transform_16(%arg0: i32) -> (i32, i32) {
    %c0_i32 = arith.constant 0 : i32
    %c0_i32_0 = arith.constant 0 : i32
    %c0_i32_1 = arith.constant 0 : i32
    return %c0_i32, %c0_i32_0 : i32, i32
  }
  func.func @transform_17(%arg0: i32) -> (i32, i32) {
    %c0_i32 = arith.constant 0 : i32
    %c0_i32_0 = arith.constant 0 : i32
    %c0_i32_1 = arith.constant 0 : i32
    return %c0_i32, %c0_i32_0 : i32, i32
  }
  func.func @transform_18(%arg0: i32) -> (i32, i32, i32) {
    %c0_i32 = arith.constant 0 : i32
    %c0_i32_0 = arith.constant 0 : i32
    %c0_i32_1 = arith.constant 0 : i32
    return %arg0, %c0_i32, %c0_i32_0 : i32, i32, i32
  }
  func.func @transform_19(%arg0: i32) -> (i32, i32, i32, i32) {
    %c0_i32 = arith.constant 0 : i32
    %c0_i32_0 = arith.constant 0 : i32
    %c0_i32_1 = arith.constant 0 : i32
    %c0_i32_2 = arith.constant 0 : i32
    return %arg0, %c0_i32, %c0_i32_0, %c0_i32_1 : i32, i32, i32, i32
  }
}

</mosaic_0001>

<llo_original>
// kernel: base_model_forward.1
$region0: #{base_model_forward.1}
  #allocation0 [shape = 'u32[]', space=smem, size = 0x4, offset = 0x4, fixed_abs, tag = 'smem constant byte address 0x4 - core index']
  #allocation1 [shape = 'u32[144,128]{1,0:T(1,128)}', space=vmem, size = 0x12000, scoped, tag = 'internal scratch']
  %s0 = inlined_call_operand.vmem [shape: f32[2,16,16], index: 0, kind: input, shape index: {}]
  %s1 = inlined_call_operand.vmem [shape: f32[16,32], index: 1, kind: input, shape index: {}]
  %s2 = inlined_call_operand.vmem [shape: f32[1,32], index: 2, kind: input, shape index: {}]
  %s3 = inlined_call_operand.vmem [shape: f32[16,32], index: 3, kind: input, shape index: {}]
  %s4 = inlined_call_operand.vmem [shape: f32[2,32,96], index: 4, kind: input, shape index: {}]
  %s5 = inlined_call_operand.vmem [shape: f32[2,1,96], index: 5, kind: input, shape index: {}]
  %s6 = inlined_call_operand.vmem [shape: f32[2,32,32], index: 6, kind: input, shape index: {}]
  %s7 = inlined_call_operand.vmem [shape: f32[2,1,32], index: 7, kind: input, shape index: {}]
  %s8 = inlined_call_operand.vmem [shape: f32[2,1,32], index: 8, kind: input, shape index: {}]
  %s9 = inlined_call_operand.vmem [shape: f32[2,1,32], index: 9, kind: input, shape index: {}]
  %s10 = inlined_call_operand.vmem [shape: f32[2,32,64], index: 10, kind: input, shape index: {}]
  %s11 = inlined_call_operand.vmem [shape: f32[2,1,64], index: 11, kind: input, shape index: {}]
  %s12 = inlined_call_operand.vmem [shape: f32[2,64,32], index: 12, kind: input, shape index: {}]
  %s13 = inlined_call_operand.vmem [shape: f32[2,1,32], index: 13, kind: input, shape index: {}]
  %s14 = inlined_call_operand.vmem [shape: f32[2,1,32], index: 14, kind: input, shape index: {}]
  %s15 = inlined_call_operand.vmem [shape: f32[2,1,32], index: 15, kind: input, shape index: {}]
  %s16 = inlined_call_operand.vmem [shape: f32[32,10], index: 16, kind: input, shape index: {}]
  %s17 = inlined_call_operand.vmem [shape: f32[1,10], index: 17, kind: input, shape index: {}]
  %s18 = inlined_call_operand.hbm [shape: f32[2,1,10], index: 18, kind: output, shape index: {0}]
  %s19 = inlined_call_operand.vmem [shape: f32[2,2,16,16], index: 19, kind: output, shape index: {1}]
  %20 = xla_tuple %s18, %s19
  %s21 = sld [smem:[#allocation0]]
  $region113: #{base_model_forward.1} parent=0
    _
  %s23 = ssub.s32 1, %s21
  %s24 = scalar_select 0, %s23, %s21
  $region1: #{base_model_forward.1} parent=0
    #allocation2 [shape = 'u8[1024]{0}', space=vmem, size = 0x400, scoped, tag = 'output window, operand 0']
    #allocation3 [shape = 's32[2]{0}', space=sflag, size = 0x8, scoped, tag = 'scoped memory for base_model_forward.1']
    %25 = vsyncpa [#allocation3], 0
    %s26 = scalar_lea.sflag [#allocation3], 1
    %27 = vsyncpa %s26, 0
    loop: start=0, step=1, limit=4
    $region2: #{base_model_forward.1} parent=1 // loop_pre_header
      _
    $region3: #{base_model_forward.1} parent=1 // loop_header
      %s29 = sphi 0, %s33
      %p30 = scmp.ge.s32.totalorder %s29, 4
      %s39 = sphi 0, %s41
      %s42 = sphi 0, %s39
      %s43 = sphi 0, %s42
      %s59 = sphi 0, %s43
      %s63 = sphi 0, %s63
      %s65 = sphi 0, %s63
      %s66 = sphi 0, %s65
      %s80 = sphi 0, %s66
      %s84 = sphi 0, %s84
      %s86 = sphi 0, %s84
      %s87 = sphi 0, %s86
      %s101 = sphi 0, %s87
      %s105 = sphi 0, %s105
      %s107 = sphi 0, %s105
      %s108 = sphi 0, %s107
      %s122 = sphi 0, %s108
      %s126 = sphi 0, %s126
      %s128 = sphi 0, %s126
      %s129 = sphi 0, %s128
      %s143 = sphi 0, %s129
      %s147 = sphi 0, %s147
      %s149 = sphi 0, %s147
      %s150 = sphi 0, %s149
      %s164 = sphi 0, %s150
      %s168 = sphi 0, %s168
      %s170 = sphi 0, %s168
      %s171 = sphi 0, %s170
      %s185 = sphi 0, %s171
      %s189 = sphi 0, %s189
      %s191 = sphi 0, %s189
      %s192 = sphi 0, %s191
      %s206 = sphi 0, %s192
      %s210 = sphi 0, %s210
      %s212 = sphi 0, %s210
      %s213 = sphi 0, %s212
      %s227 = sphi 0, %s213
      %s231 = sphi 0, %s231
      %s233 = sphi 0, %s231
      %s234 = sphi 0, %s233
      %s248 = sphi 0, %s234
      %s252 = sphi 0, %s252
      %s254 = sphi 0, %s252
      %s255 = sphi 0, %s254
      %s269 = sphi 0, %s255
      %s273 = sphi 0, %s273
      %s275 = sphi 0, %s273
      %s276 = sphi 0, %s275
      %s290 = sphi 0, %s276
      %s294 = sphi 0, %s294
      %s296 = sphi 0, %s294
      %s297 = sphi 0, %s296
      %s311 = sphi 0, %s297
      %s315 = sphi 0, %s315
      %s317 = sphi 0, %s315
      %s318 = sphi 0, %s317
      %s332 = sphi 0, %s318
      %s336 = sphi 0, %s336
      %s338 = sphi 0, %s336
      %s339 = sphi 0, %s338
      %s353 = sphi 0, %s339
      %s357 = sphi 0, %s357
      %s359 = sphi 0, %s357
      %s360 = sphi 0, %s359
      %s374 = sphi 0, %s360
      %s378 = sphi 0, %s378
      %s380 = sphi 0, %s378
      %s381 = sphi 0, %s380
      %s395 = sphi 0, %s381
      %s399 = sphi 0, %s399
      %s401 = sphi 0, %s399
      %s402 = sphi 0, %s401
      %s416 = sphi 0, %s402
      %s422 = sphi 0, %s424
      %s425 = sphi 0, %s422
      %s426 = sphi 0, %s425
      %s442 = sphi 0, %s426
      %s448 = sphi 0, %s450
      %s451 = sphi 0, %s448
      %s452 = sphi 0, %s451
      %s468 = sphi 0, %s452
    $region4: #{base_model_forward.1} parent=1 // loop_header_branch
      %32 = sbr.rel (%p30) target = $region8
    $region5: #{base_model_forward.1} parent=1 // loop_body
      %s34 = ssub.s32 %s29, 1
      %s35 = ssub.s32 %s29, 2
      %s36 = sadd.s32 %s29, 1
      %s37 = ssub.s32 %s29, %s36
      %p38 = scmp.eq.s32.totalorder %s37, 0
      %s40 = sadd.s32 %s39, 1
      %s41 = scalar_select %p38, %s39, %s40
      %p44 = pneg %p38
      %p45 = scmp.eq.s32.totalorder %s29, 1
      %p46 = por %p44, %p45
      %p47 = scmp.ne.s32.totalorder %s39, %s42
      %p48 = scmp.eq.s32.totalorder %s29, 0
      %p49 = por %p47, %p48
      %p50 = scmp.ne.s32.totalorder %s39, %s42
      %p51 = scmp.eq.s32.totalorder %s34, 1
      %p52 = por %p50, %p51
      %p53 = scmp.ne.s32.totalorder %s42, %s43
      %p54 = scmp.eq.s32.totalorder %s34, 0
      %p55 = por %p53, %p54
      %p56 = scmp.ne.s32.totalorder %s42, %s43
      %p57 = scmp.eq.s32.totalorder %s35, 1
      %p58 = por %p56, %p57
      %p60 = scmp.ne.s32.totalorder %s43, %s59
      %p61 = scmp.eq.s32.totalorder %s35, 0
      %p62 = por %p60, %p61
      %s64 = sadd.s32 %s63, 1
      %p67 = scmp.eq.s32.totalorder %s29, 1
      %p68 = scmp.ne.s32.totalorder %s63, %s65
      %p69 = scmp.eq.s32.totalorder %s29, 0
      %p70 = por %p68, %p69
      %p71 = scmp.ne.s32.totalorder %s63, %s65
      %p72 = scmp.eq.s32.totalorder %s34, 1
      %p73 = por %p71, %p72
      %p74 = scmp.ne.s32.totalorder %s65, %s66
      %p75 = scmp.eq.s32.totalorder %s34, 0
      %p76 = por %p74, %p75
      %p77 = scmp.ne.s32.totalorder %s65, %s66
      %p78 = scmp.eq.s32.totalorder %s35, 1
      %p79 = por %p77, %p78
      %p81 = scmp.ne.s32.totalorder %s66, %s80
      %p82 = scmp.eq.s32.totalorder %s35, 0
      %p83 = por %p81, %p82
      %s85 = sadd.s32 %s84, 1
      %p88 = scmp.eq.s32.totalorder %s29, 1
      %p89 = scmp.ne.s32.totalorder %s84, %s86
      %p90 = scmp.eq.s32.totalorder %s29, 0
      %p91 = por %p89, %p90
      %p92 = scmp.ne.s32.totalorder %s84, %s86
      %p93 = scmp.eq.s32.totalorder %s34, 1
      %p94 = por %p92, %p93
      %p95 = scmp.ne.s32.totalorder %s86, %s87
      %p96 = scmp.eq.s32.totalorder %s34, 0
      %p97 = por %p95, %p96
      %p98 = scmp.ne.s32.totalorder %s86, %s87
      %p99 = scmp.eq.s32.totalorder %s35, 1
      %p100 = por %p98, %p99
      %p102 = scmp.ne.s32.totalorder %s87, %s101
      %p103 = scmp.eq.s32.totalorder %s35, 0
      %p104 = por %p102, %p103
      %s106 = sadd.s32 %s105, 1
      %p109 = scmp.eq.s32.totalorder %s29, 1
      %p110 = scmp.ne.s32.totalorder %s105, %s107
      %p111 = scmp.eq.s32.totalorder %s29, 0
      %p112 = por %p110, %p111
      %p113 = scmp.ne.s32.totalorder %s105, %s107
      %p114 = scmp.eq.s32.totalorder %s34, 1
      %p115 = por %p113, %p114
      %p116 = scmp.ne.s32.totalorder %s107, %s108
      %p117 = scmp.eq.s32.totalorder %s34, 0
      %p118 = por %p116, %p117
      %p119 = scmp.ne.s32.totalorder %s107, %s108
      %p120 = scmp.eq.s32.totalorder %s35, 1
      %p121 = por %p119, %p120
      %p123 = scmp.ne.s32.totalorder %s108, %s122
      %p124 = scmp.eq.s32.totalorder %s35, 0
      %p125 = por %p123, %p124
      %s127 = sadd.s32 %s126, 1
      %p130 = scmp.eq.s32.totalorder %s29, 1
      %p131 = scmp.ne.s32.totalorder %s126, %s128
      %p132 = scmp.eq.s32.totalorder %s29, 0
      %p133 = por %p131, %p132
      %p134 = scmp.ne.s32.totalorder %s126, %s128
      %p135 = scmp.eq.s32.totalorder %s34, 1
      %p136 = por %p134, %p135
      %p137 = scmp.ne.s32.totalorder %s128, %s129
      %p138 = scmp.eq.s32.totalorder %s34, 0
      %p139 = por %p137, %p138
      %p140 = scmp.ne.s32.totalorder %s128, %s129
      %p141 = scmp.eq.s32.totalorder %s35, 1
      %p142 = por %p140, %p141
      %p144 = scmp.ne.s32.totalorder %s129, %s143
      %p145 = scmp.eq.s32.totalorder %s35, 0
      %p146 = por %p144, %p145
      %s148 = sadd.s32 %s147, 1
      %p151 = scmp.eq.s32.totalorder %s29, 1
      %p152 = scmp.ne.s32.totalorder %s147, %s149
      %p153 = scmp.eq.s32.totalorder %s29, 0
      %p154 = por %p152, %p153
      %p155 = scmp.ne.s32.totalorder %s147, %s149
      %p156 = scmp.eq.s32.totalorder %s34, 1
      %p157 = por %p155, %p156
      %p158 = scmp.ne.s32.totalorder %s149, %s150
      %p159 = scmp.eq.s32.totalorder %s34, 0
      %p160 = por %p158, %p159
      %p161 = scmp.ne.s32.totalorder %s149, %s150
      %p162 = scmp.eq.s32.totalorder %s35, 1
      %p163 = por %p161, %p162
      %p165 = scmp.ne.s32.totalorder %s150, %s164
      %p166 = scmp.eq.s32.totalorder %s35, 0
      %p167 = por %p165, %p166
      %s169 = sadd.s32 %s168, 1
      %p172 = scmp.eq.s32.totalorder %s29, 1
      %p173 = scmp.ne.s32.totalorder %s168, %s170
      %p174 = scmp.eq.s32.totalorder %s29, 0
      %p175 = por %p173, %p174
      %p176 = scmp.ne.s32.totalorder %s168, %s170
      %p177 = scmp.eq.s32.totalorder %s34, 1
      %p178 = por %p176, %p177
      %p179 = scmp.ne.s32.totalorder %s170, %s171
      %p180 = scmp.eq.s32.totalorder %s34, 0
      %p181 = por %p179, %p180
      %p182 = scmp.ne.s32.totalorder %s170, %s171
      %p183 = scmp.eq.s32.totalorder %s35, 1
      %p184 = por %p182, %p183
      %p186 = scmp.ne.s32.totalorder %s171, %s185
      %p187 = scmp.eq.s32.totalorder %s35, 0
      %p188 = por %p186, %p187
      %s190 = sadd.s32 %s189, 1
      %p193 = scmp.eq.s32.totalorder %s29, 1
      %p194 = scmp.ne.s32.totalorder %s189, %s191
      %p195 = scmp.eq.s32.totalorder %s29, 0
      %p196 = por %p194, %p195
      %p197 = scmp.ne.s32.totalorder %s189, %s191
      %p198 = scmp.eq.s32.totalorder %s34, 1
      %p199 = por %p197, %p198
      %p200 = scmp.ne.s32.totalorder %s191, %s192
      %p201 = scmp.eq.s32.totalorder %s34, 0
      %p202 = por %p200, %p201
      %p203 = scmp.ne.s32.totalorder %s191, %s192
      %p204 = scmp.eq.s32.totalorder %s35, 1
      %p205 = por %p203, %p204
      %p207 = scmp.ne.s32.totalorder %s192, %s206
      %p208 = scmp.eq.s32.totalorder %s35, 0
      %p209 = por %p207, %p208
      %s211 = sadd.s32 %s210, 1
      %p214 = scmp.eq.s32.totalorder %s29, 1
      %p215 = scmp.ne.s32.totalorder %s210, %s212
      %p216 = scmp.eq.s32.totalorder %s29, 0
      %p217 = por %p215, %p216
      %p218 = scmp.ne.s32.totalorder %s210, %s212
      %p219 = scmp.eq.s32.totalorder %s34, 1
      %p220 = por %p218, %p219
      %p221 = scmp.ne.s32.totalorder %s212, %s213
      %p222 = scmp.eq.s32.totalorder %s34, 0
      %p223 = por %p221, %p222
      %p224 = scmp.ne.s32.totalorder %s212, %s213
      %p225 = scmp.eq.s32.totalorder %s35, 1
      %p226 = por %p224, %p225
      %p228 = scmp.ne.s32.totalorder %s213, %s227
      %p229 = scmp.eq.s32.totalorder %s35, 0
      %p230 = por %p228, %p229
      %s232 = sadd.s32 %s231, 1
      %p235 = scmp.eq.s32.totalorder %s29, 1
      %p236 = scmp.ne.s32.totalorder %s231, %s233
      %p237 = scmp.eq.s32.totalorder %s29, 0
      %p238 = por %p236, %p237
      %p239 = scmp.ne.s32.totalorder %s231, %s233
      %p240 = scmp.eq.s32.totalorder %s34, 1
      %p241 = por %p239, %p240
      %p242 = scmp.ne.s32.totalorder %s233, %s234
      %p243 = scmp.eq.s32.totalorder %s34, 0
      %p244 = por %p242, %p243
      %p245 = scmp.ne.s32.totalorder %s233, %s234
      %p246 = scmp.eq.s32.totalorder %s35, 1
      %p247 = por %p245, %p246
      %p249 = scmp.ne.s32.totalorder %s234, %s248
      %p250 = scmp.eq.s32.totalorder %s35, 0
      %p251 = por %p249, %p250
      %s253 = sadd.s32 %s252, 1
      %p256 = scmp.eq.s32.totalorder %s29, 1
      %p257 = scmp.ne.s32.totalorder %s252, %s254
      %p258 = scmp.eq.s32.totalorder %s29, 0
      %p259 = por %p257, %p258
      %p260 = scmp.ne.s32.totalorder %s252, %s254
      %p261 = scmp.eq.s32.totalorder %s34, 1
      %p262 = por %p260, %p261
      %p263 = scmp.ne.s32.totalorder %s254, %s255
      %p264 = scmp.eq.s32.totalorder %s34, 0
      %p265 = por %p263, %p264
      %p266 = scmp.ne.s32.totalorder %s254, %s255
      %p267 = scmp.eq.s32.totalorder %s35, 1
      %p268 = por %p266, %p267
      %p270 = scmp.ne.s32.totalorder %s255, %s269
      %p271 = scmp.eq.s32.totalorder %s35, 0
      %p272 = por %p270, %p271
      %s274 = sadd.s32 %s273, 1
      %p277 = scmp.eq.s32.totalorder %s29, 1
      %p278 = scmp.ne.s32.totalorder %s273, %s275
      %p279 = scmp.eq.s32.totalorder %s29, 0
      %p280 = por %p278, %p279
      %p281 = scmp.ne.s32.totalorder %s273, %s275
      %p282 = scmp.eq.s32.totalorder %s34, 1
      %p283 = por %p281, %p282
      %p284 = scmp.ne.s32.totalorder %s275, %s276
      %p285 = scmp.eq.s32.totalorder %s34, 0
      %p286 = por %p284, %p285
      %p287 = scmp.ne.s32.totalorder %s275, %s276
      %p288 = scmp.eq.s32.totalorder %s35, 1
      %p289 = por %p287, %p288
      %p291 = scmp.ne.s32.totalorder %s276, %s290
      %p292 = scmp.eq.s32.totalorder %s35, 0
      %p293 = por %p291, %p292
      %s295 = sadd.s32 %s294, 1
      %p298 = scmp.eq.s32.totalorder %s29, 1
      %p299 = scmp.ne.s32.totalorder %s294, %s296
      %p300 = scmp.eq.s32.totalorder %s29, 0
      %p301 = por %p299, %p300
      %p302 = scmp.ne.s32.totalorder %s294, %s296
      %p303 = scmp.eq.s32.totalorder %s34, 1
      %p304 = por %p302, %p303
      %p305 = scmp.ne.s32.totalorder %s296, %s297
      %p306 = scmp.eq.s32.totalorder %s34, 0
      %p307 = por %p305, %p306
      %p308 = scmp.ne.s32.totalorder %s296, %s297
      %p309 = scmp.eq.s32.totalorder %s35, 1
      %p310 = por %p308, %p309
      %p312 = scmp.ne.s32.totalorder %s297, %s311
      %p313 = scmp.eq.s32.totalorder %s35, 0
      %p314 = por %p312, %p313
      %s316 = sadd.s32 %s315, 1
      %p319 = scmp.eq.s32.totalorder %s29, 1
      %p320 = scmp.ne.s32.totalorder %s315, %s317
      %p321 = scmp.eq.s32.totalorder %s29, 0
      %p322 = por %p320, %p321
      %p323 = scmp.ne.s32.totalorder %s315, %s317
      %p324 = scmp.eq.s32.totalorder %s34, 1
      %p325 = por %p323, %p324
      %p326 = scmp.ne.s32.totalorder %s317, %s318
      %p327 = scmp.eq.s32.totalorder %s34, 0
      %p328 = por %p326, %p327
      %p329 = scmp.ne.s32.totalorder %s317, %s318
      %p330 = scmp.eq.s32.totalorder %s35, 1
      %p331 = por %p329, %p330
      %p333 = scmp.ne.s32.totalorder %s318, %s332
      %p334 = scmp.eq.s32.totalorder %s35, 0
      %p335 = por %p333, %p334
      %s337 = sadd.s32 %s336, 1
      %p340 = scmp.eq.s32.totalorder %s29, 1
      %p341 = scmp.ne.s32.totalorder %s336, %s338
      %p342 = scmp.eq.s32.totalorder %s29, 0
      %p343 = por %p341, %p342
      %p344 = scmp.ne.s32.totalorder %s336, %s338
      %p345 = scmp.eq.s32.totalorder %s34, 1
      %p346 = por %p344, %p345
      %p347 = scmp.ne.s32.totalorder %s338, %s339
      %p348 = scmp.eq.s32.totalorder %s34, 0
      %p349 = por %p347, %p348
      %p350 = scmp.ne.s32.totalorder %s338, %s339
      %p351 = scmp.eq.s32.totalorder %s35, 1
      %p352 = por %p350, %p351
      %p354 = scmp.ne.s32.totalorder %s339, %s353
      %p355 = scmp.eq.s32.totalorder %s35, 0
      %p356 = por %p354, %p355
      %s358 = sadd.s32 %s357, 1
      %p361 = scmp.eq.s32.totalorder %s29, 1
      %p362 = scmp.ne.s32.totalorder %s357, %s359
      %p363 = scmp.eq.s32.totalorder %s29, 0
      %p364 = por %p362, %p363
      %p365 = scmp.ne.s32.totalorder %s357, %s359
      %p366 = scmp.eq.s32.totalorder %s34, 1
      %p367 = por %p365, %p366
      %p368 = scmp.ne.s32.totalorder %s359, %s360
      %p369 = scmp.eq.s32.totalorder %s34, 0
      %p370 = por %p368, %p369
      %p371 = scmp.ne.s32.totalorder %s359, %s360
      %p372 = scmp.eq.s32.totalorder %s35, 1
      %p373 = por %p371, %p372
      %p375 = scmp.ne.s32.totalorder %s360, %s374
      %p376 = scmp.eq.s32.totalorder %s35, 0
      %p377 = por %p375, %p376
      %s379 = sadd.s32 %s378, 1
      %p382 = scmp.eq.s32.totalorder %s29, 1
      %p383 = scmp.ne.s32.totalorder %s378, %s380
      %p384 = scmp.eq.s32.totalorder %s29, 0
      %p385 = por %p383, %p384
      %p386 = scmp.ne.s32.totalorder %s378, %s380
      %p387 = scmp.eq.s32.totalorder %s34, 1
      %p388 = por %p386, %p387
      %p389 = scmp.ne.s32.totalorder %s380, %s381
      %p390 = scmp.eq.s32.totalorder %s34, 0
      %p391 = por %p389, %p390
      %p392 = scmp.ne.s32.totalorder %s380, %s381
      %p393 = scmp.eq.s32.totalorder %s35, 1
      %p394 = por %p392, %p393
      %p396 = scmp.ne.s32.totalorder %s381, %s395
      %p397 = scmp.eq.s32.totalorder %s35, 0
      %p398 = por %p396, %p397
      %s400 = sadd.s32 %s399, 1
      %p403 = scmp.eq.s32.totalorder %s29, 1
      %p404 = scmp.ne.s32.totalorder %s399, %s401
      %p405 = scmp.eq.s32.totalorder %s29, 0
      %p406 = por %p404, %p405
      %p407 = scmp.ne.s32.totalorder %s399, %s401
      %p408 = scmp.eq.s32.totalorder %s34, 1
      %p409 = por %p407, %p408
      %p410 = scmp.ne.s32.totalorder %s401, %s402
      %p411 = scmp.eq.s32.totalorder %s34, 0
      %p412 = por %p410, %p411
      %p413 = scmp.ne.s32.totalorder %s401, %s402
      %p414 = scmp.eq.s32.totalorder %s35, 1
      %p415 = por %p413, %p414
      %p417 = scmp.ne.s32.totalorder %s402, %s416
      %p418 = scmp.eq.s32.totalorder %s35, 0
      %p419 = por %p417, %p418
      %s420 = ssub.s32 %s29, %s36
      %p421 = scmp.eq.s32.totalorder %s420, 0
      %s423 = sadd.s32 %s422, 1
      %s424 = scalar_select %p421, %s422, %s423
      %p427 = pneg %p421
      %p428 = scmp.eq.s32.totalorder %s29, 1
      %p429 = por %p427, %p428
      %p430 = scmp.ne.s32.totalorder %s422, %s425
      %p431 = scmp.eq.s32.totalorder %s29, 0
      %p432 = por %p430, %p431
      %p433 = scmp.ne.s32.totalorder %s422, %s425
      %p434 = scmp.eq.s32.totalorder %s34, 1
      %p435 = por %p433, %p434
      %p436 = scmp.ne.s32.totalorder %s425, %s426
      %p437 = scmp.eq.s32.totalorder %s34, 0
      %p438 = por %p436, %p437
      %p439 = scmp.ne.s32.totalorder %s425, %s426
      %p440 = scmp.eq.s32.totalorder %s35, 1
      %p441 = por %p439, %p440
      %p443 = scmp.ne.s32.totalorder %s426, %s442
      %p444 = scmp.eq.s32.totalorder %s35, 0
      %p445 = por %p443, %p444
      %s446 = ssub.s32 %s29, %s36
      %p447 = scmp.eq.s32.totalorder %s446, 0
      %s449 = sadd.s32 %s448, 1
      %s450 = scalar_select %p447, %s448, %s449
      %p453 = pneg %p447
      %p454 = scmp.eq.s32.totalorder %s29, 1
      %p455 = por %p453, %p454
      %p456 = scmp.ne.s32.totalorder %s448, %s451
      %p457 = scmp.eq.s32.totalorder %s29, 0
      %p458 = por %p456, %p457
      %p459 = scmp.ne.s32.totalorder %s448, %s451
      %p460 = scmp.eq.s32.totalorder %s34, 1
      %p461 = por %p459, %p460
      %p462 = scmp.ne.s32.totalorder %s451, %s452
      %p463 = scmp.eq.s32.totalorder %s34, 0
      %p464 = por %p462, %p463
      %p465 = scmp.ne.s32.totalorder %s451, %s452
      %p466 = scmp.eq.s32.totalorder %s35, 1
      %p467 = por %p465, %p466
      %p469 = scmp.ne.s32.totalorder %s452, %s468
      %p470 = scmp.eq.s32.totalorder %s35, 0
      %p471 = por %p469, %p470
      %p472 = scmp.le.s32.totalorder 1, %s29
      %p473 = scmp.lt.s32.totalorder %s29, 3
      %p474 = pnand %p472, %p473
      %p475 = pneg %p474
      // Predicated region
      $region9: #{base_model_forward.1} parent=5 // pred_check
        _
      $region10: #{base_model_forward.1} parent=5 // pred_check_branch
        %477 = sbr.rel (%p474) target = $region12
      $region11: #{base_model_forward.1} parent=5 // pred_region
        %s478 = ssub.s32 %s29, 1
        // Predicated region
        $region13: #{base_model_forward.1} parent=11 // pred_check
          %p479 = pneg %p76
        $region14: #{base_model_forward.1} parent=11 // pred_check_branch
          %481 = sbr.rel (%p479) target = $region16
        $region15: #{base_model_forward.1} parent=11 // pred_region
          _
        $region16: #{base_model_forward.1} parent=11 // pred_fallthru
          _
        // Predicated region
        $region17: #{base_model_forward.1} parent=11 // pred_check
          %p482 = pneg %p97
        $region18: #{base_model_forward.1} parent=11 // pred_check_branch
          %484 = sbr.rel (%p482) target = $region20
        $region19: #{base_model_forward.1} parent=11 // pred_region
          _
        $region20: #{base_model_forward.1} parent=11 // pred_fallthru
          _
        // Predicated region
        $region21: #{base_model_forward.1} parent=11 // pred_check
          %p485 = pneg %p118
        $region22: #{base_model_forward.1} parent=11 // pred_check_branch
          %487 = sbr.rel (%p485) target = $region24
        $region23: #{base_model_forward.1} parent=11 // pred_region
          _
        $region24: #{base_model_forward.1} parent=11 // pred_fallthru
          _
        // Predicated region
        $region25: #{base_model_forward.1} parent=11 // pred_check
          %p488 = pneg %p139
        $region26: #{base_model_forward.1} parent=11 // pred_check_branch
          %490 = sbr.rel (%p488) target = $region28
        $region27: #{base_model_forward.1} parent=11 // pred_region
          _
        $region28: #{base_model_forward.1} parent=11 // pred_fallthru
          _
        // Predicated region
        $region29: #{base_model_forward.1} parent=11 // pred_check
          %p491 = pneg %p160
        $region30: #{base_model_forward.1} parent=11 // pred_check_branch
          %493 = sbr.rel (%p491) target = $region32
        $region31: #{base_model_forward.1} parent=11 // pred_region
          _
        $region32: #{base_model_forward.1} parent=11 // pred_fallthru
          _
        // Predicated region
        $region33: #{base_model_forward.1} parent=11 // pred_check
          %p494 = pneg %p181
        $region34: #{base_model_forward.1} parent=11 // pred_check_branch
          %496 = sbr.rel (%p494) target = $region36
        $region35: #{base_model_forward.1} parent=11 // pred_region
          _
        $region36: #{base_model_forward.1} parent=11 // pred_fallthru
          _
        // Predicated region
        $region37: #{base_model_forward.1} parent=11 // pred_check
          %p497 = pneg %p202
        $region38: #{base_model_forward.1} parent=11 // pred_check_branch
          %499 = sbr.rel (%p497) target = $region40
        $region39: #{base_model_forward.1} parent=11 // pred_region
          _
        $region40: #{base_model_forward.1} parent=11 // pred_fallthru
          _
        // Predicated region
        $region41: #{base_model_forward.1} parent=11 // pred_check
          %p500 = pneg %p223
        $region42: #{base_model_forward.1} parent=11 // pred_check_branch
          %502 = sbr.rel (%p500) target = $region44
        $region43: #{base_model_forward.1} parent=11 // pred_region
          _
        $region44: #{base_model_forward.1} parent=11 // pred_fallthru
          _
        // Predicated region
        $region45: #{base_model_forward.1} parent=11 // pred_check
          %p503 = pneg %p244
        $region46: #{base_model_forward.1} parent=11 // pred_check_branch
          %505 = sbr.rel (%p503) target = $region48
        $region47: #{base_model_forward.1} parent=11 // pred_region
          _
        $region48: #{base_model_forward.1} parent=11 // pred_fallthru
          _
        // Predicated region
        $region49: #{base_model_forward.1} parent=11 // pred_check
          %p506 = pneg %p265
        $region50: #{base_model_forward.1} parent=11 // pred_check_branch
          %508 = sbr.rel (%p506) target = $region52
        $region51: #{base_model_forward.1} parent=11 // pred_region
          _
        $region52: #{base_model_forward.1} parent=11 // pred_fallthru
          _
        // Predicated region
        $region53: #{base_model_forward.1} parent=11 // pred_check
          %p509 = pneg %p286
        $region54: #{base_model_forward.1} parent=11 // pred_check_branch
          %511 = sbr.rel (%p509) target = $region56
        $region55: #{base_model_forward.1} parent=11 // pred_region
          _
        $region56: #{base_model_forward.1} parent=11 // pred_fallthru
          _
        // Predicated region
        $region57: #{base_model_forward.1} parent=11 // pred_check
          %p512 = pneg %p307
        $region58: #{base_model_forward.1} parent=11 // pred_check_branch
          %514 = sbr.rel (%p512) target = $region60
        $region59: #{base_model_forward.1} parent=11 // pred_region
          _
        $region60: #{base_model_forward.1} parent=11 // pred_fallthru
          _
        // Predicated region
        $region61: #{base_model_forward.1} parent=11 // pred_check
          %p515 = pneg %p328
        $region62: #{base_model_forward.1} parent=11 // pred_check_branch
          %517 = sbr.rel (%p515) target = $region64
        $region63: #{base_model_forward.1} parent=11 // pred_region
          _
        $region64: #{base_model_forward.1} parent=11 // pred_fallthru
          _
        // Predicated region
        $region65: #{base_model_forward.1} parent=11 // pred_check
          %p518 = pneg %p349
        $region66: #{base_model_forward.1} parent=11 // pred_check_branch
          %520 = sbr.rel (%p518) target = $region68
        $region67: #{base_model_forward.1} parent=11 // pred_region
          _
        $region68: #{base_model_forward.1} parent=11 // pred_fallthru
          _
        // Predicated region
        $region69: #{base_model_forward.1} parent=11 // pred_check
          %p521 = pneg %p370
        $region70: #{base_model_forward.1} parent=11 // pred_check_branch
          %523 = sbr.rel (%p521) target = $region72
        $region71: #{base_model_forward.1} parent=11 // pred_region
          _
        $region72: #{base_model_forward.1} parent=11 // pred_fallthru
          _
        // Predicated region
        $region73: #{base_model_forward.1} parent=11 // pred_check
          %p524 = pneg %p391
        $region74: #{base_model_forward.1} parent=11 // pred_check_branch
          %526 = sbr.rel (%p524) target = $region76
        $region75: #{base_model_forward.1} parent=11 // pred_region
          _
        $region76: #{base_model_forward.1} parent=11 // pred_fallthru
          _
        // Predicated region
        $region77: #{base_model_forward.1} parent=11 // pred_check
          %p527 = pneg %p412
        $region78: #{base_model_forward.1} parent=11 // pred_check_branch
          %529 = sbr.rel (%p527) target = $region80
        $region79: #{base_model_forward.1} parent=11 // pred_region
          _
        $region80: #{base_model_forward.1} parent=11 // pred_fallthru
          _
      $region12: #{base_model_forward.1} parent=5 // pred_fallthru
        _
      %p530 = scmp.lt.s32.totalorder %s29, 2
      // Predicated region
      $region81: #{base_model_forward.1} parent=5 // pred_check
        %p531 = pneg %p530
      $region82: #{base_model_forward.1} parent=5 // pred_check_branch
        %533 = sbr.rel (%p531) target = $region84
      $region83: #{base_model_forward.1} parent=5 // pred_region
        // Predicated region
        $region85: #{base_model_forward.1} parent=83 // pred_check
          %p534 = pneg %p49
        $region86: #{base_model_forward.1} parent=83 // pred_check_branch
          %536 = sbr.rel (%p534) target = $region88
        $region87: #{base_model_forward.1} parent=83 // pred_region
          %p537 = scmp.lt.s32.totalorder %s29, 1
          %s538 = scalar_select %p537, %s29, 1
          %s539 = smul.addr %s538, 2
          %s540 = smul.addr %s539, 8
          %s541 = scalar_lea.vmem %s0, %s540
        $region88: #{base_model_forward.1} parent=83 // pred_fallthru
          _
      $region84: #{base_model_forward.1} parent=5 // pred_fallthru
        _
      %p542 = scmp.le.s32.totalorder 1, %s29
      %p543 = scmp.lt.s32.totalorder %s29, 3
      %p544 = pnand %p542, %p543
      %p545 = pneg %p544
      // Predicated region
      $region89: #{base_model_forward.1} parent=5 // pred_check
        _
      $region90: #{base_model_forward.1} parent=5 // pred_check_branch
        %547 = sbr.rel (%p544) target = $region92
      $region91: #{base_model_forward.1} parent=5 // pred_region
        %s548 = ssub.s32 %s29, 1
        %p549 = scmp.lt.s32.totalorder %s34, 1
        %s550 = scalar_select %p549, %s34, 1
        %s551 = smul.addr %s550, 2
        %s552 = smul.addr %s551, 8
        %s553 = scalar_lea.vmem %s0, %s552
        %p554 = pneg %p55
        %p555 = pneg %p52
        %p556 = pneg %p76
        %p557 = pneg %p73
        %p558 = pneg %p97
        %p559 = pneg %p94
        %p560 = pneg %p118
        %p561 = pneg %p115
        %p562 = pneg %p139
        %p563 = pneg %p136
        %p564 = pneg %p160
        %p565 = pneg %p157
        %p566 = pneg %p181
        %p567 = pneg %p178
        %p568 = pneg %p202
        %p569 = pneg %p199
        %p570 = pneg %p223
        %p571 = pneg %p220
        %p572 = pneg %p244
        %p573 = pneg %p241
        %p574 = pneg %p265
        %p575 = pneg %p262
        %p576 = pneg %p286
        %p577 = pneg %p283
        %p578 = pneg %p307
        %p579 = pneg %p304
        %p580 = pneg %p328
        %p581 = pneg %p325
        %p582 = pneg %p349
        %p583 = pneg %p346
        %p584 = pneg %p370
        %p585 = pneg %p367
        %p586 = pneg %p391
        %p587 = pneg %p388
        %p588 = pneg %p412
        %p589 = pneg %p409
        %p590 = pneg %p438
        %p591 = pneg %p435
        %s592 = sand.u32 %s425, 1
        %s593 = scalar_lea.sflag [#allocation3], %s592
        %s594 = sand.u32 %s425, 1
        %s595 = scalar_lea.vmem [#allocation2], %s594
        %p596 = pneg %p464
        %p597 = pneg %p461
        %p598 = scmp.lt.s32.totalorder %s34, 1
        %s599 = scalar_select %p598, %s34, 1
        %s600 = smul.addr %s599, 4
        %s601 = smul.addr %s600, 8
        %s602 = scalar_lea.vmem %s19, %s601
        %p603 = scmp.lt.s32.totalorder %s34, 1
        %s604 = scalar_select %p603, %s34, 1
        %s605 = smul.addr %s604, 2
        %s606 = smul.addr %s605, 8
        %s607 = scalar_lea.vmem %s0, %s606
        %p608 = scmp.lt.s32.totalorder %s34, 1
        %s609 = scalar_select %p608, %s34, 1
        %s610 = smul.addr %s609, 4
        %s611 = smul.addr %s610, 8
        %s612 = scalar_lea.vmem %s19, %s611
        %v613 = vld [vmem:[%s607] sm:$0xff]
        %v614 = vld [vmem:[%s607 + $0x8] sm:$0xff]
        %v615 = vld [vmem:[%s1] sm:$0xff]
        %v616 = vld [vmem:[%s1 + $0x8] sm:$0xff]
        %v617 = vld [vmem:[%s2] sm:$0x1]
        %v619 = vlaneseq
        %v620 = vshrl.u32 %v619, 7
        %v621 = vsub.s32 0, %v620
        %v622 = vrot.slane %v617, %v621
        %vm624 = vcmask 130048
        %v626 = vsel %vm624, %v613, 0
        %v629 = vsel %vm624, %v614, 0
        %631 = vmatprep.subr.mxu0 0.0
        %632 = vmatpush1.msra.mxu0 %v615
        %633 = vmatprep.subr.mxu0 0.0
        %634 = vmatpush1.msra.mxu0 %v616
        %635 = vmatprep.subr.mxu0 0.0
        %636 = vmatpush1.msra.mxu0 0.0
        %637 = vmatprep.subr.mxu0 0.0
        %638 = vmatpush1.msra.mxu0 0.0
        %639 = vmatprep.subr.mxu0 0.0
        %640 = vmatpush1.msra.mxu0 0.0
        %641 = vmatprep.subr.mxu0 0.0
        %642 = vmatpush1.msra.mxu0 0.0
        %643 = vmatprep.subr.mxu0 0.0
        %644 = vmatpush1.msra.mxu0 0.0
        %645 = vmatprep.subr.mxu0 0.0
        %646 = vmatpush1.msra.mxu0 0.0
        %647 = vmatprep.subr.mxu0 0.0
        %648 = vmatpush1.msra.mxu0 0.0
        %649 = vmatprep.subr.mxu0 0.0
        %650 = vmatpush1.msra.mxu0 0.0
        %651 = vmatprep.subr.mxu0 0.0
        %652 = vmatpush1.msra.mxu0 0.0
        %653 = vmatprep.subr.mxu0 0.0
        %654 = vmatpush1.msra.mxu0 0.0
        %655 = vmatprep.subr.mxu0 0.0
        %656 = vmatpush1.msra.mxu0 0.0
        %657 = vmatprep.subr.mxu0 0.0
        %658 = vmatpush1.msra.mxu0 0.0
        %659 = vmatprep.subr.mxu0 0.0
        %660 = vmatpush1.msra.mxu0 0.0
        %661 = vmatprep.subr.mxu0 0.0
        %662 = vmatpush1.msra.mxu0 0.0
        %663 = vmatprep.subr.mxu0 0.0
        %664 = vmatpush1.msra.mxu0 0.0
        %665 = vmatprep.subr.mxu0 0.0
        %666 = vmatpush1.msra.mxu0 0.0
        %667 = vmatprep.subr.mxu0 0.0
        %668 = vmatpush1.msra.mxu0 0.0
        %669 = vmatprep.subr.mxu0 0.0
        %670 = vmatpush1.msra.mxu0 0.0
        %671 = vmatprep.subr.mxu0 0.0
        %672 = vmatpush1.msra.mxu0 0.0
        %673 = vmatprep.subr.mxu0 0.0
        %674 = vmatpush1.msra.mxu0 0.0
        %675 = vmatprep.subr.mxu0 0.0
        %676 = vmatpush1.msra.mxu0 0.0
        %677 = vmatprep.subr.mxu0 0.0
        %678 = vmatpush1.msra.mxu0 0.0
        %679 = vmatprep.subr.mxu0 0.0
        %680 = vmatpush1.msra.mxu0 0.0
        %681 = vmatprep.subr.mxu0 0.0
        %682 = vmatpush1.msra.mxu0 0.0
        %683 = vmatprep.subr.mxu0 0.0
        %684 = vmatpush1.msra.mxu0 0.0
        %685 = vmatprep.subr.mxu0 0.0
        %686 = vmatpush1.msra.mxu0 0.0
        %687 = vmatprep.subr.mxu0 0.0
        %688 = vmatpush1.msra.mxu0 0.0
        %689 = vmatprep.subr.mxu0 0.0
        %690 = vmatpush1.msra.mxu0 0.0
        %691 = vmatprep.subr.mxu0 0.0
        %692 = vmatpush1.msra.mxu0 0.0
        %693 = vmatprep.subr.mxu0 0.0
        %694 = vmatpush1.msra.mxu0 0.0
        %695 = vmatprep.mubr.f32.mxu0 0.0
        %696 = vmatmul.mubr.f32.gmra.mrb[0].mxu0 %v626
        %v697 = vpop.f32.mrb[0].mxu0
        %v698 = vadd.f32 %v622, %v697
        %v699 = vpop.f32.mrb[0].mxu0
        %700 = vmatprep.mubr.f32.mxu0 0.0
        %701 = vmatmul.mubr.f32.gmra.mrb[0].mxu0 %v629
        %v702 = vpop.f32.mrb[0].mxu0
        %v703 = vadd.f32 %v622, %v702
        %v704 = vpop.f32.mrb[0].mxu0
        %705 = vdwg.mxu0
        %v706 = vld [vmem:[%s3] sm:$0xff]
        %v707 = vld [vmem:[%s3 + $0x8] sm:$0xff]
        %v708 = vadd.f32 %v698, %v706
        %v709 = vadd.f32 %v703, %v707
        %v710 = vld [vmem:[%s4] sm:$0xff]
        %v711 = vld [vmem:[%s4 + $0x8] sm:$0xff]
        %v712 = vld [vmem:[%s4 + $0x10] sm:$0xff]
        %v713 = vld [vmem:[%s4 + $0x18] sm:$0xff]
        %v714 = vld [vmem:[%s5] sm:$0x1]
        %v716 = vlaneseq
        %v717 = vshrl.u32 %v716, 7
        %v718 = vsub.s32 0, %v717
        %v719 = vrot.slane %v714, %v718
        %vm721 = vcmask 261120
        %v723 = vsel %vm721, %v708, 0
        %v726 = vsel %vm721, %v709, 0
        %728 = vmatprep.subr.mxu0 0.0
        %729 = vmatpush1.msra.mxu0 %v710
        %730 = vmatprep.subr.mxu0 0.0
        %731 = vmatpush1.msra.mxu0 %v711
        %732 = vmatprep.subr.mxu0 0.0
        %733 = vmatpush1.msra.mxu0 %v712
        %734 = vmatprep.subr.mxu0 0.0
        %735 = vmatpush1.msra.mxu0 %v713
        %736 = vmatprep.subr.mxu0 0.0
        %737 = vmatpush1.msra.mxu0 0.0
        %738 = vmatprep.subr.mxu0 0.0
        %739 = vmatpush1.msra.mxu0 0.0
        %740 = vmatprep.subr.mxu0 0.0
        %741 = vmatpush1.msra.mxu0 0.0
        %742 = vmatprep.subr.mxu0 0.0
        %743 = vmatpush1.msra.mxu0 0.0
        %744 = vmatprep.subr.mxu0 0.0
        %745 = vmatpush1.msra.mxu0 0.0
        %746 = vmatprep.subr.mxu0 0.0
        %747 = vmatpush1.msra.mxu0 0.0
        %748 = vmatprep.subr.mxu0 0.0
        %749 = vmatpush1.msra.mxu0 0.0
        %750 = vmatprep.subr.mxu0 0.0
        %751 = vmatpush1.msra.mxu0 0.0
        %752 = vmatprep.subr.mxu0 0.0
        %753 = vmatpush1.msra.mxu0 0.0
        %754 = vmatprep.subr.mxu0 0.0
        %755 = vmatpush1.msra.mxu0 0.0
        %756 = vmatprep.subr.mxu0 0.0
        %757 = vmatpush1.msra.mxu0 0.0
        %758 = vmatprep.subr.mxu0 0.0
        %759 = vmatpush1.msra.mxu0 0.0
        %760 = vmatprep.subr.mxu0 0.0
        %761 = vmatpush1.msra.mxu0 0.0
        %762 = vmatprep.subr.mxu0 0.0
        %763 = vmatpush1.msra.mxu0 0.0
        %764 = vmatprep.subr.mxu0 0.0
        %765 = vmatpush1.msra.mxu0 0.0
        %766 = vmatprep.subr.mxu0 0.0
        %767 = vmatpush1.msra.mxu0 0.0
        %768 = vmatprep.subr.mxu0 0.0
        %769 = vmatpush1.msra.mxu0 0.0
        %770 = vmatprep.subr.mxu0 0.0
        %771 = vmatpush1.msra.mxu0 0.0
        %772 = vmatprep.subr.mxu0 0.0
        %773 = vmatpush1.msra.mxu0 0.0
        %774 = vmatprep.subr.mxu0 0.0
        %775 = vmatpush1.msra.mxu0 0.0
        %776 = vmatprep.subr.mxu0 0.0
        %777 = vmatpush1.msra.mxu0 0.0
        %778 = vmatprep.subr.mxu0 0.0
        %779 = vmatpush1.msra.mxu0 0.0
        %780 = vmatprep.subr.mxu0 0.0
        %781 = vmatpush1.msra.mxu0 0.0
        %782 = vmatprep.subr.mxu0 0.0
        %783 = vmatpush1.msra.mxu0 0.0
        %784 = vmatprep.subr.mxu0 0.0
        %785 = vmatpush1.msra.mxu0 0.0
        %786 = vmatprep.subr.mxu0 0.0
        %787 = vmatpush1.msra.mxu0 0.0
        %788 = vmatprep.subr.mxu0 0.0
        %789 = vmatpush1.msra.mxu0 0.0
        %790 = vmatprep.subr.mxu0 0.0
        %791 = vmatpush1.msra.mxu0 0.0
        %792 = vmatprep.mubr.f32.mxu0 0.0
        %793 = vmatmul.mubr.f32.gmra.mrb[0].mxu0 %v723
        %v794 = vpop.f32.mrb[0].mxu0
        %v795 = vadd.f32 %v719, %v794
        %v796 = vpop.f32.mrb[0].mxu0
        %797 = vmatprep.mubr.f32.mxu0 0.0
        %798 = vmatmul.mubr.f32.gmra.mrb[0].mxu0 %v726
        %v799 = vpop.f32.mrb[0].mxu0
        %v800 = vadd.f32 %v719, %v799
        %v801 = vpop.f32.mrb[0].mxu0
        %802 = vdwg.mxu0
        %v803 = vld [vmem:[%s6] sm:$0xff]
        %v804 = vld [vmem:[%s6 + $0x8] sm:$0xff]
        %v805 = vld [vmem:[%s6 + $0x10] sm:$0xff]
        %v806 = vld [vmem:[%s6 + $0x18] sm:$0xff]
        %v807 = vmul.f32 %v795, 0.25
        %v808 = vmul.f32 %v800, 0.25
        %811 = vrot.lane.b32.xlu0 %v795, 96
        %v812 = vpop.permute.xlu0 %811
        %813 = vrot.lane.b32.xlu0 %v800, 96
        %v814 = vpop.permute.xlu0 %813
        %v816 = vsel %vm624, %v807, 0
        %v819 = vsel %vm624, %v808, 0
        %v821 = vsel %vm624, %v812, 0
        %v823 = vsel %vm624, %v814, 0
        %825 = vmatprep.subr.mxu0 0.0
        %826 = vmatpush1.xpose.msra.mxu0 %v821
        %827 = vmatprep.subr.mxu0 0.0
        %828 = vmatpush1.xpose.msra.mxu0 %v823
        %829 = vmatprep.subr.mxu0 0.0
        %830 = vmatpush1.xpose.msra.mxu0 0.0
        %831 = vmatprep.subr.mxu0 0.0
        %832 = vmatpush1.xpose.msra.mxu0 0.0
        %833 = vmatprep.subr.mxu0 0.0
        %834 = vmatpush1.xpose.msra.mxu0 0.0
        %835 = vmatprep.subr.mxu0 0.0
        %836 = vmatpush1.xpose.msra.mxu0 0.0
        %837 = vmatprep.subr.mxu0 0.0
        %838 = vmatpush1.xpose.msra.mxu0 0.0
        %839 = vmatprep.subr.mxu0 0.0
        %840 = vmatpush1.xpose.msra.mxu0 0.0
        %841 = vmatprep.subr.mxu0 0.0
        %842 = vmatpush1.xpose.msra.mxu0 0.0
        %843 = vmatprep.subr.mxu0 0.0
        %844 = vmatpush1.xpose.msra.mxu0 0.0
        %845 = vmatprep.subr.mxu0 0.0
        %846 = vmatpush1.xpose.msra.mxu0 0.0
        %847 = vmatprep.subr.mxu0 0.0
        %848 = vmatpush1.xpose.msra.mxu0 0.0
        %849 = vmatprep.subr.mxu0 0.0
        %850 = vmatpush1.xpose.msra.mxu0 0.0
        %851 = vmatprep.subr.mxu0 0.0
        %852 = vmatpush1.xpose.msra.mxu0 0.0
        %853 = vmatprep.subr.mxu0 0.0
        %854 = vmatpush1.xpose.msra.mxu0 0.0
        %855 = vmatprep.subr.mxu0 0.0
        %856 = vmatpush1.xpose.msra.mxu0 0.0
        %857 = vmatprep.subr.mxu0 0.0
        %858 = vmatpush1.xpose.msra.mxu0 0.0
        %859 = vmatprep.subr.mxu0 0.0
        %860 = vmatpush1.xpose.msra.mxu0 0.0
        %861 = vmatprep.subr.mxu0 0.0
        %862 = vmatpush1.xpose.msra.mxu0 0.0
        %863 = vmatprep.subr.mxu0 0.0
        %864 = vmatpush1.xpose.msra.mxu0 0.0
        %865 = vmatprep.subr.mxu0 0.0
        %866 = vmatpush1.xpose.msra.mxu0 0.0
        %867 = vmatprep.subr.mxu0 0.0
        %868 = vmatpush1.xpose.msra.mxu0 0.0
        %869 = vmatprep.subr.mxu0 0.0
        %870 = vmatpush1.xpose.msra.mxu0 0.0
        %871 = vmatprep.subr.mxu0 0.0
        %872 = vmatpush1.xpose.msra.mxu0 0.0
        %873 = vmatprep.subr.mxu0 0.0
        %874 = vmatpush1.xpose.msra.mxu0 0.0
        %875 = vmatprep.subr.mxu0 0.0
        %876 = vmatpush1.xpose.msra.mxu0 0.0
        %877 = vmatprep.subr.mxu0 0.0
        %878 = vmatpush1.xpose.msra.mxu0 0.0
        %879 = vmatprep.subr.mxu0 0.0
        %880 = vmatpush1.xpose.msra.mxu0 0.0
        %881 = vmatprep.subr.mxu0 0.0
        %882 = vmatpush1.xpose.msra.mxu0 0.0
        %883 = vmatprep.subr.mxu0 0.0
        %884 = vmatpush1.xpose.msra.mxu0 0.0
        %885 = vmatprep.subr.mxu0 0.0
        %886 = vmatpush1.xpose.msra.mxu0 0.0
        %887 = vmatprep.subr.mxu0 0.0
        %888 = vmatpush1.xpose.msra.mxu0 0.0
        %889 = vmatprep.mubr.f32.mxu0 0.0
        %890 = vmatmul.mubr.f32.gmra.mrb[0].mxu0 %v816
        %v891 = vpop.f32.mrb[0].mxu0
        %v892 = vadd.f32 0.0, %v891
        %v893 = vpop.f32.mrb[0].mxu0
        %894 = vmatprep.mubr.f32.mxu0 0.0
        %895 = vmatmul.mubr.f32.gmra.mrb[0].mxu0 %v819
        %v896 = vpop.f32.mrb[0].mxu0
        %v897 = vadd.f32 0.0, %v896
        %v898 = vpop.f32.mrb[0].mxu0
        %899 = vdwg.mxu0
        %v900 = vsel %vm624, %v892, -inf
        %901 = vmax.xlane.f32.xlu0 %v900
        %v902 = vpop.xlane.xlu0 %901
        %v903 = vsel %vm624, %v897, -inf
        %904 = vmax.xlane.f32.xlu0 %v903
        %v905 = vpop.xlane.xlu0 %904
        %v906 = vsub.f32 %v892, %v902
        %v907 = vsub.f32 %v897, %v905
        %v908 = vmul.f32 %v906, 1.442695
        %v909 = vpow.pop %v908
        %v910 = vmul.f32 %v907, 1.442695
        %v911 = vpow.pop %v910
        %v912 = vsel %vm624, %v909, 0.0
        %913 = vadd.xlane.f32.xlu0 %v912
        %v914 = vpop.xlane.xlu0 %913
        %v915 = vsel %vm624, %v911, 0.0
        %916 = vadd.xlane.f32.xlu0 %v915
        %v917 = vpop.xlane.xlu0 %916
        %v918 = vrcp.pop %v914
        %v919 = vmul.f32 1.0, %v918
        %v920 = vrcp.pop %v917
        %v921 = vmul.f32 1.0, %v920
        %v922 = vmul.f32 %v909, %v919
        %v923 = vmul.f32 %v911, %v921
        %v924 = vadd.f32 %v922, 0.0
        %v925 = vadd.f32 %v923, 0.0
        %926 = vrot.lane.b32.xlu0 %v795, 64
        %v927 = vpop.permute.xlu0 %926
        %928 = vrot.lane.b32.xlu0 %v800, 64
        %v929 = vpop.permute.xlu0 %928
        %v933 = vsel %vm624, %v922, 0
        %v936 = vsel %vm624, %v923, 0
        %938 = vmatprep.subr.mxu0 0.0
        %939 = vmatpush1.msra.mxu0 %v927
        %940 = vmatprep.subr.mxu0 0.0
        %941 = vmatpush1.msra.mxu0 %v929
        %942 = vmatprep.subr.mxu0 0.0
        %943 = vmatpush1.msra.mxu0 0.0
        %944 = vmatprep.subr.mxu0 0.0
        %945 = vmatpush1.msra.mxu0 0.0
        %946 = vmatprep.subr.mxu0 0.0
        %947 = vmatpush1.msra.mxu0 0.0
        %948 = vmatprep.subr.mxu0 0.0
        %949 = vmatpush1.msra.mxu0 0.0
        %950 = vmatprep.subr.mxu0 0.0
        %951 = vmatpush1.msra.mxu0 0.0
        %952 = vmatprep.subr.mxu0 0.0
        %953 = vmatpush1.msra.mxu0 0.0
        %954 = vmatprep.subr.mxu0 0.0
        %955 = vmatpush1.msra.mxu0 0.0
        %956 = vmatprep.subr.mxu0 0.0
        %957 = vmatpush1.msra.mxu0 0.0
        %958 = vmatprep.subr.mxu0 0.0
        %959 = vmatpush1.msra.mxu0 0.0
        %960 = vmatprep.subr.mxu0 0.0
        %961 = vmatpush1.msra.mxu0 0.0
        %962 = vmatprep.subr.mxu0 0.0
        %963 = vmatpush1.msra.mxu0 0.0
        %964 = vmatprep.subr.mxu0 0.0
        %965 = vmatpush1.msra.mxu0 0.0
        %966 = vmatprep.subr.mxu0 0.0
        %967 = vmatpush1.msra.mxu0 0.0
        %968 = vmatprep.subr.mxu0 0.0
        %969 = vmatpush1.msra.mxu0 0.0
        %970 = vmatprep.subr.mxu0 0.0
        %971 = vmatpush1.msra.mxu0 0.0
        %972 = vmatprep.subr.mxu0 0.0
        %973 = vmatpush1.msra.mxu0 0.0
        %974 = vmatprep.subr.mxu0 0.0
        %975 = vmatpush1.msra.mxu0 0.0
        %976 = vmatprep.subr.mxu0 0.0
        %977 = vmatpush1.msra.mxu0 0.0
        %978 = vmatprep.subr.mxu0 0.0
        %979 = vmatpush1.msra.mxu0 0.0
        %980 = vmatprep.subr.mxu0 0.0
        %981 = vmatpush1.msra.mxu0 0.0
        %982 = vmatprep.subr.mxu0 0.0
        %983 = vmatpush1.msra.mxu0 0.0
        %984 = vmatprep.subr.mxu0 0.0
        %985 = vmatpush1.msra.mxu0 0.0
        %986 = vmatprep.subr.mxu0 0.0
        %987 = vmatpush1.msra.mxu0 0.0
        %988 = vmatprep.subr.mxu0 0.0
        %989 = vmatpush1.msra.mxu0 0.0
        %990 = vmatprep.subr.mxu0 0.0
        %991 = vmatpush1.msra.mxu0 0.0
        %992 = vmatprep.subr.mxu0 0.0
        %993 = vmatpush1.msra.mxu0 0.0
        %994 = vmatprep.subr.mxu0 0.0
        %995 = vmatpush1.msra.mxu0 0.0
        %996 = vmatprep.subr.mxu0 0.0
        %997 = vmatpush1.msra.mxu0 0.0
        %998 = vmatprep.subr.mxu0 0.0
        %999 = vmatpush1.msra.mxu0 0.0
        %1000 = vmatprep.subr.mxu0 0.0
        %1001 = vmatpush1.msra.mxu0 0.0
        %1002 = vmatprep.mubr.f32.mxu0 0.0
        %1003 = vmatmul.mubr.f32.gmra.mrb[0].mxu0 %v933
        %v1004 = vpop.f32.mrb[0].mxu0
        %v1005 = vadd.f32 0.0, %v1004
        %v1006 = vpop.f32.mrb[0].mxu0
        %1007 = vmatprep.mubr.f32.mxu0 0.0
        %1008 = vmatmul.mubr.f32.gmra.mrb[0].mxu0 %v936
        %v1009 = vpop.f32.mrb[0].mxu0
        %v1010 = vadd.f32 0.0, %v1009
        %v1011 = vpop.f32.mrb[0].mxu0
        %1012 = vdwg.mxu0
        %1013 = vrot.lane.b32.xlu0 %v807, 112
        %v1014 = vpop.permute.xlu0 %1013
        %1015 = vrot.lane.b32.xlu0 %v808, 112
        %v1016 = vpop.permute.xlu0 %1015
        %1017 = vrot.lane.b32.xlu0 %v795, 80
        %v1018 = vpop.permute.xlu0 %1017
        %1019 = vrot.lane.b32.xlu0 %v800, 80
        %v1020 = vpop.permute.xlu0 %1019
        %v1021 = vsel %vm624, %v1014, 0
        %v1023 = vsel %vm624, %v1016, 0
        %v1025 = vsel %vm624, %v1018, 0
        %v1027 = vsel %vm624, %v1020, 0
        %1029 = vmatprep.subr.mxu0 0.0
        %1030 = vmatpush1.xpose.msra.mxu0 %v1025
        %1031 = vmatprep.subr.mxu0 0.0
        %1032 = vmatpush1.xpose.msra.mxu0 %v1027
        %1033 = vmatprep.subr.mxu0 0.0
        %1034 = vmatpush1.xpose.msra.mxu0 0.0
        %1035 = vmatprep.subr.mxu0 0.0
        %1036 = vmatpush1.xpose.msra.mxu0 0.0
        %1037 = vmatprep.subr.mxu0 0.0
        %1038 = vmatpush1.xpose.msra.mxu0 0.0
        %1039 = vmatprep.subr.mxu0 0.0
        %1040 = vmatpush1.xpose.msra.mxu0 0.0
        %1041 = vmatprep.subr.mxu0 0.0
        %1042 = vmatpush1.xpose.msra.mxu0 0.0
        %1043 = vmatprep.subr.mxu0 0.0
        %1044 = vmatpush1.xpose.msra.mxu0 0.0
        %1045 = vmatprep.subr.mxu0 0.0
        %1046 = vmatpush1.xpose.msra.mxu0 0.0
        %1047 = vmatprep.subr.mxu0 0.0
        %1048 = vmatpush1.xpose.msra.mxu0 0.0
        %1049 = vmatprep.subr.mxu0 0.0
        %1050 = vmatpush1.xpose.msra.mxu0 0.0
        %1051 = vmatprep.subr.mxu0 0.0
        %1052 = vmatpush1.xpose.msra.mxu0 0.0
        %1053 = vmatprep.subr.mxu0 0.0
        %1054 = vmatpush1.xpose.msra.mxu0 0.0
        %1055 = vmatprep.subr.mxu0 0.0
        %1056 = vmatpush1.xpose.msra.mxu0 0.0
        %1057 = vmatprep.subr.mxu0 0.0
        %1058 = vmatpush1.xpose.msra.mxu0 0.0
        %1059 = vmatprep.subr.mxu0 0.0
        %1060 = vmatpush1.xpose.msra.mxu0 0.0
        %1061 = vmatprep.subr.mxu0 0.0
        %1062 = vmatpush1.xpose.msra.mxu0 0.0
        %1063 = vmatprep.subr.mxu0 0.0
        %1064 = vmatpush1.xpose.msra.mxu0 0.0
        %1065 = vmatprep.subr.mxu0 0.0
        %1066 = vmatpush1.xpose.msra.mxu0 0.0
        %1067 = vmatprep.subr.mxu0 0.0
        %1068 = vmatpush1.xpose.msra.mxu0 0.0
        %1069 = vmatprep.subr.mxu0 0.0
        %1070 = vmatpush1.xpose.msra.mxu0 0.0
        %1071 = vmatprep.subr.mxu0 0.0
        %1072 = vmatpush1.xpose.msra.mxu0 0.0
        %1073 = vmatprep.subr.mxu0 0.0
        %1074 = vmatpush1.xpose.msra.mxu0 0.0
        %1075 = vmatprep.subr.mxu0 0.0
        %1076 = vmatpush1.xpose.msra.mxu0 0.0
        %1077 = vmatprep.subr.mxu0 0.0
        %1078 = vmatpush1.xpose.msra.mxu0 0.0
        %1079 = vmatprep.subr.mxu0 0.0
        %1080 = vmatpush1.xpose.msra.mxu0 0.0
        %1081 = vmatprep.subr.mxu0 0.0
        %1082 = vmatpush1.xpose.msra.mxu0 0.0
        %1083 = vmatprep.subr.mxu0 0.0
        %1084 = vmatpush1.xpose.msra.mxu0 0.0
        %1085 = vmatprep.subr.mxu0 0.0
        %1086 = vmatpush1.xpose.msra.mxu0 0.0
        %1087 = vmatprep.subr.mxu0 0.0
        %1088 = vmatpush1.xpose.msra.mxu0 0.0
        %1089 = vmatprep.subr.mxu0 0.0
        %1090 = vmatpush1.xpose.msra.mxu0 0.0
        %1091 = vmatprep.subr.mxu0 0.0
        %1092 = vmatpush1.xpose.msra.mxu0 0.0
        %1093 = vmatprep.mubr.f32.mxu0 0.0
        %1094 = vmatmul.mubr.f32.gmra.mrb[0].mxu0 %v1021
        %v1095 = vpop.f32.mrb[0].mxu0
        %v1096 = vadd.f32 0.0, %v1095
        %v1097 = vpop.f32.mrb[0].mxu0
        %1098 = vmatprep.mubr.f32.mxu0 0.0
        %1099 = vmatmul.mubr.f32.gmra.mrb[0].mxu0 %v1023
        %v1100 = vpop.f32.mrb[0].mxu0
        %v1101 = vadd.f32 0.0, %v1100
        %v1102 = vpop.f32.mrb[0].mxu0
        %1103 = vdwg.mxu0
        %v1104 = vsel %vm624, %v1096, -inf
        %1105 = vmax.xlane.f32.xlu0 %v1104
        %v1106 = vpop.xlane.xlu0 %1105
        %v1107 = vsel %vm624, %v1101, -inf
        %1108 = vmax.xlane.f32.xlu0 %v1107
        %v1109 = vpop.xlane.xlu0 %1108
        %v1110 = vsub.f32 %v1096, %v1106
        %v1111 = vsub.f32 %v1101, %v1109
        %v1112 = vmul.f32 %v1110, 1.442695
        %v1113 = vpow.pop %v1112
        %v1114 = vmul.f32 %v1111, 1.442695
        %v1115 = vpow.pop %v1114
        %v1116 = vsel %vm624, %v1113, 0.0
        %1117 = vadd.xlane.f32.xlu0 %v1116
        %v1118 = vpop.xlane.xlu0 %1117
        %v1119 = vsel %vm624, %v1115, 0.0
        %1120 = vadd.xlane.f32.xlu0 %v1119
        %v1121 = vpop.xlane.xlu0 %1120
        %v1122 = vrcp.pop %v1118
        %v1123 = vmul.f32 1.0, %v1122
        %v1124 = vrcp.pop %v1121
        %v1125 = vmul.f32 1.0, %v1124
        %v1126 = vmul.f32 %v1113, %v1123
        %v1127 = vmul.f32 %v1115, %v1125
        %v1128 = vadd.f32 %v924, %v1126
        %v1129 = vadd.f32 %v925, %v1127
        %1130 = vrot.lane.b32.xlu0 %v795, 48
        %v1131 = vpop.permute.xlu0 %1130
        %1132 = vrot.lane.b32.xlu0 %v800, 48
        %v1133 = vpop.permute.xlu0 %1132
        %v1137 = vsel %vm624, %v1126, 0
        %v1140 = vsel %vm624, %v1127, 0
        %1142 = vmatprep.subr.mxu0 0.0
        %1143 = vmatpush1.msra.mxu0 %v1131
        %1144 = vmatprep.subr.mxu0 0.0
        %1145 = vmatpush1.msra.mxu0 %v1133
        %1146 = vmatprep.subr.mxu0 0.0
        %1147 = vmatpush1.msra.mxu0 0.0
        %1148 = vmatprep.subr.mxu0 0.0
        %1149 = vmatpush1.msra.mxu0 0.0
        %1150 = vmatprep.subr.mxu0 0.0
        %1151 = vmatpush1.msra.mxu0 0.0
        %1152 = vmatprep.subr.mxu0 0.0
        %1153 = vmatpush1.msra.mxu0 0.0
        %1154 = vmatprep.subr.mxu0 0.0
        %1155 = vmatpush1.msra.mxu0 0.0
        %1156 = vmatprep.subr.mxu0 0.0
        %1157 = vmatpush1.msra.mxu0 0.0
        %1158 = vmatprep.subr.mxu0 0.0
        %1159 = vmatpush1.msra.mxu0 0.0
        %1160 = vmatprep.subr.mxu0 0.0
        %1161 = vmatpush1.msra.mxu0 0.0
        %1162 = vmatprep.subr.mxu0 0.0
        %1163 = vmatpush1.msra.mxu0 0.0
        %1164 = vmatprep.subr.mxu0 0.0
        %1165 = vmatpush1.msra.mxu0 0.0
        %1166 = vmatprep.subr.mxu0 0.0
        %1167 = vmatpush1.msra.mxu0 0.0
        %1168 = vmatprep.subr.mxu0 0.0
        %1169 = vmatpush1.msra.mxu0 0.0
        %1170 = vmatprep.subr.mxu0 0.0
        %1171 = vmatpush1.msra.mxu0 0.0
        %1172 = vmatprep.subr.mxu0 0.0
        %1173 = vmatpush1.msra.mxu0 0.0
        %1174 = vmatprep.subr.mxu0 0.0
        %1175 = vmatpush1.msra.mxu0 0.0
        %1176 = vmatprep.subr.mxu0 0.0
        %1177 = vmatpush1.msra.mxu0 0.0
        %1178 = vmatprep.subr.mxu0 0.0
        %1179 = vmatpush1.msra.mxu0 0.0
        %1180 = vmatprep.subr.mxu0 0.0
        %1181 = vmatpush1.msra.mxu0 0.0
        %1182 = vmatprep.subr.mxu0 0.0
        %1183 = vmatpush1.msra.mxu0 0.0
        %1184 = vmatprep.subr.mxu0 0.0
        %1185 = vmatpush1.msra.mxu0 0.0
        %1186 = vmatprep.subr.mxu0 0.0
        %1187 = vmatpush1.msra.mxu0 0.0
        %1188 = vmatprep.subr.mxu0 0.0
        %1189 = vmatpush1.msra.mxu0 0.0
        %1190 = vmatprep.subr.mxu0 0.0
        %1191 = vmatpush1.msra.mxu0 0.0
        %1192 = vmatprep.subr.mxu0 0.0
        %1193 = vmatpush1.msra.mxu0 0.0
        %1194 = vmatprep.subr.mxu0 0.0
        %1195 = vmatpush1.msra.mxu0 0.0
        %1196 = vmatprep.subr.mxu0 0.0
        %1197 = vmatpush1.msra.mxu0 0.0
        %1198 = vmatprep.subr.mxu0 0.0
        %1199 = vmatpush1.msra.mxu0 0.0
        %1200 = vmatprep.subr.mxu0 0.0
        %1201 = vmatpush1.msra.mxu0 0.0
        %1202 = vmatprep.subr.mxu0 0.0
        %1203 = vmatpush1.msra.mxu0 0.0
        %1204 = vmatprep.subr.mxu0 0.0
        %1205 = vmatpush1.msra.mxu0 0.0
        %1206 = vmatprep.mubr.f32.mxu0 0.0
        %1207 = vmatmul.mubr.f32.gmra.mrb[0].mxu0 %v1137
        %v1208 = vpop.f32.mrb[0].mxu0
        %v1209 = vadd.f32 0.0, %v1208
        %v1210 = vpop.f32.mrb[0].mxu0
        %1211 = vmatprep.mubr.f32.mxu0 0.0
        %1212 = vmatmul.mubr.f32.gmra.mrb[0].mxu0 %v1140
        %v1213 = vpop.f32.mrb[0].mxu0
        %v1214 = vadd.f32 0.0, %v1213
        %v1215 = vpop.f32.mrb[0].mxu0
        %1216 = vdwg.mxu0
        %v1218 = vsel %vm624, %v1209, 0
        %v1221 = vsel %vm624, %v1214, 0
        %1223 = vmatprep.subr.mxu0 0.0
        %1224 = vmatpush1.msra.mxu0 %v805
        %1225 = vmatprep.subr.mxu0 0.0
        %1226 = vmatpush1.msra.mxu0 %v806
        %1227 = vmatprep.subr.mxu0 0.0
        %1228 = vmatpush1.msra.mxu0 0.0
        %1229 = vmatprep.subr.mxu0 0.0
        %1230 = vmatpush1.msra.mxu0 0.0
        %1231 = vmatprep.subr.mxu0 0.0
        %1232 = vmatpush1.msra.mxu0 0.0
        %1233 = vmatprep.subr.mxu0 0.0
        %1234 = vmatpush1.msra.mxu0 0.0
        %1235 = vmatprep.subr.mxu0 0.0
        %1236 = vmatpush1.msra.mxu0 0.0
        %1237 = vmatprep.subr.mxu0 0.0
        %1238 = vmatpush1.msra.mxu0 0.0
        %1239 = vmatprep.subr.mxu0 0.0
        %1240 = vmatpush1.msra.mxu0 0.0
        %1241 = vmatprep.subr.mxu0 0.0
        %1242 = vmatpush1.msra.mxu0 0.0
        %1243 = vmatprep.subr.mxu0 0.0
        %1244 = vmatpush1.msra.mxu0 0.0
        %1245 = vmatprep.subr.mxu0 0.0
        %1246 = vmatpush1.msra.mxu0 0.0
        %1247 = vmatprep.subr.mxu0 0.0
        %1248 = vmatpush1.msra.mxu0 0.0
        %1249 = vmatprep.subr.mxu0 0.0
        %1250 = vmatpush1.msra.mxu0 0.0
        %1251 = vmatprep.subr.mxu0 0.0
        %1252 = vmatpush1.msra.mxu0 0.0
        %1253 = vmatprep.subr.mxu0 0.0
        %1254 = vmatpush1.msra.mxu0 0.0
        %1255 = vmatprep.subr.mxu0 0.0
        %1256 = vmatpush1.msra.mxu0 0.0
        %1257 = vmatprep.subr.mxu0 0.0
        %1258 = vmatpush1.msra.mxu0 0.0
        %1259 = vmatprep.subr.mxu0 0.0
        %1260 = vmatpush1.msra.mxu0 0.0
        %1261 = vmatprep.subr.mxu0 0.0
        %1262 = vmatpush1.msra.mxu0 0.0
        %1263 = vmatprep.subr.mxu0 0.0
        %1264 = vmatpush1.msra.mxu0 0.0
        %1265 = vmatprep.subr.mxu0 0.0
        %1266 = vmatpush1.msra.mxu0 0.0
        %1267 = vmatprep.subr.mxu0 0.0
        %1268 = vmatpush1.msra.mxu0 0.0
        %1269 = vmatprep.subr.mxu0 0.0
        %1270 = vmatpush1.msra.mxu0 0.0
        %1271 = vmatprep.subr.mxu0 0.0
        %1272 = vmatpush1.msra.mxu0 0.0
        %1273 = vmatprep.subr.mxu0 0.0
        %1274 = vmatpush1.msra.mxu0 0.0
        %1275 = vmatprep.subr.mxu0 0.0
        %1276 = vmatpush1.msra.mxu0 0.0
        %1277 = vmatprep.subr.mxu0 0.0
        %1278 = vmatpush1.msra.mxu0 0.0
        %1279 = vmatprep.subr.mxu0 0.0
        %1280 = vmatpush1.msra.mxu0 0.0
        %1281 = vmatprep.subr.mxu0 0.0
        %1282 = vmatpush1.msra.mxu0 0.0
        %1283 = vmatprep.subr.mxu0 0.0
        %1284 = vmatpush1.msra.mxu0 0.0
        %1285 = vmatprep.subr.mxu0 0.0
        %1286 = vmatpush1.msra.mxu0 0.0
        %1287 = vmatprep.mubr.f32.mxu0 0.0
        %1288 = vmatmul.mubr.f32.gmra.mrb[0].mxu0 %v1218
        %v1289 = vpop.f32.mrb[0].mxu0
        %v1290 = vadd.f32 0.0, %v1289
        %v1291 = vpop.f32.mrb[0].mxu0
        %1292 = vmatprep.mubr.f32.mxu0 0.0
        %1293 = vmatmul.mubr.f32.gmra.mrb[0].mxu0 %v1221
        %v1294 = vpop.f32.mrb[0].mxu0
        %v1295 = vadd.f32 0.0, %v1294
        %v1296 = vpop.f32.mrb[0].mxu0
        %1297 = vdwg.mxu0
        %v1299 = vsel %vm624, %v1005, 0
        %v1302 = vsel %vm624, %v1010, 0
        %1304 = vmatprep.subr.mxu0 0.0
        %1305 = vmatpush1.msra.mxu0 %v803
        %1306 = vmatprep.subr.mxu0 0.0
        %1307 = vmatpush1.msra.mxu0 %v804
        %1308 = vmatprep.subr.mxu0 0.0
        %1309 = vmatpush1.msra.mxu0 0.0
        %1310 = vmatprep.subr.mxu0 0.0
        %1311 = vmatpush1.msra.mxu0 0.0
        %1312 = vmatprep.subr.mxu0 0.0
        %1313 = vmatpush1.msra.mxu0 0.0
        %1314 = vmatprep.subr.mxu0 0.0
        %1315 = vmatpush1.msra.mxu0 0.0
        %1316 = vmatprep.subr.mxu0 0.0
        %1317 = vmatpush1.msra.mxu0 0.0
        %1318 = vmatprep.subr.mxu0 0.0
        %1319 = vmatpush1.msra.mxu0 0.0
        %1320 = vmatprep.subr.mxu0 0.0
        %1321 = vmatpush1.msra.mxu0 0.0
        %1322 = vmatprep.subr.mxu0 0.0
        %1323 = vmatpush1.msra.mxu0 0.0
        %1324 = vmatprep.subr.mxu0 0.0
        %1325 = vmatpush1.msra.mxu0 0.0
        %1326 = vmatprep.subr.mxu0 0.0
        %1327 = vmatpush1.msra.mxu0 0.0
        %1328 = vmatprep.subr.mxu0 0.0
        %1329 = vmatpush1.msra.mxu0 0.0
        %1330 = vmatprep.subr.mxu0 0.0
        %1331 = vmatpush1.msra.mxu0 0.0
        %1332 = vmatprep.subr.mxu0 0.0
        %1333 = vmatpush1.msra.mxu0 0.0
        %1334 = vmatprep.subr.mxu0 0.0
        %1335 = vmatpush1.msra.mxu0 0.0
        %1336 = vmatprep.subr.mxu0 0.0
        %1337 = vmatpush1.msra.mxu0 0.0
        %1338 = vmatprep.subr.mxu0 0.0
        %1339 = vmatpush1.msra.mxu0 0.0
        %1340 = vmatprep.subr.mxu0 0.0
        %1341 = vmatpush1.msra.mxu0 0.0
        %1342 = vmatprep.subr.mxu0 0.0
        %1343 = vmatpush1.msra.mxu0 0.0
        %1344 = vmatprep.subr.mxu0 0.0
        %1345 = vmatpush1.msra.mxu0 0.0
        %1346 = vmatprep.subr.mxu0 0.0
        %1347 = vmatpush1.msra.mxu0 0.0
        %1348 = vmatprep.subr.mxu0 0.0
        %1349 = vmatpush1.msra.mxu0 0.0
        %1350 = vmatprep.subr.mxu0 0.0
        %1351 = vmatpush1.msra.mxu0 0.0
        %1352 = vmatprep.subr.mxu0 0.0
        %1353 = vmatpush1.msra.mxu0 0.0
        %1354 = vmatprep.subr.mxu0 0.0
        %1355 = vmatpush1.msra.mxu0 0.0
        %1356 = vmatprep.subr.mxu0 0.0
        %1357 = vmatpush1.msra.mxu0 0.0
        %1358 = vmatprep.subr.mxu0 0.0
        %1359 = vmatpush1.msra.mxu0 0.0
        %1360 = vmatprep.subr.mxu0 0.0
        %1361 = vmatpush1.msra.mxu0 0.0
        %1362 = vmatprep.subr.mxu0 0.0
        %1363 = vmatpush1.msra.mxu0 0.0
        %1364 = vmatprep.subr.mxu0 0.0
        %1365 = vmatpush1.msra.mxu0 0.0
        %1366 = vmatprep.subr.mxu0 0.0
        %1367 = vmatpush1.msra.mxu0 0.0
        %1368 = vmatprep.mubr.f32.mxu0 0.0
        %1369 = vmatmul.mubr.f32.gmra.mrb[0].mxu0 %v1299
        %v1370 = vpop.f32.mrb[0].mxu0
        %v1371 = vadd.f32 %v1290, %v1370
        %v1372 = vpop.f32.mrb[0].mxu0
        %1373 = vmatprep.mubr.f32.mxu0 0.0
        %1374 = vmatmul.mubr.f32.gmra.mrb[0].mxu0 %v1302
        %v1375 = vpop.f32.mrb[0].mxu0
        %v1376 = vadd.f32 %v1295, %v1375
        %v1377 = vpop.f32.mrb[0].mxu0
        %1378 = vdwg.mxu0
        %v1379 = vmul.f32 %v1128, 0.5
        %v1380 = vmul.f32 %v1129, 0.5
        %1381 = vst.msk [vmem:[%s612] sm:$0xff] %vm624, %v1379
        %1382 = vst.msk [vmem:[%s612 + $0x8] sm:$0xff] %vm624, %v1380
        %v1383 = vld [vmem:[%s7] sm:$0x1]
        %v1385 = vlaneseq
        %v1386 = vshrl.u32 %v1385, 7
        %v1387 = vsub.s32 0, %v1386
        %v1388 = vrot.slane %v1383, %v1387
        %v1390 = vadd.f32 %v1371, %v1388
        %v1391 = vadd.f32 %v1376, %v1388
        %v1392 = vadd.f32 %v708, %v1390
        %v1393 = vadd.f32 %v709, %v1391
        %v1394 = vld [vmem:[%s8] sm:$0x1]
        %v1395 = vld [vmem:[%s9] sm:$0x1]
        %v1396 = vsel %vm721, %v1392, 0.0
        %1397 = vadd.xlane.f32.xlu0 %v1396
        %v1398 = vpop.xlane.xlu0 %1397
        %v1399 = vsel %vm721, %v1393, 0.0
        %1400 = vadd.xlane.f32.xlu0 %v1399
        %v1401 = vpop.xlane.xlu0 %1400
        %v1402 = vrcp.pop 32.0
        %v1403 = vmul.f32 %v1398, %v1402
        %v1404 = vmul.f32 %v1401, %v1402
        %v1405 = vsub.f32 %v1392, %v1403
        %v1406 = vsub.f32 %v1393, %v1404
        %v1407 = vmul.f32 %v1405, %v1405
        %v1408 = vmul.f32 %v1406, %v1406
        %v1409 = vsel %vm721, %v1407, 0.0
        %1410 = vadd.xlane.f32.xlu0 %v1409
        %v1411 = vpop.xlane.xlu0 %1410
        %v1412 = vsel %vm721, %v1408, 0.0
        %1413 = vadd.xlane.f32.xlu0 %v1412
        %v1414 = vpop.xlane.xlu0 %1413
        %v1415 = vmul.f32 %v1411, %v1402
        %v1416 = vmul.f32 %v1414, %v1402
        %v1417 = vadd.f32 %v1415, 1e-05
        %v1418 = vadd.f32 %v1416, 1e-05
        %v1419 = vrsqrt.pop %v1417
        %v1420 = vrsqrt.pop %v1418
        %v1421 = vmul.f32 %v1405, %v1419
        %v1422 = vmul.f32 %v1406, %v1420
        %v1424 = vlaneseq
        %v1425 = vshrl.u32 %v1424, 7
        %v1426 = vsub.s32 0, %v1425
        %v1427 = vrot.slane %v1394, %v1426
        %v1429 = vmul.f32 %v1421, %v1427
        %v1430 = vmul.f32 %v1422, %v1427
        %v1432 = vlaneseq
        %v1433 = vshrl.u32 %v1432, 7
        %v1434 = vsub.s32 0, %v1433
        %v1435 = vrot.slane %v1395, %v1434
        %v1437 = vadd.f32 %v1429, %v1435
        %v1438 = vadd.f32 %v1430, %v1435
        %v1439 = vld [vmem:[%s10] sm:$0xff]
        %v1440 = vld [vmem:[%s10 + $0x8] sm:$0xff]
        %v1441 = vld [vmem:[%s10 + $0x10] sm:$0xff]
        %v1442 = vld [vmem:[%s10 + $0x18] sm:$0xff]
        %v1443 = vld [vmem:[%s11] sm:$0x1]
        %v1445 = vlaneseq
        %v1446 = vshrl.u32 %v1445, 7
        %v1447 = vsub.s32 0, %v1446
        %v1448 = vrot.slane %v1443, %v1447
        %v1451 = vsel %vm721, %v1437, 0
        %v1454 = vsel %vm721, %v1438, 0
        %1456 = vmatprep.subr.mxu0 0.0
        %1457 = vmatpush1.msra.mxu0 %v1439
        %1458 = vmatprep.subr.mxu0 0.0
        %1459 = vmatpush1.msra.mxu0 %v1440
        %1460 = vmatprep.subr.mxu0 0.0
        %1461 = vmatpush1.msra.mxu0 %v1441
        %1462 = vmatprep.subr.mxu0 0.0
        %1463 = vmatpush1.msra.mxu0 %v1442
        %1464 = vmatprep.subr.mxu0 0.0
        %1465 = vmatpush1.msra.mxu0 0.0
        %1466 = vmatprep.subr.mxu0 0.0
        %1467 = vmatpush1.msra.mxu0 0.0
        %1468 = vmatprep.subr.mxu0 0.0
        %1469 = vmatpush1.msra.mxu0 0.0
        %1470 = vmatprep.subr.mxu0 0.0
        %1471 = vmatpush1.msra.mxu0 0.0
        %1472 = vmatprep.subr.mxu0 0.0
        %1473 = vmatpush1.msra.mxu0 0.0
        %1474 = vmatprep.subr.mxu0 0.0
        %1475 = vmatpush1.msra.mxu0 0.0
        %1476 = vmatprep.subr.mxu0 0.0
        %1477 = vmatpush1.msra.mxu0 0.0
        %1478 = vmatprep.subr.mxu0 0.0
        %1479 = vmatpush1.msra.mxu0 0.0
        %1480 = vmatprep.subr.mxu0 0.0
        %1481 = vmatpush1.msra.mxu0 0.0
        %1482 = vmatprep.subr.mxu0 0.0
        %1483 = vmatpush1.msra.mxu0 0.0
        %1484 = vmatprep.subr.mxu0 0.0
        %1485 = vmatpush1.msra.mxu0 0.0
        %1486 = vmatprep.subr.mxu0 0.0
        %1487 = vmatpush1.msra.mxu0 0.0
        %1488 = vmatprep.subr.mxu0 0.0
        %1489 = vmatpush1.msra.mxu0 0.0
        %1490 = vmatprep.subr.mxu0 0.0
        %1491 = vmatpush1.msra.mxu0 0.0
        %1492 = vmatprep.subr.mxu0 0.0
        %1493 = vmatpush1.msra.mxu0 0.0
        %1494 = vmatprep.subr.mxu0 0.0
        %1495 = vmatpush1.msra.mxu0 0.0
        %1496 = vmatprep.subr.mxu0 0.0
        %1497 = vmatpush1.msra.mxu0 0.0
        %1498 = vmatprep.subr.mxu0 0.0
        %1499 = vmatpush1.msra.mxu0 0.0
        %1500 = vmatprep.subr.mxu0 0.0
        %1501 = vmatpush1.msra.mxu0 0.0
        %1502 = vmatprep.subr.mxu0 0.0
        %1503 = vmatpush1.msra.mxu0 0.0
        %1504 = vmatprep.subr.mxu0 0.0
        %1505 = vmatpush1.msra.mxu0 0.0
        %1506 = vmatprep.subr.mxu0 0.0
        %1507 = vmatpush1.msra.mxu0 0.0
        %1508 = vmatprep.subr.mxu0 0.0
        %1509 = vmatpush1.msra.mxu0 0.0
        %1510 = vmatprep.subr.mxu0 0.0
        %1511 = vmatpush1.msra.mxu0 0.0
        %1512 = vmatprep.subr.mxu0 0.0
        %1513 = vmatpush1.msra.mxu0 0.0
        %1514 = vmatprep.subr.mxu0 0.0
        %1515 = vmatpush1.msra.mxu0 0.0
        %1516 = vmatprep.subr.mxu0 0.0
        %1517 = vmatpush1.msra.mxu0 0.0
        %1518 = vmatprep.subr.mxu0 0.0
        %1519 = vmatpush1.msra.mxu0 0.0
        %1520 = vmatprep.mubr.f32.mxu0 0.0
        %1521 = vmatmul.mubr.f32.gmra.mrb[0].mxu0 %v1451
        %v1522 = vpop.f32.mrb[0].mxu0
        %v1523 = vadd.f32 %v1448, %v1522
        %v1524 = vpop.f32.mrb[0].mxu0
        %1525 = vmatprep.mubr.f32.mxu0 0.0
        %1526 = vmatmul.mubr.f32.gmra.mrb[0].mxu0 %v1454
        %v1527 = vpop.f32.mrb[0].mxu0
        %v1528 = vadd.f32 %v1448, %v1527
        %v1529 = vpop.f32.mrb[0].mxu0
        %1530 = vdwg.mxu0
        %v1531 = vmax.f32 %v1523, 0.0
        %v1532 = vmax.f32 %v1528, 0.0
        %v1533 = vld [vmem:[%s12] sm:$0xff]
        %v1534 = vld [vmem:[%s12 + $0x8] sm:$0xff]
        %v1535 = vld [vmem:[%s12 + $0x10] sm:$0xff]
        %v1536 = vld [vmem:[%s12 + $0x18] sm:$0xff]
        %v1537 = vld [vmem:[%s12 + $0x20] sm:$0xff]
        %v1538 = vld [vmem:[%s12 + $0x28] sm:$0xff]
        %v1539 = vld [vmem:[%s12 + $0x30] sm:$0xff]
        %v1540 = vld [vmem:[%s12 + $0x38] sm:$0xff]
        %v1541 = vld [vmem:[%s13] sm:$0x1]
        %v1543 = vlaneseq
        %v1544 = vshrl.u32 %v1543, 7
        %v1545 = vsub.s32 0, %v1544
        %v1546 = vrot.slane %v1541, %v1545
        %vm1548 = vcmask 523264
        %v1550 = vsel %vm1548, %v1531, 0
        %v1553 = vsel %vm1548, %v1532, 0
        %1555 = vmatprep.subr.mxu0 0.0
        %1556 = vmatpush1.msra.mxu0 %v1533
        %1557 = vmatprep.subr.mxu0 0.0
        %1558 = vmatpush1.msra.mxu0 %v1534
        %1559 = vmatprep.subr.mxu0 0.0
        %1560 = vmatpush1.msra.mxu0 %v1535
        %1561 = vmatprep.subr.mxu0 0.0
        %1562 = vmatpush1.msra.mxu0 %v1536
        %1563 = vmatprep.subr.mxu0 0.0
        %1564 = vmatpush1.msra.mxu0 %v1537
        %1565 = vmatprep.subr.mxu0 0.0
        %1566 = vmatpush1.msra.mxu0 %v1538
        %1567 = vmatprep.subr.mxu0 0.0
        %1568 = vmatpush1.msra.mxu0 %v1539
        %1569 = vmatprep.subr.mxu0 0.0
        %1570 = vmatpush1.msra.mxu0 %v1540
        %1571 = vmatprep.subr.mxu0 0.0
        %1572 = vmatpush1.msra.mxu0 0.0
        %1573 = vmatprep.subr.mxu0 0.0
        %1574 = vmatpush1.msra.mxu0 0.0
        %1575 = vmatprep.subr.mxu0 0.0
        %1576 = vmatpush1.msra.mxu0 0.0
        %1577 = vmatprep.subr.mxu0 0.0
        %1578 = vmatpush1.msra.mxu0 0.0
        %1579 = vmatprep.subr.mxu0 0.0
        %1580 = vmatpush1.msra.mxu0 0.0
        %1581 = vmatprep.subr.mxu0 0.0
        %1582 = vmatpush1.msra.mxu0 0.0
        %1583 = vmatprep.subr.mxu0 0.0
        %1584 = vmatpush1.msra.mxu0 0.0
        %1585 = vmatprep.subr.mxu0 0.0
        %1586 = vmatpush1.msra.mxu0 0.0
        %1587 = vmatprep.subr.mxu0 0.0
        %1588 = vmatpush1.msra.mxu0 0.0
        %1589 = vmatprep.subr.mxu0 0.0
        %1590 = vmatpush1.msra.mxu0 0.0
        %1591 = vmatprep.subr.mxu0 0.0
        %1592 = vmatpush1.msra.mxu0 0.0
        %1593 = vmatprep.subr.mxu0 0.0
        %1594 = vmatpush1.msra.mxu0 0.0
        %1595 = vmatprep.subr.mxu0 0.0
        %1596 = vmatpush1.msra.mxu0 0.0
        %1597 = vmatprep.subr.mxu0 0.0
        %1598 = vmatpush1.msra.mxu0 0.0
        %1599 = vmatprep.subr.mxu0 0.0
        %1600 = vmatpush1.msra.mxu0 0.0
        %1601 = vmatprep.subr.mxu0 0.0
        %1602 = vmatpush1.msra.mxu0 0.0
        %1603 = vmatprep.subr.mxu0 0.0
        %1604 = vmatpush1.msra.mxu0 0.0
        %1605 = vmatprep.subr.mxu0 0.0
        %1606 = vmatpush1.msra.mxu0 0.0
        %1607 = vmatprep.subr.mxu0 0.0
        %1608 = vmatpush1.msra.mxu0 0.0
        %1609 = vmatprep.subr.mxu0 0.0
        %1610 = vmatpush1.msra.mxu0 0.0
        %1611 = vmatprep.subr.mxu0 0.0
        %1612 = vmatpush1.msra.mxu0 0.0
        %1613 = vmatprep.subr.mxu0 0.0
        %1614 = vmatpush1.msra.mxu0 0.0
        %1615 = vmatprep.subr.mxu0 0.0
        %1616 = vmatpush1.msra.mxu0 0.0
        %1617 = vmatprep.subr.mxu0 0.0
        %1618 = vmatpush1.msra.mxu0 0.0
        %1619 = vmatprep.mubr.f32.mxu0 0.0
        %1620 = vmatmul.mubr.f32.gmra.mrb[0].mxu0 %v1550
        %v1621 = vpop.f32.mrb[0].mxu0
        %v1622 = vadd.f32 %v1546, %v1621
        %v1623 = vpop.f32.mrb[0].mxu0
        %1624 = vmatprep.mubr.f32.mxu0 0.0
        %1625 = vmatmul.mubr.f32.gmra.mrb[0].mxu0 %v1553
        %v1626 = vpop.f32.mrb[0].mxu0
        %v1627 = vadd.f32 %v1546, %v1626
        %v1628 = vpop.f32.mrb[0].mxu0
        %1629 = vdwg.mxu0
        %v1630 = vadd.f32 %v1437, %v1622
        %v1631 = vadd.f32 %v1438, %v1627
        %v1632 = vld [vmem:[%s14] sm:$0x1]
        %v1633 = vld [vmem:[%s15] sm:$0x1]
        %v1634 = vsel %vm721, %v1630, 0.0
        %1635 = vadd.xlane.f32.xlu0 %v1634
        %v1636 = vpop.xlane.xlu0 %1635
        %v1637 = vsel %vm721, %v1631, 0.0
        %1638 = vadd.xlane.f32.xlu0 %v1637
        %v1639 = vpop.xlane.xlu0 %1638
        %v1640 = vmul.f32 %v1636, %v1402
        %v1641 = vmul.f32 %v1639, %v1402
        %v1642 = vsub.f32 %v1630, %v1640
        %v1643 = vsub.f32 %v1631, %v1641
        %v1644 = vmul.f32 %v1642, %v1642
        %v1645 = vmul.f32 %v1643, %v1643
        %v1646 = vsel %vm721, %v1644, 0.0
        %1647 = vadd.xlane.f32.xlu0 %v1646
        %v1648 = vpop.xlane.xlu0 %1647
        %v1649 = vsel %vm721, %v1645, 0.0
        %1650 = vadd.xlane.f32.xlu0 %v1649
        %v1651 = vpop.xlane.xlu0 %1650
        %v1652 = vmul.f32 %v1648, %v1402
        %v1653 = vmul.f32 %v1651, %v1402
        %v1654 = vadd.f32 %v1652, 1e-05
        %v1655 = vadd.f32 %v1653, 1e-05
        %v1656 = vrsqrt.pop %v1654
        %v1657 = vrsqrt.pop %v1655
        %v1658 = vmul.f32 %v1642, %v1656
        %v1659 = vmul.f32 %v1643, %v1657
        %v1661 = vlaneseq
        %v1662 = vshrl.u32 %v1661, 7
        %v1663 = vsub.s32 0, %v1662
        %v1664 = vrot.slane %v1632, %v1663
        %v1666 = vmul.f32 %v1658, %v1664
        %v1667 = vmul.f32 %v1659, %v1664
        %v1669 = vlaneseq
        %v1670 = vshrl.u32 %v1669, 7
        %v1671 = vsub.s32 0, %v1670
        %v1672 = vrot.slane %v1633, %v1671
        %v1674 = vadd.f32 %v1666, %v1672
        %v1675 = vadd.f32 %v1667, %v1672
        %s1676 = scalar_lea.vmem %s4, 32
        %v1677 = vld [vmem:[%s1676] sm:$0xff]
        %v1678 = vld [vmem:[%s1676 + $0x8] sm:$0xff]
        %v1679 = vld [vmem:[%s1676 + $0x10] sm:$0xff]
        %v1680 = vld [vmem:[%s1676 + $0x18] sm:$0xff]
        %s1681 = scalar_lea.vmem %s5, 1
        %v1682 = vld [vmem:[%s1681] sm:$0x1]
        %v1684 = vlaneseq
        %v1685 = vshrl.u32 %v1684, 7
        %v1686 = vsub.s32 0, %v1685
        %v1687 = vrot.slane %v1682, %v1686
        %v1690 = vsel %vm721, %v1674, 0
        %v1693 = vsel %vm721, %v1675, 0
        %1695 = vmatprep.subr.mxu0 0.0
        %1696 = vmatpush1.msra.mxu0 %v1677
        %1697 = vmatprep.subr.mxu0 0.0
        %1698 = vmatpush1.msra.mxu0 %v1678
        %1699 = vmatprep.subr.mxu0 0.0
        %1700 = vmatpush1.msra.mxu0 %v1679
        %1701 = vmatprep.subr.mxu0 0.0
        %1702 = vmatpush1.msra.mxu0 %v1680
        %1703 = vmatprep.subr.mxu0 0.0
        %1704 = vmatpush1.msra.mxu0 0.0
        %1705 = vmatprep.subr.mxu0 0.0
        %1706 = vmatpush1.msra.mxu0 0.0
        %1707 = vmatprep.subr.mxu0 0.0
        %1708 = vmatpush1.msra.mxu0 0.0
        %1709 = vmatprep.subr.mxu0 0.0
        %1710 = vmatpush1.msra.mxu0 0.0
        %1711 = vmatprep.subr.mxu0 0.0
        %1712 = vmatpush1.msra.mxu0 0.0
        %1713 = vmatprep.subr.mxu0 0.0
        %1714 = vmatpush1.msra.mxu0 0.0
        %1715 = vmatprep.subr.mxu0 0.0
        %1716 = vmatpush1.msra.mxu0 0.0
        %1717 = vmatprep.subr.mxu0 0.0
        %1718 = vmatpush1.msra.mxu0 0.0
        %1719 = vmatprep.subr.mxu0 0.0
        %1720 = vmatpush1.msra.mxu0 0.0
        %1721 = vmatprep.subr.mxu0 0.0
        %1722 = vmatpush1.msra.mxu0 0.0
        %1723 = vmatprep.subr.mxu0 0.0
        %1724 = vmatpush1.msra.mxu0 0.0
        %1725 = vmatprep.subr.mxu0 0.0
        %1726 = vmatpush1.msra.mxu0 0.0
        %1727 = vmatprep.subr.mxu0 0.0
        %1728 = vmatpush1.msra.mxu0 0.0
        %1729 = vmatprep.subr.mxu0 0.0
        %1730 = vmatpush1.msra.mxu0 0.0
        %1731 = vmatprep.subr.mxu0 0.0
        %1732 = vmatpush1.msra.mxu0 0.0
        %1733 = vmatprep.subr.mxu0 0.0
        %1734 = vmatpush1.msra.mxu0 0.0
        %1735 = vmatprep.subr.mxu0 0.0
        %1736 = vmatpush1.msra.mxu0 0.0
        %1737 = vmatprep.subr.mxu0 0.0
        %1738 = vmatpush1.msra.mxu0 0.0
        %1739 = vmatprep.subr.mxu0 0.0
        %1740 = vmatpush1.msra.mxu0 0.0
        %1741 = vmatprep.subr.mxu0 0.0
        %1742 = vmatpush1.msra.mxu0 0.0
        %1743 = vmatprep.subr.mxu0 0.0
        %1744 = vmatpush1.msra.mxu0 0.0
        %1745 = vmatprep.subr.mxu0 0.0
        %1746 = vmatpush1.msra.mxu0 0.0
        %1747 = vmatprep.subr.mxu0 0.0
        %1748 = vmatpush1.msra.mxu0 0.0
        %1749 = vmatprep.subr.mxu0 0.0
        %1750 = vmatpush1.msra.mxu0 0.0
        %1751 = vmatprep.subr.mxu0 0.0
        %1752 = vmatpush1.msra.mxu0 0.0
        %1753 = vmatprep.subr.mxu0 0.0
        %1754 = vmatpush1.msra.mxu0 0.0
        %1755 = vmatprep.subr.mxu0 0.0
        %1756 = vmatpush1.msra.mxu0 0.0
        %1757 = vmatprep.subr.mxu0 0.0
        %1758 = vmatpush1.msra.mxu0 0.0
        %1759 = vmatprep.mubr.f32.mxu0 0.0
        %1760 = vmatmul.mubr.f32.gmra.mrb[0].mxu0 %v1690
        %v1761 = vpop.f32.mrb[0].mxu0
        %v1762 = vadd.f32 %v1687, %v1761
        %v1763 = vpop.f32.mrb[0].mxu0
        %1764 = vmatprep.mubr.f32.mxu0 0.0
        %1765 = vmatmul.mubr.f32.gmra.mrb[0].mxu0 %v1693
        %v1766 = vpop.f32.mrb[0].mxu0
        %v1767 = vadd.f32 %v1687, %v1766
        %v1768 = vpop.f32.mrb[0].mxu0
        %1769 = vdwg.mxu0
        %s1770 = scalar_lea.vmem %s6, 32
        %v1771 = vld [vmem:[%s1770] sm:$0xff]
        %v1772 = vld [vmem:[%s1770 + $0x8] sm:$0xff]
        %v1773 = vld [vmem:[%s1770 + $0x10] sm:$0xff]
        %v1774 = vld [vmem:[%s1770 + $0x18] sm:$0xff]
        %v1775 = vmul.f32 %v1762, 0.25
        %v1776 = vmul.f32 %v1767, 0.25
        %1779 = vrot.lane.b32.xlu0 %v1762, 96
        %v1780 = vpop.permute.xlu0 %1779
        %1781 = vrot.lane.b32.xlu0 %v1767, 96
        %v1782 = vpop.permute.xlu0 %1781
        %v1784 = vsel %vm624, %v1775, 0
        %v1787 = vsel %vm624, %v1776, 0
        %v1789 = vsel %vm624, %v1780, 0
        %v1791 = vsel %vm624, %v1782, 0
        %1793 = vmatprep.subr.mxu0 0.0
        %1794 = vmatpush1.xpose.msra.mxu0 %v1789
        %1795 = vmatprep.subr.mxu0 0.0
        %1796 = vmatpush1.xpose.msra.mxu0 %v1791
        %1797 = vmatprep.subr.mxu0 0.0
        %1798 = vmatpush1.xpose.msra.mxu0 0.0
        %1799 = vmatprep.subr.mxu0 0.0
        %1800 = vmatpush1.xpose.msra.mxu0 0.0
        %1801 = vmatprep.subr.mxu0 0.0
        %1802 = vmatpush1.xpose.msra.mxu0 0.0
        %1803 = vmatprep.subr.mxu0 0.0
        %1804 = vmatpush1.xpose.msra.mxu0 0.0
        %1805 = vmatprep.subr.mxu0 0.0
        %1806 = vmatpush1.xpose.msra.mxu0 0.0
        %1807 = vmatprep.subr.mxu0 0.0
        %1808 = vmatpush1.xpose.msra.mxu0 0.0
        %1809 = vmatprep.subr.mxu0 0.0
        %1810 = vmatpush1.xpose.msra.mxu0 0.0
        %1811 = vmatprep.subr.mxu0 0.0
        %1812 = vmatpush1.xpose.msra.mxu0 0.0
        %1813 = vmatprep.subr.mxu0 0.0
        %1814 = vmatpush1.xpose.msra.mxu0 0.0
        %1815 = vmatprep.subr.mxu0 0.0
        %1816 = vmatpush1.xpose.msra.mxu0 0.0
        %1817 = vmatprep.subr.mxu0 0.0
        %1818 = vmatpush1.xpose.msra.mxu0 0.0
        %1819 = vmatprep.subr.mxu0 0.0
        %1820 = vmatpush1.xpose.msra.mxu0 0.0
        %1821 = vmatprep.subr.mxu0 0.0
        %1822 = vmatpush1.xpose.msra.mxu0 0.0
        %1823 = vmatprep.subr.mxu0 0.0
        %1824 = vmatpush1.xpose.msra.mxu0 0.0
        %1825 = vmatprep.subr.mxu0 0.0
        %1826 = vmatpush1.xpose.msra.mxu0 0.0
        %1827 = vmatprep.subr.mxu0 0.0
        %1828 = vmatpush1.xpose.msra.mxu0 0.0
        %1829 = vmatprep.subr.mxu0 0.0
        %1830 = vmatpush1.xpose.msra.mxu0 0.0
        %1831 = vmatprep.subr.mxu0 0.0
        %1832 = vmatpush1.xpose.msra.mxu0 0.0
        %1833 = vmatprep.subr.mxu0 0.0
        %1834 = vmatpush1.xpose.msra.mxu0 0.0
        %1835 = vmatprep.subr.mxu0 0.0
        %1836 = vmatpush1.xpose.msra.mxu0 0.0
        %1837 = vmatprep.subr.mxu0 0.0
        %1838 = vmatpush1.xpose.msra.mxu0 0.0
        %1839 = vmatprep.subr.mxu0 0.0
        %1840 = vmatpush1.xpose.msra.mxu0 0.0
        %1841 = vmatprep.subr.mxu0 0.0
        %1842 = vmatpush1.xpose.msra.mxu0 0.0
        %1843 = vmatprep.subr.mxu0 0.0
        %1844 = vmatpush1.xpose.msra.mxu0 0.0
        %1845 = vmatprep.subr.mxu0 0.0
        %1846 = vmatpush1.xpose.msra.mxu0 0.0
        %1847 = vmatprep.subr.mxu0 0.0
        %1848 = vmatpush1.xpose.msra.mxu0 0.0
        %1849 = vmatprep.subr.mxu0 0.0
        %1850 = vmatpush1.xpose.msra.mxu0 0.0
        %1851 = vmatprep.subr.mxu0 0.0
        %1852 = vmatpush1.xpose.msra.mxu0 0.0
        %1853 = vmatprep.subr.mxu0 0.0
        %1854 = vmatpush1.xpose.msra.mxu0 0.0
        %1855 = vmatprep.subr.mxu0 0.0
        %1856 = vmatpush1.xpose.msra.mxu0 0.0
        %1857 = vmatprep.mubr.f32.mxu0 0.0
        %1858 = vmatmul.mubr.f32.gmra.mrb[0].mxu0 %v1784
        %v1859 = vpop.f32.mrb[0].mxu0
        %v1860 = vadd.f32 0.0, %v1859
        %v1861 = vpop.f32.mrb[0].mxu0
        %1862 = vmatprep.mubr.f32.mxu0 0.0
        %1863 = vmatmul.mubr.f32.gmra.mrb[0].mxu0 %v1787
        %v1864 = vpop.f32.mrb[0].mxu0
        %v1865 = vadd.f32 0.0, %v1864
        %v1866 = vpop.f32.mrb[0].mxu0
        %1867 = vdwg.mxu0
        %v1868 = vsel %vm624, %v1860, -inf
        %1869 = vmax.xlane.f32.xlu0 %v1868
        %v1870 = vpop.xlane.xlu0 %1869
        %v1871 = vsel %vm624, %v1865, -inf
        %1872 = vmax.xlane.f32.xlu0 %v1871
        %v1873 = vpop.xlane.xlu0 %1872
        %v1874 = vsub.f32 %v1860, %v1870
        %v1875 = vsub.f32 %v1865, %v1873
        %v1876 = vmul.f32 %v1874, 1.442695
        %v1877 = vpow.pop %v1876
        %v1878 = vmul.f32 %v1875, 1.442695
        %v1879 = vpow.pop %v1878
        %v1880 = vsel %vm624, %v1877, 0.0
        %1881 = vadd.xlane.f32.xlu0 %v1880
        %v1882 = vpop.xlane.xlu0 %1881
        %v1883 = vsel %vm624, %v1879, 0.0
        %1884 = vadd.xlane.f32.xlu0 %v1883
        %v1885 = vpop.xlane.xlu0 %1884
        %v1886 = vrcp.pop %v1882
        %v1887 = vmul.f32 1.0, %v1886
        %v1888 = vrcp.pop %v1885
        %v1889 = vmul.f32 1.0, %v1888
        %v1890 = vmul.f32 %v1877, %v1887
        %v1891 = vmul.f32 %v1879, %v1889
        %v1892 = vadd.f32 %v1890, 0.0
        %v1893 = vadd.f32 %v1891, 0.0
        %1894 = vrot.lane.b32.xlu0 %v1762, 64
        %v1895 = vpop.permute.xlu0 %1894
        %1896 = vrot.lane.b32.xlu0 %v1767, 64
        %v1897 = vpop.permute.xlu0 %1896
        %v1901 = vsel %vm624, %v1890, 0
        %v1904 = vsel %vm624, %v1891, 0
        %1906 = vmatprep.subr.mxu0 0.0
        %1907 = vmatpush1.msra.mxu0 %v1895
        %1908 = vmatprep.subr.mxu0 0.0
        %1909 = vmatpush1.msra.mxu0 %v1897
        %1910 = vmatprep.subr.mxu0 0.0
        %1911 = vmatpush1.msra.mxu0 0.0
        %1912 = vmatprep.subr.mxu0 0.0
        %1913 = vmatpush1.msra.mxu0 0.0
        %1914 = vmatprep.subr.mxu0 0.0
        %1915 = vmatpush1.msra.mxu0 0.0
        %1916 = vmatprep.subr.mxu0 0.0
        %1917 = vmatpush1.msra.mxu0 0.0
        %1918 = vmatprep.subr.mxu0 0.0
        %1919 = vmatpush1.msra.mxu0 0.0
        %1920 = vmatprep.subr.mxu0 0.0
        %1921 = vmatpush1.msra.mxu0 0.0
        %1922 = vmatprep.subr.mxu0 0.0
        %1923 = vmatpush1.msra.mxu0 0.0
        %1924 = vmatprep.subr.mxu0 0.0
        %1925 = vmatpush1.msra.mxu0 0.0
        %1926 = vmatprep.subr.mxu0 0.0
        %1927 = vmatpush1.msra.mxu0 0.0
        %1928 = vmatprep.subr.mxu0 0.0
        %1929 = vmatpush1.msra.mxu0 0.0
        %1930 = vmatprep.subr.mxu0 0.0
        %1931 = vmatpush1.msra.mxu0 0.0
        %1932 = vmatprep.subr.mxu0 0.0
        %1933 = vmatpush1.msra.mxu0 0.0
        %1934 = vmatprep.subr.mxu0 0.0
        %1935 = vmatpush1.msra.mxu0 0.0
        %1936 = vmatprep.subr.mxu0 0.0
        %1937 = vmatpush1.msra.mxu0 0.0
        %1938 = vmatprep.subr.mxu0 0.0
        %1939 = vmatpush1.msra.mxu0 0.0
        %1940 = vmatprep.subr.mxu0 0.0
        %1941 = vmatpush1.msra.mxu0 0.0
        %1942 = vmatprep.subr.mxu0 0.0
        %1943 = vmatpush1.msra.mxu0 0.0
        %1944 = vmatprep.subr.mxu0 0.0
        %1945 = vmatpush1.msra.mxu0 0.0
        %1946 = vmatprep.subr.mxu0 0.0
        %1947 = vmatpush1.msra.mxu0 0.0
        %1948 = vmatprep.subr.mxu0 0.0
        %1949 = vmatpush1.msra.mxu0 0.0
        %1950 = vmatprep.subr.mxu0 0.0
        %1951 = vmatpush1.msra.mxu0 0.0
        %1952 = vmatprep.subr.mxu0 0.0
        %1953 = vmatpush1.msra.mxu0 0.0
        %1954 = vmatprep.subr.mxu0 0.0
        %1955 = vmatpush1.msra.mxu0 0.0
        %1956 = vmatprep.subr.mxu0 0.0
        %1957 = vmatpush1.msra.mxu0 0.0
        %1958 = vmatprep.subr.mxu0 0.0
        %1959 = vmatpush1.msra.mxu0 0.0
        %1960 = vmatprep.subr.mxu0 0.0
        %1961 = vmatpush1.msra.mxu0 0.0
        %1962 = vmatprep.subr.mxu0 0.0
        %1963 = vmatpush1.msra.mxu0 0.0
        %1964 = vmatprep.subr.mxu0 0.0
        %1965 = vmatpush1.msra.mxu0 0.0
        %1966 = vmatprep.subr.mxu0 0.0
        %1967 = vmatpush1.msra.mxu0 0.0
        %1968 = vmatprep.subr.mxu0 0.0
        %1969 = vmatpush1.msra.mxu0 0.0
        %1970 = vmatprep.mubr.f32.mxu0 0.0
        %1971 = vmatmul.mubr.f32.gmra.mrb[0].mxu0 %v1901
        %v1972 = vpop.f32.mrb[0].mxu0
        %v1973 = vadd.f32 0.0, %v1972
        %v1974 = vpop.f32.mrb[0].mxu0
        %1975 = vmatprep.mubr.f32.mxu0 0.0
        %1976 = vmatmul.mubr.f32.gmra.mrb[0].mxu0 %v1904
        %v1977 = vpop.f32.mrb[0].mxu0
        %v1978 = vadd.f32 0.0, %v1977
        %v1979 = vpop.f32.mrb[0].mxu0
        %1980 = vdwg.mxu0
        %1981 = vrot.lane.b32.xlu0 %v1775, 112
        %v1982 = vpop.permute.xlu0 %1981
        %1983 = vrot.lane.b32.xlu0 %v1776, 112
        %v1984 = vpop.permute.xlu0 %1983
        %1985 = vrot.lane.b32.xlu0 %v1762, 80
        %v1986 = vpop.permute.xlu0 %1985
        %1987 = vrot.lane.b32.xlu0 %v1767, 80
        %v1988 = vpop.permute.xlu0 %1987
        %v1989 = vsel %vm624, %v1982, 0
        %v1991 = vsel %vm624, %v1984, 0
        %v1993 = vsel %vm624, %v1986, 0
        %v1995 = vsel %vm624, %v1988, 0
        %1997 = vmatprep.subr.mxu0 0.0
        %1998 = vmatpush1.xpose.msra.mxu0 %v1993
        %1999 = vmatprep.subr.mxu0 0.0
        %2000 = vmatpush1.xpose.msra.mxu0 %v1995
        %2001 = vmatprep.subr.mxu0 0.0
        %2002 = vmatpush1.xpose.msra.mxu0 0.0
        %2003 = vmatprep.subr.mxu0 0.0
        %2004 = vmatpush1.xpose.msra.mxu0 0.0
        %2005 = vmatprep.subr.mxu0 0.0
        %2006 = vmatpush1.xpose.msra.mxu0 0.0
        %2007 = vmatprep.subr.mxu0 0.0
        %2008 = vmatpush1.xpose.msra.mxu0 0.0
        %2009 = vmatprep.subr.mxu0 0.0
        %2010 = vmatpush1.xpose.msra.mxu0 0.0
        %2011 = vmatprep.subr.mxu0 0.0
        %2012 = vmatpush1.xpose.msra.mxu0 0.0
        %2013 = vmatprep.subr.mxu0 0.0
        %2014 = vmatpush1.xpose.msra.mxu0 0.0
        %2015 = vmatprep.subr.mxu0 0.0
        %2016 = vmatpush1.xpose.msra.mxu0 0.0
        %2017 = vmatprep.subr.mxu0 0.0
        %2018 = vmatpush1.xpose.msra.mxu0 0.0
        %2019 = vmatprep.subr.mxu0 0.0
        %2020 = vmatpush1.xpose.msra.mxu0 0.0
        %2021 = vmatprep.subr.mxu0 0.0
        %2022 = vmatpush1.xpose.msra.mxu0 0.0
        %2023 = vmatprep.subr.mxu0 0.0
        %2024 = vmatpush1.xpose.msra.mxu0 0.0
        %2025 = vmatprep.subr.mxu0 0.0
        %2026 = vmatpush1.xpose.msra.mxu0 0.0
        %2027 = vmatprep.subr.mxu0 0.0
        %2028 = vmatpush1.xpose.msra.mxu0 0.0
        %2029 = vmatprep.subr.mxu0 0.0
        %2030 = vmatpush1.xpose.msra.mxu0 0.0
        %2031 = vmatprep.subr.mxu0 0.0
        %2032 = vmatpush1.xpose.msra.mxu0 0.0
        %2033 = vmatprep.subr.mxu0 0.0
        %2034 = vmatpush1.xpose.msra.mxu0 0.0
        %2035 = vmatprep.subr.mxu0 0.0
        %2036 = vmatpush1.xpose.msra.mxu0 0.0
        %2037 = vmatprep.subr.mxu0 0.0
        %2038 = vmatpush1.xpose.msra.mxu0 0.0
        %2039 = vmatprep.subr.mxu0 0.0
        %2040 = vmatpush1.xpose.msra.mxu0 0.0
        %2041 = vmatprep.subr.mxu0 0.0
        %2042 = vmatpush1.xpose.msra.mxu0 0.0
        %2043 = vmatprep.subr.mxu0 0.0
        %2044 = vmatpush1.xpose.msra.mxu0 0.0
        %2045 = vmatprep.subr.mxu0 0.0
        %2046 = vmatpush1.xpose.msra.mxu0 0.0
        %2047 = vmatprep.subr.mxu0 0.0
        %2048 = vmatpush1.xpose.msra.mxu0 0.0
        %2049 = vmatprep.subr.mxu0 0.0
        %2050 = vmatpush1.xpose.msra.mxu0 0.0
        %2051 = vmatprep.subr.mxu0 0.0
        %2052 = vmatpush1.xpose.msra.mxu0 0.0
        %2053 = vmatprep.subr.mxu0 0.0
        %2054 = vmatpush1.xpose.msra.mxu0 0.0
        %2055 = vmatprep.subr.mxu0 0.0
        %2056 = vmatpush1.xpose.msra.mxu0 0.0
        %2057 = vmatprep.subr.mxu0 0.0
        %2058 = vmatpush1.xpose.msra.mxu0 0.0
        %2059 = vmatprep.subr.mxu0 0.0
        %2060 = vmatpush1.xpose.msra.mxu0 0.0
        %2061 = vmatprep.mubr.f32.mxu0 0.0
        %2062 = vmatmul.mubr.f32.gmra.mrb[0].mxu0 %v1989
        %v2063 = vpop.f32.mrb[0].mxu0
        %v2064 = vadd.f32 0.0, %v2063
        %v2065 = vpop.f32.mrb[0].mxu0
        %2066 = vmatprep.mubr.f32.mxu0 0.0
        %2067 = vmatmul.mubr.f32.gmra.mrb[0].mxu0 %v1991
        %v2068 = vpop.f32.mrb[0].mxu0
        %v2069 = vadd.f32 0.0, %v2068
        %v2070 = vpop.f32.mrb[0].mxu0
        %2071 = vdwg.mxu0
        %v2072 = vsel %vm624, %v2064, -inf
        %2073 = vmax.xlane.f32.xlu0 %v2072
        %v2074 = vpop.xlane.xlu0 %2073
        %v2075 = vsel %vm624, %v2069, -inf
        %2076 = vmax.xlane.f32.xlu0 %v2075
        %v2077 = vpop.xlane.xlu0 %2076
        %v2078 = vsub.f32 %v2064, %v2074
        %v2079 = vsub.f32 %v2069, %v2077
        %v2080 = vmul.f32 %v2078, 1.442695
        %v2081 = vpow.pop %v2080
        %v2082 = vmul.f32 %v2079, 1.442695
        %v2083 = vpow.pop %v2082
        %v2084 = vsel %vm624, %v2081, 0.0
        %2085 = vadd.xlane.f32.xlu0 %v2084
        %v2086 = vpop.xlane.xlu0 %2085
        %v2087 = vsel %vm624, %v2083, 0.0
        %2088 = vadd.xlane.f32.xlu0 %v2087
        %v2089 = vpop.xlane.xlu0 %2088
        %v2090 = vrcp.pop %v2086
        %v2091 = vmul.f32 1.0, %v2090
        %v2092 = vrcp.pop %v2089
        %v2093 = vmul.f32 1.0, %v2092
        %v2094 = vmul.f32 %v2081, %v2091
        %v2095 = vmul.f32 %v2083, %v2093
        %v2096 = vadd.f32 %v1892, %v2094
        %v2097 = vadd.f32 %v1893, %v2095
        %2098 = vrot.lane.b32.xlu0 %v1762, 48
        %v2099 = vpop.permute.xlu0 %2098
        %2100 = vrot.lane.b32.xlu0 %v1767, 48
        %v2101 = vpop.permute.xlu0 %2100
        %v2105 = vsel %vm624, %v2094, 0
        %v2108 = vsel %vm624, %v2095, 0
        %2110 = vmatprep.subr.mxu0 0.0
        %2111 = vmatpush1.msra.mxu0 %v2099
        %2112 = vmatprep.subr.mxu0 0.0
        %2113 = vmatpush1.msra.mxu0 %v2101
        %2114 = vmatprep.subr.mxu0 0.0
        %2115 = vmatpush1.msra.mxu0 0.0
        %2116 = vmatprep.subr.mxu0 0.0
        %2117 = vmatpush1.msra.mxu0 0.0
        %2118 = vmatprep.subr.mxu0 0.0
        %2119 = vmatpush1.msra.mxu0 0.0
        %2120 = vmatprep.subr.mxu0 0.0
        %2121 = vmatpush1.msra.mxu0 0.0
        %2122 = vmatprep.subr.mxu0 0.0
        %2123 = vmatpush1.msra.mxu0 0.0
        %2124 = vmatprep.subr.mxu0 0.0
        %2125 = vmatpush1.msra.mxu0 0.0
        %2126 = vmatprep.subr.mxu0 0.0
        %2127 = vmatpush1.msra.mxu0 0.0
        %2128 = vmatprep.subr.mxu0 0.0
        %2129 = vmatpush1.msra.mxu0 0.0
        %2130 = vmatprep.subr.mxu0 0.0
        %2131 = vmatpush1.msra.mxu0 0.0
        %2132 = vmatprep.subr.mxu0 0.0
        %2133 = vmatpush1.msra.mxu0 0.0
        %2134 = vmatprep.subr.mxu0 0.0
        %2135 = vmatpush1.msra.mxu0 0.0
        %2136 = vmatprep.subr.mxu0 0.0
        %2137 = vmatpush1.msra.mxu0 0.0
        %2138 = vmatprep.subr.mxu0 0.0
        %2139 = vmatpush1.msra.mxu0 0.0
        %2140 = vmatprep.subr.mxu0 0.0
        %2141 = vmatpush1.msra.mxu0 0.0
        %2142 = vmatprep.subr.mxu0 0.0
        %2143 = vmatpush1.msra.mxu0 0.0
        %2144 = vmatprep.subr.mxu0 0.0
        %2145 = vmatpush1.msra.mxu0 0.0
        %2146 = vmatprep.subr.mxu0 0.0
        %2147 = vmatpush1.msra.mxu0 0.0
        %2148 = vmatprep.subr.mxu0 0.0
        %2149 = vmatpush1.msra.mxu0 0.0
        %2150 = vmatprep.subr.mxu0 0.0
        %2151 = vmatpush1.msra.mxu0 0.0
        %2152 = vmatprep.subr.mxu0 0.0
        %2153 = vmatpush1.msra.mxu0 0.0
        %2154 = vmatprep.subr.mxu0 0.0
        %2155 = vmatpush1.msra.mxu0 0.0
        %2156 = vmatprep.subr.mxu0 0.0
        %2157 = vmatpush1.msra.mxu0 0.0
        %2158 = vmatprep.subr.mxu0 0.0
        %2159 = vmatpush1.msra.mxu0 0.0
        %2160 = vmatprep.subr.mxu0 0.0
        %2161 = vmatpush1.msra.mxu0 0.0
        %2162 = vmatprep.subr.mxu0 0.0
        %2163 = vmatpush1.msra.mxu0 0.0
        %2164 = vmatprep.subr.mxu0 0.0
        %2165 = vmatpush1.msra.mxu0 0.0
        %2166 = vmatprep.subr.mxu0 0.0
        %2167 = vmatpush1.msra.mxu0 0.0
        %2168 = vmatprep.subr.mxu0 0.0
        %2169 = vmatpush1.msra.mxu0 0.0
        %2170 = vmatprep.subr.mxu0 0.0
        %2171 = vmatpush1.msra.mxu0 0.0
        %2172 = vmatprep.subr.mxu0 0.0
        %2173 = vmatpush1.msra.mxu0 0.0
        %2174 = vmatprep.mubr.f32.mxu0 0.0
        %2175 = vmatmul.mubr.f32.gmra.mrb[0].mxu0 %v2105
        %v2176 = vpop.f32.mrb[0].mxu0
        %v2177 = vadd.f32 0.0, %v2176
        %v2178 = vpop.f32.mrb[0].mxu0
        %2179 = vmatprep.mubr.f32.mxu0 0.0
        %2180 = vmatmul.mubr.f32.gmra.mrb[0].mxu0 %v2108
        %v2181 = vpop.f32.mrb[0].mxu0
        %v2182 = vadd.f32 0.0, %v2181
        %v2183 = vpop.f32.mrb[0].mxu0
        %2184 = vdwg.mxu0
        %v2186 = vsel %vm624, %v2177, 0
        %v2189 = vsel %vm624, %v2182, 0
        %2191 = vmatprep.subr.mxu0 0.0
        %2192 = vmatpush1.msra.mxu0 %v1773
        %2193 = vmatprep.subr.mxu0 0.0
        %2194 = vmatpush1.msra.mxu0 %v1774
        %2195 = vmatprep.subr.mxu0 0.0
        %2196 = vmatpush1.msra.mxu0 0.0
        %2197 = vmatprep.subr.mxu0 0.0
        %2198 = vmatpush1.msra.mxu0 0.0
        %2199 = vmatprep.subr.mxu0 0.0
        %2200 = vmatpush1.msra.mxu0 0.0
        %2201 = vmatprep.subr.mxu0 0.0
        %2202 = vmatpush1.msra.mxu0 0.0
        %2203 = vmatprep.subr.mxu0 0.0
        %2204 = vmatpush1.msra.mxu0 0.0
        %2205 = vmatprep.subr.mxu0 0.0
        %2206 = vmatpush1.msra.mxu0 0.0
        %2207 = vmatprep.subr.mxu0 0.0
        %2208 = vmatpush1.msra.mxu0 0.0
        %2209 = vmatprep.subr.mxu0 0.0
        %2210 = vmatpush1.msra.mxu0 0.0
        %2211 = vmatprep.subr.mxu0 0.0
        %2212 = vmatpush1.msra.mxu0 0.0
        %2213 = vmatprep.subr.mxu0 0.0
        %2214 = vmatpush1.msra.mxu0 0.0
        %2215 = vmatprep.subr.mxu0 0.0
        %2216 = vmatpush1.msra.mxu0 0.0
        %2217 = vmatprep.subr.mxu0 0.0
        %2218 = vmatpush1.msra.mxu0 0.0
        %2219 = vmatprep.subr.mxu0 0.0
        %2220 = vmatpush1.msra.mxu0 0.0
        %2221 = vmatprep.subr.mxu0 0.0
        %2222 = vmatpush1.msra.mxu0 0.0
        %2223 = vmatprep.subr.mxu0 0.0
        %2224 = vmatpush1.msra.mxu0 0.0
        %2225 = vmatprep.subr.mxu0 0.0
        %2226 = vmatpush1.msra.mxu0 0.0
        %2227 = vmatprep.subr.mxu0 0.0
        %2228 = vmatpush1.msra.mxu0 0.0
        %2229 = vmatprep.subr.mxu0 0.0
        %2230 = vmatpush1.msra.mxu0 0.0
        %2231 = vmatprep.subr.mxu0 0.0
        %2232 = vmatpush1.msra.mxu0 0.0
        %2233 = vmatprep.subr.mxu0 0.0
        %2234 = vmatpush1.msra.mxu0 0.0
        %2235 = vmatprep.subr.mxu0 0.0
        %2236 = vmatpush1.msra.mxu0 0.0
        %2237 = vmatprep.subr.mxu0 0.0
        %2238 = vmatpush1.msra.mxu0 0.0
        %2239 = vmatprep.subr.mxu0 0.0
        %2240 = vmatpush1.msra.mxu0 0.0
        %2241 = vmatprep.subr.mxu0 0.0
        %2242 = vmatpush1.msra.mxu0 0.0
        %2243 = vmatprep.subr.mxu0 0.0
        %2244 = vmatpush1.msra.mxu0 0.0
        %2245 = vmatprep.subr.mxu0 0.0
        %2246 = vmatpush1.msra.mxu0 0.0
        %2247 = vmatprep.subr.mxu0 0.0
        %2248 = vmatpush1.msra.mxu0 0.0
        %2249 = vmatprep.subr.mxu0 0.0
        %2250 = vmatpush1.msra.mxu0 0.0
        %2251 = vmatprep.subr.mxu0 0.0
        %2252 = vmatpush1.msra.mxu0 0.0
        %2253 = vmatprep.subr.mxu0 0.0
        %2254 = vmatpush1.msra.mxu0 0.0
        %2255 = vmatprep.mubr.f32.mxu0 0.0
        %2256 = vmatmul.mubr.f32.gmra.mrb[0].mxu0 %v2186
        %v2257 = vpop.f32.mrb[0].mxu0
        %v2258 = vadd.f32 0.0, %v2257
        %v2259 = vpop.f32.mrb[0].mxu0
        %2260 = vmatprep.mubr.f32.mxu0 0.0
        %2261 = vmatmul.mubr.f32.gmra.mrb[0].mxu0 %v2189
        %v2262 = vpop.f32.mrb[0].mxu0
        %v2263 = vadd.f32 0.0, %v2262
        %v2264 = vpop.f32.mrb[0].mxu0
        %2265 = vdwg.mxu0
        %v2267 = vsel %vm624, %v1973, 0
        %v2270 = vsel %vm624, %v1978, 0
        %2272 = vmatprep.subr.mxu0 0.0
        %2273 = vmatpush1.msra.mxu0 %v1771
        %2274 = vmatprep.subr.mxu0 0.0
        %2275 = vmatpush1.msra.mxu0 %v1772
        %2276 = vmatprep.subr.mxu0 0.0
        %2277 = vmatpush1.msra.mxu0 0.0
        %2278 = vmatprep.subr.mxu0 0.0
        %2279 = vmatpush1.msra.mxu0 0.0
        %2280 = vmatprep.subr.mxu0 0.0
        %2281 = vmatpush1.msra.mxu0 0.0
        %2282 = vmatprep.subr.mxu0 0.0
        %2283 = vmatpush1.msra.mxu0 0.0
        %2284 = vmatprep.subr.mxu0 0.0
        %2285 = vmatpush1.msra.mxu0 0.0
        %2286 = vmatprep.subr.mxu0 0.0
        %2287 = vmatpush1.msra.mxu0 0.0
        %2288 = vmatprep.subr.mxu0 0.0
        %2289 = vmatpush1.msra.mxu0 0.0
        %2290 = vmatprep.subr.mxu0 0.0
        %2291 = vmatpush1.msra.mxu0 0.0
        %2292 = vmatprep.subr.mxu0 0.0
        %2293 = vmatpush1.msra.mxu0 0.0
        %2294 = vmatprep.subr.mxu0 0.0
        %2295 = vmatpush1.msra.mxu0 0.0
        %2296 = vmatprep.subr.mxu0 0.0
        %2297 = vmatpush1.msra.mxu0 0.0
        %2298 = vmatprep.subr.mxu0 0.0
        %2299 = vmatpush1.msra.mxu0 0.0
        %2300 = vmatprep.subr.mxu0 0.0
        %2301 = vmatpush1.msra.mxu0 0.0
        %2302 = vmatprep.subr.mxu0 0.0
        %2303 = vmatpush1.msra.mxu0 0.0
        %2304 = vmatprep.subr.mxu0 0.0
        %2305 = vmatpush1.msra.mxu0 0.0
        %2306 = vmatprep.subr.mxu0 0.0
        %2307 = vmatpush1.msra.mxu0 0.0
        %2308 = vmatprep.subr.mxu0 0.0
        %2309 = vmatpush1.msra.mxu0 0.0
        %2310 = vmatprep.subr.mxu0 0.0
        %2311 = vmatpush1.msra.mxu0 0.0
        %2312 = vmatprep.subr.mxu0 0.0
        %2313 = vmatpush1.msra.mxu0 0.0
        %2314 = vmatprep.subr.mxu0 0.0
        %2315 = vmatpush1.msra.mxu0 0.0
        %2316 = vmatprep.subr.mxu0 0.0
        %2317 = vmatpush1.msra.mxu0 0.0
        %2318 = vmatprep.subr.mxu0 0.0
        %2319 = vmatpush1.msra.mxu0 0.0
        %2320 = vmatprep.subr.mxu0 0.0
        %2321 = vmatpush1.msra.mxu0 0.0
        %2322 = vmatprep.subr.mxu0 0.0
        %2323 = vmatpush1.msra.mxu0 0.0
        %2324 = vmatprep.subr.mxu0 0.0
        %2325 = vmatpush1.msra.mxu0 0.0
        %2326 = vmatprep.subr.mxu0 0.0
        %2327 = vmatpush1.msra.mxu0 0.0
        %2328 = vmatprep.subr.mxu0 0.0
        %2329 = vmatpush1.msra.mxu0 0.0
        %2330 = vmatprep.subr.mxu0 0.0
        %2331 = vmatpush1.msra.mxu0 0.0
        %2332 = vmatprep.subr.mxu0 0.0
        %2333 = vmatpush1.msra.mxu0 0.0
        %2334 = vmatprep.subr.mxu0 0.0
        %2335 = vmatpush1.msra.mxu0 0.0
        %2336 = vmatprep.mubr.f32.mxu0 0.0
        %2337 = vmatmul.mubr.f32.gmra.mrb[0].mxu0 %v2267
        %v2338 = vpop.f32.mrb[0].mxu0
        %v2339 = vadd.f32 %v2258, %v2338
        %v2340 = vpop.f32.mrb[0].mxu0
        %2341 = vmatprep.mubr.f32.mxu0 0.0
        %2342 = vmatmul.mubr.f32.gmra.mrb[0].mxu0 %v2270
        %v2343 = vpop.f32.mrb[0].mxu0
        %v2344 = vadd.f32 %v2263, %v2343
        %v2345 = vpop.f32.mrb[0].mxu0
        %2346 = vdwg.mxu0
        %v2347 = vmul.f32 %v2096, 0.5
        %v2348 = vmul.f32 %v2097, 0.5
        %s2349 = scalar_lea.vmem %s612, 16
        %2350 = vst.msk [vmem:[%s2349] sm:$0xff] %vm624, %v2347
        %2351 = vst.msk [vmem:[%s2349 + $0x8] sm:$0xff] %vm624, %v2348
        %s2352 = scalar_lea.vmem %s7, 1
        %v2353 = vld [vmem:[%s2352] sm:$0x1]
        %v2355 = vlaneseq
        %v2356 = vshrl.u32 %v2355, 7
        %v2357 = vsub.s32 0, %v2356
        %v2358 = vrot.slane %v2353, %v2357
        %v2360 = vadd.f32 %v2339, %v2358
        %v2361 = vadd.f32 %v2344, %v2358
        %v2362 = vadd.f32 %v1674, %v2360
        %v2363 = vadd.f32 %v1675, %v2361
        %s2364 = scalar_lea.vmem %s8, 1
        %v2365 = vld [vmem:[%s2364] sm:$0x1]
        %s2366 = scalar_lea.vmem %s9, 1
        %v2367 = vld [vmem:[%s2366] sm:$0x1]
        %v2368 = vsel %vm721, %v2362, 0.0
        %2369 = vadd.xlane.f32.xlu0 %v2368
        %v2370 = vpop.xlane.xlu0 %2369
        %v2371 = vsel %vm721, %v2363, 0.0
        %2372 = vadd.xlane.f32.xlu0 %v2371
        %v2373 = vpop.xlane.xlu0 %2372
        %v2374 = vmul.f32 %v2370, %v1402
        %v2375 = vmul.f32 %v2373, %v1402
        %v2376 = vsub.f32 %v2362, %v2374
        %v2377 = vsub.f32 %v2363, %v2375
        %v2378 = vmul.f32 %v2376, %v2376
        %v2379 = vmul.f32 %v2377, %v2377
        %v2380 = vsel %vm721, %v2378, 0.0
        %2381 = vadd.xlane.f32.xlu0 %v2380
        %v2382 = vpop.xlane.xlu0 %2381
        %v2383 = vsel %vm721, %v2379, 0.0
        %2384 = vadd.xlane.f32.xlu0 %v2383
        %v2385 = vpop.xlane.xlu0 %2384
        %v2386 = vmul.f32 %v2382, %v1402
        %v2387 = vmul.f32 %v2385, %v1402
        %v2388 = vadd.f32 %v2386, 1e-05
        %v2389 = vadd.f32 %v2387, 1e-05
        %v2390 = vrsqrt.pop %v2388
        %v2391 = vrsqrt.pop %v2389
        %v2392 = vmul.f32 %v2376, %v2390
        %v2393 = vmul.f32 %v2377, %v2391
        %v2395 = vlaneseq
        %v2396 = vshrl.u32 %v2395, 7
        %v2397 = vsub.s32 0, %v2396
        %v2398 = vrot.slane %v2365, %v2397
        %v2400 = vmul.f32 %v2392, %v2398
        %v2401 = vmul.f32 %v2393, %v2398
        %v2403 = vlaneseq
        %v2404 = vshrl.u32 %v2403, 7
        %v2405 = vsub.s32 0, %v2404
        %v2406 = vrot.slane %v2367, %v2405
        %v2408 = vadd.f32 %v2400, %v2406
        %v2409 = vadd.f32 %v2401, %v2406
        %s2410 = scalar_lea.vmem %s10, 32
        %v2411 = vld [vmem:[%s2410] sm:$0xff]
        %v2412 = vld [vmem:[%s2410 + $0x8] sm:$0xff]
        %v2413 = vld [vmem:[%s2410 + $0x10] sm:$0xff]
        %v2414 = vld [vmem:[%s2410 + $0x18] sm:$0xff]
        %s2415 = scalar_lea.vmem %s11, 1
        %v2416 = vld [vmem:[%s2415] sm:$0x1]
        %v2418 = vlaneseq
        %v2419 = vshrl.u32 %v2418, 7
        %v2420 = vsub.s32 0, %v2419
        %v2421 = vrot.slane %v2416, %v2420
        %v2424 = vsel %vm721, %v2408, 0
        %v2427 = vsel %vm721, %v2409, 0
        %2429 = vmatprep.subr.mxu0 0.0
        %2430 = vmatpush1.msra.mxu0 %v2411
        %2431 = vmatprep.subr.mxu0 0.0
        %2432 = vmatpush1.msra.mxu0 %v2412
        %2433 = vmatprep.subr.mxu0 0.0
        %2434 = vmatpush1.msra.mxu0 %v2413
        %2435 = vmatprep.subr.mxu0 0.0
        %2436 = vmatpush1.msra.mxu0 %v2414
        %2437 = vmatprep.subr.mxu0 0.0
        %2438 = vmatpush1.msra.mxu0 0.0
        %2439 = vmatprep.subr.mxu0 0.0
        %2440 = vmatpush1.msra.mxu0 0.0
        %2441 = vmatprep.subr.mxu0 0.0
        %2442 = vmatpush1.msra.mxu0 0.0
        %2443 = vmatprep.subr.mxu0 0.0
        %2444 = vmatpush1.msra.mxu0 0.0
        %2445 = vmatprep.subr.mxu0 0.0
        %2446 = vmatpush1.msra.mxu0 0.0
        %2447 = vmatprep.subr.mxu0 0.0
        %2448 = vmatpush1.msra.mxu0 0.0
        %2449 = vmatprep.subr.mxu0 0.0
        %2450 = vmatpush1.msra.mxu0 0.0
        %2451 = vmatprep.subr.mxu0 0.0
        %2452 = vmatpush1.msra.mxu0 0.0
        %2453 = vmatprep.subr.mxu0 0.0
        %2454 = vmatpush1.msra.mxu0 0.0
        %2455 = vmatprep.subr.mxu0 0.0
        %2456 = vmatpush1.msra.mxu0 0.0
        %2457 = vmatprep.subr.mxu0 0.0
        %2458 = vmatpush1.msra.mxu0 0.0
        %2459 = vmatprep.subr.mxu0 0.0
        %2460 = vmatpush1.msra.mxu0 0.0
        %2461 = vmatprep.subr.mxu0 0.0
        %2462 = vmatpush1.msra.mxu0 0.0
        %2463 = vmatprep.subr.mxu0 0.0
        %2464 = vmatpush1.msra.mxu0 0.0
        %2465 = vmatprep.subr.mxu0 0.0
        %2466 = vmatpush1.msra.mxu0 0.0
        %2467 = vmatprep.subr.mxu0 0.0
        %2468 = vmatpush1.msra.mxu0 0.0
        %2469 = vmatprep.subr.mxu0 0.0
        %2470 = vmatpush1.msra.mxu0 0.0
        %2471 = vmatprep.subr.mxu0 0.0
        %2472 = vmatpush1.msra.mxu0 0.0
        %2473 = vmatprep.subr.mxu0 0.0
        %2474 = vmatpush1.msra.mxu0 0.0
        %2475 = vmatprep.subr.mxu0 0.0
        %2476 = vmatpush1.msra.mxu0 0.0
        %2477 = vmatprep.subr.mxu0 0.0
        %2478 = vmatpush1.msra.mxu0 0.0
        %2479 = vmatprep.subr.mxu0 0.0
        %2480 = vmatpush1.msra.mxu0 0.0
        %2481 = vmatprep.subr.mxu0 0.0
        %2482 = vmatpush1.msra.mxu0 0.0
        %2483 = vmatprep.subr.mxu0 0.0
        %2484 = vmatpush1.msra.mxu0 0.0
        %2485 = vmatprep.subr.mxu0 0.0
        %2486 = vmatpush1.msra.mxu0 0.0
        %2487 = vmatprep.subr.mxu0 0.0
        %2488 = vmatpush1.msra.mxu0 0.0
        %2489 = vmatprep.subr.mxu0 0.0
        %2490 = vmatpush1.msra.mxu0 0.0
        %2491 = vmatprep.subr.mxu0 0.0
        %2492 = vmatpush1.msra.mxu0 0.0
        %2493 = vmatprep.mubr.f32.mxu0 0.0
        %2494 = vmatmul.mubr.f32.gmra.mrb[0].mxu0 %v2424
        %v2495 = vpop.f32.mrb[0].mxu0
        %v2496 = vadd.f32 %v2421, %v2495
        %v2497 = vpop.f32.mrb[0].mxu0
        %2498 = vmatprep.mubr.f32.mxu0 0.0
        %2499 = vmatmul.mubr.f32.gmra.mrb[0].mxu0 %v2427
        %v2500 = vpop.f32.mrb[0].mxu0
        %v2501 = vadd.f32 %v2421, %v2500
        %v2502 = vpop.f32.mrb[0].mxu0
        %2503 = vdwg.mxu0
        %v2504 = vmax.f32 %v2496, 0.0
        %v2505 = vmax.f32 %v2501, 0.0
        %s2506 = scalar_lea.vmem %s12, 64
        %v2507 = vld [vmem:[%s2506] sm:$0xff]
        %v2508 = vld [vmem:[%s2506 + $0x8] sm:$0xff]
        %v2509 = vld [vmem:[%s2506 + $0x10] sm:$0xff]
        %v2510 = vld [vmem:[%s2506 + $0x18] sm:$0xff]
        %v2511 = vld [vmem:[%s2506 + $0x20] sm:$0xff]
        %v2512 = vld [vmem:[%s2506 + $0x28] sm:$0xff]
        %v2513 = vld [vmem:[%s2506 + $0x30] sm:$0xff]
        %v2514 = vld [vmem:[%s2506 + $0x38] sm:$0xff]
        %s2515 = scalar_lea.vmem %s13, 1
        %v2516 = vld [vmem:[%s2515] sm:$0x1]
        %v2518 = vlaneseq
        %v2519 = vshrl.u32 %v2518, 7
        %v2520 = vsub.s32 0, %v2519
        %v2521 = vrot.slane %v2516, %v2520
        %v2524 = vsel %vm1548, %v2504, 0
        %v2527 = vsel %vm1548, %v2505, 0
        %2529 = vmatprep.subr.mxu0 0.0
        %2530 = vmatpush1.msra.mxu0 %v2507
        %2531 = vmatprep.subr.mxu0 0.0
        %2532 = vmatpush1.msra.mxu0 %v2508
        %2533 = vmatprep.subr.mxu0 0.0
        %2534 = vmatpush1.msra.mxu0 %v2509
        %2535 = vmatprep.subr.mxu0 0.0
        %2536 = vmatpush1.msra.mxu0 %v2510
        %2537 = vmatprep.subr.mxu0 0.0
        %2538 = vmatpush1.msra.mxu0 %v2511
        %2539 = vmatprep.subr.mxu0 0.0
        %2540 = vmatpush1.msra.mxu0 %v2512
        %2541 = vmatprep.subr.mxu0 0.0
        %2542 = vmatpush1.msra.mxu0 %v2513
        %2543 = vmatprep.subr.mxu0 0.0
        %2544 = vmatpush1.msra.mxu0 %v2514
        %2545 = vmatprep.subr.mxu0 0.0
        %2546 = vmatpush1.msra.mxu0 0.0
        %2547 = vmatprep.subr.mxu0 0.0
        %2548 = vmatpush1.msra.mxu0 0.0
        %2549 = vmatprep.subr.mxu0 0.0
        %2550 = vmatpush1.msra.mxu0 0.0
        %2551 = vmatprep.subr.mxu0 0.0
        %2552 = vmatpush1.msra.mxu0 0.0
        %2553 = vmatprep.subr.mxu0 0.0
        %2554 = vmatpush1.msra.mxu0 0.0
        %2555 = vmatprep.subr.mxu0 0.0
        %2556 = vmatpush1.msra.mxu0 0.0
        %2557 = vmatprep.subr.mxu0 0.0
        %2558 = vmatpush1.msra.mxu0 0.0
        %2559 = vmatprep.subr.mxu0 0.0
        %2560 = vmatpush1.msra.mxu0 0.0
        %2561 = vmatprep.subr.mxu0 0.0
        %2562 = vmatpush1.msra.mxu0 0.0
        %2563 = vmatprep.subr.mxu0 0.0
        %2564 = vmatpush1.msra.mxu0 0.0
        %2565 = vmatprep.subr.mxu0 0.0
        %2566 = vmatpush1.msra.mxu0 0.0
        %2567 = vmatprep.subr.mxu0 0.0
        %2568 = vmatpush1.msra.mxu0 0.0
        %2569 = vmatprep.subr.mxu0 0.0
        %2570 = vmatpush1.msra.mxu0 0.0
        %2571 = vmatprep.subr.mxu0 0.0
        %2572 = vmatpush1.msra.mxu0 0.0
        %2573 = vmatprep.subr.mxu0 0.0
        %2574 = vmatpush1.msra.mxu0 0.0
        %2575 = vmatprep.subr.mxu0 0.0
        %2576 = vmatpush1.msra.mxu0 0.0
        %2577 = vmatprep.subr.mxu0 0.0
        %2578 = vmatpush1.msra.mxu0 0.0
        %2579 = vmatprep.subr.mxu0 0.0
        %2580 = vmatpush1.msra.mxu0 0.0
        %2581 = vmatprep.subr.mxu0 0.0
        %2582 = vmatpush1.msra.mxu0 0.0
        %2583 = vmatprep.subr.mxu0 0.0
        %2584 = vmatpush1.msra.mxu0 0.0
        %2585 = vmatprep.subr.mxu0 0.0
        %2586 = vmatpush1.msra.mxu0 0.0
        %2587 = vmatprep.subr.mxu0 0.0
        %2588 = vmatpush1.msra.mxu0 0.0
        %2589 = vmatprep.subr.mxu0 0.0
        %2590 = vmatpush1.msra.mxu0 0.0
        %2591 = vmatprep.subr.mxu0 0.0
        %2592 = vmatpush1.msra.mxu0 0.0
        %2593 = vmatprep.mubr.f32.mxu0 0.0
        %2594 = vmatmul.mubr.f32.gmra.mrb[0].mxu0 %v2524
        %v2595 = vpop.f32.mrb[0].mxu0
        %v2596 = vadd.f32 %v2521, %v2595
        %v2597 = vpop.f32.mrb[0].mxu0
        %2598 = vmatprep.mubr.f32.mxu0 0.0
        %2599 = vmatmul.mubr.f32.gmra.mrb[0].mxu0 %v2527
        %v2600 = vpop.f32.mrb[0].mxu0
        %v2601 = vadd.f32 %v2521, %v2600
        %v2602 = vpop.f32.mrb[0].mxu0
        %2603 = vdwg.mxu0
        %v2604 = vadd.f32 %v2408, %v2596
        %v2605 = vadd.f32 %v2409, %v2601
        %s2606 = scalar_lea.vmem %s14, 1
        %v2607 = vld [vmem:[%s2606] sm:$0x1]
        %s2608 = scalar_lea.vmem %s15, 1
        %v2609 = vld [vmem:[%s2608] sm:$0x1]
        %v2610 = vsel %vm721, %v2604, 0.0
        %2611 = vadd.xlane.f32.xlu0 %v2610
        %v2612 = vpop.xlane.xlu0 %2611
        %v2613 = vsel %vm721, %v2605, 0.0
        %2614 = vadd.xlane.f32.xlu0 %v2613
        %v2615 = vpop.xlane.xlu0 %2614
        %v2616 = vmul.f32 %v2612, %v1402
        %v2617 = vmul.f32 %v2615, %v1402
        %v2618 = vsub.f32 %v2604, %v2616
        %v2619 = vsub.f32 %v2605, %v2617
        %v2620 = vmul.f32 %v2618, %v2618
        %v2621 = vmul.f32 %v2619, %v2619
        %v2622 = vsel %vm721, %v2620, 0.0
        %2623 = vadd.xlane.f32.xlu0 %v2622
        %v2624 = vpop.xlane.xlu0 %2623
        %v2625 = vsel %vm721, %v2621, 0.0
        %2626 = vadd.xlane.f32.xlu0 %v2625
        %v2627 = vpop.xlane.xlu0 %2626
        %v2628 = vmul.f32 %v2624, %v1402
        %v2629 = vmul.f32 %v2627, %v1402
        %v2630 = vadd.f32 %v2628, 1e-05
        %v2631 = vadd.f32 %v2629, 1e-05
        %v2632 = vrsqrt.pop %v2630
        %v2633 = vrsqrt.pop %v2631
        %v2634 = vmul.f32 %v2618, %v2632
        %v2635 = vmul.f32 %v2619, %v2633
        %v2637 = vlaneseq
        %v2638 = vshrl.u32 %v2637, 7
        %v2639 = vsub.s32 0, %v2638
        %v2640 = vrot.slane %v2607, %v2639
        %v2642 = vmul.f32 %v2634, %v2640
        %v2643 = vmul.f32 %v2635, %v2640
        %v2645 = vlaneseq
        %v2646 = vshrl.u32 %v2645, 7
        %v2647 = vsub.s32 0, %v2646
        %v2648 = vrot.slane %v2609, %v2647
        %v2650 = vadd.f32 %v2642, %v2648
        %v2651 = vadd.f32 %v2643, %v2648
        %v2652 = vsel %vm721, %v2650, 0.0
        %v2653 = vsel %vm721, %v2651, 0.0
        %v2654 = vadd.f32 %v2652, %v2653
        %v2655 = vrot.slane %v2654, 4
        %v2656 = vadd.f32 %v2654, %v2655
        %v2657 = vrot.slane %v2656, 2
        %v2658 = vadd.f32 %v2656, %v2657
        %v2659 = vrot.slane %v2658, 1
        %v2660 = vadd.f32 %v2658, %v2659
        %v2661 = vrcp.pop 16.0
        %v2662 = vmul.f32 %v2660, %v2661
        %v2663 = vld [vmem:[%s16] sm:$0xff]
        %v2664 = vld [vmem:[%s16 + $0x8] sm:$0xff]
        %v2665 = vld [vmem:[%s16 + $0x10] sm:$0xff]
        %v2666 = vld [vmem:[%s16 + $0x18] sm:$0xff]
        %v2667 = vld [vmem:[%s17] sm:$0x1]
        %v2669 = vsel %vm721, %v2662, 0
        %2671 = vmatprep.subr.mxu0 0.0
        %2672 = vmatpush1.msra.mxu0 %v2663
        %2673 = vmatprep.subr.mxu0 0.0
        %2674 = vmatpush1.msra.mxu0 %v2664
        %2675 = vmatprep.subr.mxu0 0.0
        %2676 = vmatpush1.msra.mxu0 %v2665
        %2677 = vmatprep.subr.mxu0 0.0
        %2678 = vmatpush1.msra.mxu0 %v2666
        %2679 = vmatprep.subr.mxu0 0.0
        %2680 = vmatpush1.msra.mxu0 0.0
        %2681 = vmatprep.subr.mxu0 0.0
        %2682 = vmatpush1.msra.mxu0 0.0
        %2683 = vmatprep.subr.mxu0 0.0
        %2684 = vmatpush1.msra.mxu0 0.0
        %2685 = vmatprep.subr.mxu0 0.0
        %2686 = vmatpush1.msra.mxu0 0.0
        %2687 = vmatprep.subr.mxu0 0.0
        %2688 = vmatpush1.msra.mxu0 0.0
        %2689 = vmatprep.subr.mxu0 0.0
        %2690 = vmatpush1.msra.mxu0 0.0
        %2691 = vmatprep.subr.mxu0 0.0
        %2692 = vmatpush1.msra.mxu0 0.0
        %2693 = vmatprep.subr.mxu0 0.0
        %2694 = vmatpush1.msra.mxu0 0.0
        %2695 = vmatprep.subr.mxu0 0.0
        %2696 = vmatpush1.msra.mxu0 0.0
        %2697 = vmatprep.subr.mxu0 0.0
        %2698 = vmatpush1.msra.mxu0 0.0
        %2699 = vmatprep.subr.mxu0 0.0
        %2700 = vmatpush1.msra.mxu0 0.0
        %2701 = vmatprep.subr.mxu0 0.0
        %2702 = vmatpush1.msra.mxu0 0.0
        %2703 = vmatprep.subr.mxu0 0.0
        %2704 = vmatpush1.msra.mxu0 0.0
        %2705 = vmatprep.subr.mxu0 0.0
        %2706 = vmatpush1.msra.mxu0 0.0
        %2707 = vmatprep.subr.mxu0 0.0
        %2708 = vmatpush1.msra.mxu0 0.0
        %2709 = vmatprep.subr.mxu0 0.0
        %2710 = vmatpush1.msra.mxu0 0.0
        %2711 = vmatprep.subr.mxu0 0.0
        %2712 = vmatpush1.msra.mxu0 0.0
        %2713 = vmatprep.subr.mxu0 0.0
        %2714 = vmatpush1.msra.mxu0 0.0
        %2715 = vmatprep.subr.mxu0 0.0
        %2716 = vmatpush1.msra.mxu0 0.0
        %2717 = vmatprep.subr.mxu0 0.0
        %2718 = vmatpush1.msra.mxu0 0.0
        %2719 = vmatprep.subr.mxu0 0.0
        %2720 = vmatpush1.msra.mxu0 0.0
        %2721 = vmatprep.subr.mxu0 0.0
        %2722 = vmatpush1.msra.mxu0 0.0
        %2723 = vmatprep.subr.mxu0 0.0
        %2724 = vmatpush1.msra.mxu0 0.0
        %2725 = vmatprep.subr.mxu0 0.0
        %2726 = vmatpush1.msra.mxu0 0.0
        %2727 = vmatprep.subr.mxu0 0.0
        %2728 = vmatpush1.msra.mxu0 0.0
        %2729 = vmatprep.subr.mxu0 0.0
        %2730 = vmatpush1.msra.mxu0 0.0
        %2731 = vmatprep.subr.mxu0 0.0
        %2732 = vmatpush1.msra.mxu0 0.0
        %2733 = vmatprep.subr.mxu0 0.0
        %2734 = vmatpush1.msra.mxu0 0.0
        %2735 = vmatprep.mubr.f32.mxu0 0.0
        %2736 = vmatmul.mubr.f32.gmra.mrb[0].mxu0 %v2669
        %v2737 = vpop.f32.mrb[0].mxu0
        %v2738 = vadd.f32 %v2667, %v2737
        %v2739 = vpop.f32.mrb[0].mxu0
        %2740 = vdwg.mxu0
        %vm2741 = vcmask 73728
        %2742 = vst.msk [vmem:[%s595] sm:$0x1] %vm2741, %v2738
        %s2743 = sand.u32 %s425, 1
        %s2744 = scalar_lea.sflag [#allocation3], %s2743
        %s2745 = sand.u32 %s425, 1
        %s2746 = scalar_lea.vmem [#allocation2], %s2745
        %p2747 = scmp.lt.s32.totalorder %s34, 1
        %s2748 = scalar_select %p2747, %s34, 1
        %s2749 = smul.addr %s2748, 4
        %s2750 = smul.addr %s2749, 8
        %s2751 = scalar_lea.vmem %s19, %s2750
        // Predicated region
        $region93: #{base_model_forward.1} parent=91 // pred_check
          %p2752 = pneg %p435
        $region94: #{base_model_forward.1} parent=91 // pred_check_branch
          %2754 = sbr.rel (%p2752) target = $region96
        $region95: #{base_model_forward.1} parent=91 // pred_region
          %s2756 = ssub.s32 16, 16
          %2757 = vsyncadd %s2744, %s2756
          %s2758 = smul.addr %s34, 16
          %s2759 = scalar_lea.hbm %s18, %s2758
          %s2761 = sshll.u32 %s2746, 4
          %s2762 = int_to_ptr.vmem [resolvable:$true] %s2761
          %2764 = dma.vmem_to_hbm [thread:$0]  %s2762, 16, %s2759, %s2744
        $region96: #{base_model_forward.1} parent=91 // pred_fallthru
          _
        // Predicated region
        $region97: #{base_model_forward.1} parent=91 // pred_check
          %p2765 = pneg %p461
        $region98: #{base_model_forward.1} parent=91 // pred_check_branch
          %2767 = sbr.rel (%p2765) target = $region100
        $region99: #{base_model_forward.1} parent=91 // pred_region
          _
        $region100: #{base_model_forward.1} parent=91 // pred_fallthru
          _
      $region92: #{base_model_forward.1} parent=5 // pred_fallthru
        _
      %p2768 = scmp.le.s32.totalorder 2, %s29
      // Predicated region
      $region101: #{base_model_forward.1} parent=5 // pred_check
        %p2769 = pneg %p2768
      $region102: #{base_model_forward.1} parent=5 // pred_check_branch
        %2771 = sbr.rel (%p2769) target = $region104
      $region103: #{base_model_forward.1} parent=5 // pred_region
        %s2772 = ssub.s32 %s29, 2
        // Predicated region
        $region105: #{base_model_forward.1} parent=103 // pred_check
          %p2773 = pneg %p441
        $region106: #{base_model_forward.1} parent=103 // pred_check_branch
          %2775 = sbr.rel (%p2773) target = $region108
        $region107: #{base_model_forward.1} parent=103 // pred_region
          %s2776 = sand.u32 %s426, 1
          %s2777 = scalar_lea.sflag [#allocation3], %s2776
          %s2778 = sand.u32 %s426, 1
          %s2779 = scalar_lea.vmem [#allocation2], %s2778
          %2780 = dma.done %s2777, 16
        $region108: #{base_model_forward.1} parent=103 // pred_fallthru
          _
        // Predicated region
        $region109: #{base_model_forward.1} parent=103 // pred_check
          %p2781 = pneg %p467
        $region110: #{base_model_forward.1} parent=103 // pred_check_branch
          %2783 = sbr.rel (%p2781) target = $region112
        $region111: #{base_model_forward.1} parent=103 // pred_region
          %p2784 = scmp.lt.s32.totalorder %s35, 1
          %s2785 = scalar_select %p2784, %s35, 1
          %s2786 = smul.addr %s2785, 4
          %s2787 = smul.addr %s2786, 8
          %s2788 = scalar_lea.vmem %s19, %s2787
        $region112: #{base_model_forward.1} parent=103 // pred_fallthru
          _
      $region104: #{base_model_forward.1} parent=5 // pred_fallthru
        _
    $region6: #{base_model_forward.1} parent=1 // loop_footer
      %s33 = sadd.s32 1, %s29
    $region7: #{base_model_forward.1} parent=1 // loop_footer_branch
      %28 = sbr.rel target = $region3
    $region8: #{base_model_forward.1} parent=1 // loop_exit
      _
    %2789 = vsyncpa [#allocation3], 1
    %s2790 = scalar_lea.sflag [#allocation3], 1
    %2791 = vsyncpa %s2790, 1

</llo_original>
